<compile_context>
chip_gen: v7x
topology: tpu7x:2x2x1
jax: 0.10.0
libtpu: 0.0.40
codegen_flags: <defaults>
</compile_context>

<pallas_src>
import jax
import jax.numpy as jnp
from jax.experimental import pallas as pl
from jax.experimental.pallas import tpu as pltpu

# ----------------------------- model dimensions ------------------------------
DIM_MIDDLE = 128
DIM_POLICY = 16
DIM_VALUE = 32
DIM_MAP = DIM_POLICY + DIM_VALUE          # 48
DIM_VHEAD = 3                             # value_no_draw = False
DIM_PLANE = 2                             # 'basic-nostm' input planes
LANE = 128                                # lane-dense feature / output width
QMAX = 127.0 / 128.0

# MXU operand dtype for the mapping kernel matmuls (accumulation stays f32).
MXU_DTYPE = jnp.bfloat16

# Packed weight-slab layout (per symmetry group): 10 x (128, 128) matrices.
W_CONV1, W_CONV2, W_CONV3, W_FINAL = 0, 1, 2, 3
W_LAD2, W_LAD3 = 4, 7                      # 3 taps each
# Packed bias-slab layout: 6 x (1, 128) rows.
B_CONV1, B_CONV2, B_CONV3, B_FINAL, B_LAD2, B_LAD3 = 0, 1, 2, 3, 4, 5


def _ru8(x):
    return ((x + 7) // 8) * 8


# ----------------------------- in-kernel helpers -----------------------------
def _mish(x):
    # mish(x) = x * tanh(softplus(x)) = x * n / (n + 2)  with  n = e^x (e^x + 2).
    # Single transcendental (exp) + exact divide (EUP path, off the VALU slot).
    e = jnp.exp(jnp.minimum(x, 20.0))
    n = e * (e + 2.0)
    return x * (n / (n + 2.0))


# ------------------------------ mapping kernel -------------------------------
def mapping_kernel(gid_ref, x_ref, w_ref, b_ref, out_ref):
    # gid_ref: scalar-prefetch per-tile group ids (consumed only in index_maps).
    del gid_ref
    tb = x_ref.shape[1]
    wt = w_ref.dtype

    def dot(a, widx):
        # bf16 (or f32) MXU operands, f32 accumulation.
        return jnp.dot(a.astype(wt), w_ref[0, widx],
                       preferred_element_type=jnp.float32)

    def rows(a, start, count=1):
        # Static slice of `count` spatial row-blocks (each tb rows).
        return a[start * tb:(start + count) * tb]

    def bias(i):
        return b_ref[0, i]                                       # (1, 128) f32

    # Mish of ladder-1 pre-activations, flattened spatial-major: (9*tb, 128).
    a = _mish(x_ref[...].reshape(9 * tb, DIM_MIDDLE))
    a = _mish(dot(a, W_CONV1) + bias(B_CONV1))                   # conv1x1 #1

    # Ladder 2: 3x3 -> 2x2.  out(y,x) = w0*in(y,x) + w1*in(y+1,x) + w2*in(y+1,x+1).
    # Written as two contiguous row runs (q={0,1} and q={2,3}) -> no concats.
    lb2 = bias(B_LAD2)
    top = _mish(dot(rows(a, 0, 2), W_LAD2) + dot(rows(a, 3, 2), W_LAD2 + 1)
                + dot(rows(a, 4, 2), W_LAD2 + 2) + lb2)          # q = 0, 1
    bot = _mish(dot(rows(a, 3, 2), W_LAD2) + dot(rows(a, 6, 2), W_LAD2 + 1)
                + dot(rows(a, 7, 2), W_LAD2 + 2) + lb2)          # q = 2, 3
    top = _mish(dot(top, W_CONV2) + bias(B_CONV2))               # conv1x1 #2
    bot = _mish(dot(bot, W_CONV2) + bias(B_CONV2))

    # Ladder 3: 2x2 -> 1x1, taps at 2x2 flat positions (0, 2, 3).
    a = _mish(dot(top[0:tb], W_LAD3) + dot(bot[0:tb], W_LAD3 + 1)
              + dot(bot[tb:2 * tb], W_LAD3 + 2) + bias(B_LAD3))  # (tb, 128)
    a = _mish(dot(a, W_CONV3) + bias(B_CONV3))                   # conv1x1 #3

    # Final 1x1 conv -> 48 features zero-padded to 128 lanes (dense stores).
    feat = dot(a, W_FINAL) + bias(B_FINAL)                       # (tb, 128) f32
    feat = jnp.clip(feat, -1.0, QMAX)
    out_ref[...] = jnp.round(feat * 128.0) * (1.0 / 128.0)       # fake_quant(128)


def run_mapping(x1, x2, mw, mb, tb=512):
    """Fused mapping over both symmetry groups.

    x1: (9, B1, 128) group-1 ladder-1 pre-acts (B1 = 8N, spatial-major)
    x2: (9, B2, 128) group-2 ladder-1 pre-acts (B2 = 4N)
    mw: (2, 10, 128, 128) packed weight slabs (MXU_DTYPE)
    mb: (2, 6, 1, 128)   packed bias slabs (f32)
    Returns lane-dense quantised features (B1, 128), (B2, 128).
    """
    b1, b2 = x1.shape[1], x2.shape[1]
    # Batch tile: multiple of 8; cap so group 1 splits in two at small batch
    # (>=3 grid steps -> both v7x TCs busy); tb=512 fits the 32 MiB scoped-VMEM
    # default on v5e/v6e/v7x with headroom.
    tb = max(8, min(tb, _ru8(-(-b1 // 2))))
    b1p, b2p = -(-b1 // tb) * tb, -(-b2 // tb) * tb
    x = jnp.concatenate(
        [jnp.pad(x1, ((0, 0), (0, b1p - b1), (0, 0))),
         jnp.pad(x2, ((0, 0), (0, b2p - b2), (0, 0)))], axis=1)
    n1, n2 = b1p // tb, b2p // tb
    # Per-tile symmetry-group id, scalar-prefetched for the weight index_maps.
    gid = (jnp.arange(n1 + n2, dtype=jnp.int32) >= n1).astype(jnp.int32)

    grid_spec = pltpu.PrefetchScalarGridSpec(
        num_scalar_prefetch=1,
        grid=(n1 + n2,),
        in_specs=[
            pl.BlockSpec((9, tb, LANE), lambda i, g: (0, i, 0)),
            pl.BlockSpec((1,) + mw.shape[1:], lambda i, g: (g[i], 0, 0, 0)),
            pl.BlockSpec((1,) + mb.shape[1:], lambda i, g: (g[i], 0, 0, 0)),
        ],
        out_specs=pl.BlockSpec((tb, LANE), lambda i, g: (i, 0)),
    )
    out = pl.pallas_call(
        mapping_kernel,
        grid_spec=grid_spec,
        out_shape=jax.ShapeDtypeStruct((b1p + b2p, LANE), jnp.float32),
        compiler_params=pltpu.CompilerParams(dimension_semantics=("parallel",)),
    )(gid, x, mw, mb)
    return out[:b1], out[b1p:b1p + b2]


# -------------------------------- head kernel --------------------------------
def head_kernel(feat_ref,
                pw1_ref, pb1_ref, pw2_ref, pb2_ref, pq_ref,
                vw1_ref, vb1_ref, vw2_ref, vb2_ref,
                vw3_ref, vb3_ref, vw4_ref, vb4_ref,
                policy_ref, value_ref):
    feat = feat_ref[...]                                        # (tn, 128) dense

    def dot(a, w_ref):
        return jnp.dot(a, w_ref[...], preferred_element_type=jnp.float32)

    # Policy head: pw1 has zero rows beyond 0..15 -> acts on feat[:, :16].
    pk = jnp.maximum(dot(feat, pw1_ref) + pb1_ref[...], 0.0)
    pk = dot(pk, pw2_ref) + pb2_ref[...]
    policy_ref[...] = dot(pk, pq_ref)                           # (tn,128); 0..48 real

    # Value head: vw1 rows 16..47 carry the weights -> acts on feat[:, 16:48];
    # padded lanes are exactly 0 so the pre-linear clamp is unaffected.
    v = feat
    for w_ref, b_ref in ((vw1_ref, vb1_ref), (vw2_ref, vb2_ref),
                         (vw3_ref, vb3_ref), (vw4_ref, vb4_ref)):
        v = jnp.clip(v, 0.0, QMAX)
        v = dot(v, w_ref) + b_ref[...]
    value_ref[...] = v                                          # (tn,128); 0..2 real


def _full_spec(arr):
    nd = arr.ndim
    return pl.BlockSpec(arr.shape, lambda i, _nd=nd: (0,) * _nd)


def run_head(feature, params, tn=512):
    n = feature.shape[0]
    tn = max(8, min(tn, _ru8(n)))
    n_pad = -(-n // tn) * tn
    if n_pad != n:
        feature = jnp.pad(feature, ((0, n_pad - n), (0, 0)))

    in_specs = ([pl.BlockSpec((tn, LANE), lambda i: (i, 0))]
                + [_full_spec(p) for p in params])
    out_specs = (pl.BlockSpec((tn, LANE), lambda i: (i, 0)),
                 pl.BlockSpec((tn, LANE), lambda i: (i, 0)))
    policy, value = pl.pallas_call(
        head_kernel,
        grid=(n_pad // tn,),
        in_specs=in_specs,
        out_specs=out_specs,
        out_shape=(jax.ShapeDtypeStruct((n_pad, LANE), jnp.float32),
                   jax.ShapeDtypeStruct((n_pad, LANE), jnp.float32)),
        compiler_params=pltpu.CompilerParams(dimension_semantics=("parallel",)),
    )(feature, *params)
    return policy[:n, :49], value[:n, :DIM_VHEAD]


# ------------------------------ parameter setup ------------------------------
def init_params(key):
    keys = iter(jax.random.split(key, 64))

    def nrm(shape, scale):
        return jax.random.normal(next(keys), shape, jnp.float32) * scale

    def ladder_params(cin, cout):
        # PyTorch: weight (3, cout, cin), kaiming-normal; bias zeros.
        w = nrm((3, cout, cin), (2.0 / max(cin, 1)) ** 0.5)
        w = jnp.transpose(w, (0, 2, 1))                          # (3, cin, cout)
        b = jnp.zeros((1, cout), jnp.float32)
        return w, b

    def conv1x1_params(cin, cout, cout_pad=None):
        # 1x1 conv with eval-mode BN folded into effective (W, b).
        w = nrm((cin, cout), (1.0 / cin) ** 0.5)
        b = nrm((1, cout), 0.05)
        if cout_pad is not None and cout_pad > cout:
            w = jnp.pad(w, ((0, 0), (0, cout_pad - cout)))
            b = jnp.pad(b, ((0, 0), (0, cout_pad - cout)))
        return w, b

    def mapping_group():
        lw1, lb1 = ladder_params(DIM_PLANE, DIM_MIDDLE)          # used in wrapper
        cw1, cb1 = conv1x1_params(DIM_MIDDLE, DIM_MIDDLE)
        lw2, lb2 = ladder_params(DIM_MIDDLE, DIM_MIDDLE)
        cw2, cb2 = conv1x1_params(DIM_MIDDLE, DIM_MIDDLE)
        lw3, lb3 = ladder_params(DIM_MIDDLE, DIM_MIDDLE)
        cw3, cb3 = conv1x1_params(DIM_MIDDLE, DIM_MIDDLE)
        fw, fb = conv1x1_params(DIM_MIDDLE, DIM_MAP, cout_pad=LANE)
        wslab = jnp.stack([cw1, cw2, cw3, fw,
                           lw2[0], lw2[1], lw2[2],
                           lw3[0], lw3[1], lw3[2]], axis=0)      # (10, 128, 128)
        bslab = jnp.stack([cb1, cb2, cb3, fb, lb2, lb3], axis=0)  # (6, 1, 128)
        return lw1, lb1, wslab, bslab

    g1 = mapping_group()
    g2 = mapping_group()
    mapp = dict(
        lw1=jnp.stack([g1[0], g2[0]]),                           # (2, 3, 2, 128)
        lb1=jnp.stack([g1[1], g2[1]]),                           # (2, 1, 128)
        mw=jnp.stack([g1[2], g2[2]]).astype(MXU_DTYPE),          # (2, 10, 128, 128)
        mb=jnp.stack([g1[3], g2[3]]),                            # (2, 6, 1, 128)
    )

    def linear_params(cin, cout):
        w = nrm((cin, cout), (1.0 / cin) ** 0.5)
        b = nrm((1, cout), 0.05)
        return w, b

    # Head weights zero-padded so the head consumes the lane-dense (tn,128)
    # feature and writes lane-dense (tn,128) outputs.
    pw1, pb1 = linear_params(DIM_POLICY, DIM_POLICY)
    pw1 = jnp.pad(pw1, ((0, LANE - DIM_POLICY), (0, 0)))         # (128, 16)
    pw2, pb2 = linear_params(DIM_POLICY, DIM_POLICY)
    policy_query = jax.random.normal(next(keys), (49, DIM_POLICY), jnp.float32)
    pq_t = jnp.pad(jnp.transpose(policy_query), ((0, 0), (0, LANE - 49)))  # (16,128)
    vw1, vb1 = linear_params(DIM_VALUE, 32)
    vw1 = jnp.pad(vw1, ((DIM_POLICY, LANE - DIM_MAP), (0, 0)))   # (128, 32)
    vw2, vb2 = linear_params(32, 32)
    vw3, vb3 = linear_params(32, 32)
    vw4, vb4 = linear_params(32, DIM_VHEAD)
    vw4 = jnp.pad(vw4, ((0, 0), (0, LANE - DIM_VHEAD)))          # (32, 128)
    vb4 = jnp.pad(vb4, ((0, 0), (0, LANE - DIM_VHEAD)))          # (1, 128)
    headp = (pw1, pb1, pw2, pb2, pq_t,
             vw1, vb1, vw2, vb2, vw3, vb3, vw4, vb4)
    return mapp, headp


# -------------------------------- glue / forward ------------------------------
MAPPING1_INDEX = [[0, 4, 0, 4, 0, False], [0, 4, 0, 4, 0, True],
                  [0, 4, 3, 7, 1, False], [0, 4, 3, 7, -1, True],
                  [3, 7, 3, 7, 2, False], [3, 7, 3, 7, 2, True],
                  [3, 7, 0, 4, -1, False], [3, 7, 0, 4, 1, True]]
MAPPING2_INDEX = [[0, 4, 0, 4, 1], [0, 4, 3, 7, 2], [3, 7, 3, 7, -1], [3, 7, 0, 4, 0]]


def extract_chunks(plane):
    """plane: (N, C, 7, 7) NCHW -> two stacks of symmetry chunks (G, N, C, 4, 4)."""
    c1 = []
    for y0, y1, x0, x1, k, t in MAPPING1_INDEX:
        c = plane[:, :, y0:y1, x0:x1]
        if t:
            c = jnp.swapaxes(c, 2, 3)
        c = jnp.rot90(c, k, axes=(2, 3))
        c1.append(c)
    c2 = []
    for y0, y1, x0, x1, k in MAPPING2_INDEX:
        c = jnp.rot90(plane[:, :, y0:y1, x0:x1], k, axes=(2, 3))
        c2.append(c)
    return jnp.stack(c1, 0), jnp.stack(c2, 0)


def ladder1_preact(chunks, w, b):
    """First ladder conv (K=2) in XLA: (G, N, 2, 4, 4) -> (9, G*N, 128) pre-acts."""
    t0 = chunks[:, :, :, 0:3, 0:3]           # in(y, x)
    t1 = chunks[:, :, :, 1:4, 0:3]           # in(y+1, x)
    t2 = chunks[:, :, :, 1:4, 1:4]           # in(y+1, x+1)
    taps = jnp.stack([t0, t1, t2], axis=0)                       # (3, G, N, 2, 3, 3)
    h = jnp.einsum('tgncyx,tcm->yxgnm', taps, w) + b             # (3, 3, G, N, 128)
    g, n = chunks.shape[0], chunks.shape[1]
    return h.reshape(9, g * n, w.shape[-1])


@jax.jit
def forward(plane, mapp, headp):
    n = plane.shape[0]
    c1, c2 = extract_chunks(plane)                               # (8,N,2,4,4), (4,N,2,4,4)
    x1 = ladder1_preact(c1, mapp['lw1'][0], mapp['lb1'][0])      # (9, 8N, 128)
    x2 = ladder1_preact(c2, mapp['lw1'][1], mapp['lb1'][1])      # (9, 4N, 128)
    f1, f2 = run_mapping(x1, x2, mapp['mw'], mapp['mb'])
    # Lane-dense 128-wide feature sum (lanes 48..127 are exactly zero).
    feature = f1.reshape(8, n, LANE).sum(0) + f2.reshape(4, n, LANE).sum(0)
    policy_flat, value = run_head(feature, headp)
    policy = policy_flat.reshape(-1, 7, 7)
    return value, policy


if __name__ == "__main__":
    # Synthetic stand-in for build_input_plane('basic-nostm') output: (N, 2, 7, 7)
    x = jax.random.normal(jax.random.PRNGKey(0), (2, DIM_PLANE, 7, 7), jnp.float32)
    mapp, headp = init_params(jax.random.PRNGKey(1))
    value, policy = forward(x, mapp, headp)
    jax.block_until_ready((value, policy))
    assert value.shape == (2, DIM_VHEAD) and policy.shape == (2, 7, 7)
    print("KERNEL_OK")
</pallas_src>

<mosaic_0001>
module attributes {stable_mosaic.version = 11 : i64} {
  func.func @mapping_kernel(%arg0: i32, %arg1: memref<3xi32, #tpu.memory_space<smem>>, %arg2: memref<9x8x128xf32, #tpu.memory_space<vmem>>, %arg3: memref<1x10x128x128xbf16, #tpu.memory_space<vmem>>, %arg4: memref<1x6x1x128xf32, #tpu.memory_space<vmem>>, %arg5: memref<8x128xf32, #tpu.memory_space<vmem>>) attributes {dimension_semantics = [#tpu.dimension_semantics<parallel>], iteration_bounds = array<i64: 3>, scalar_prefetch = 1 : i64, scratch_operands = 0 : i64, tpu.core_type = #tpu.core_type<tc>, window_params = [{transform_indices = @transform_0, window_bounds = array<i64: 9, 8, 128>}, {transform_indices = @transform_1, window_bounds = array<i64: 1, 10, 128, 128>}, {transform_indices = @transform_2, window_bounds = array<i64: 1, 6, 1, 128>}, {transform_indices = @transform_3, window_bounds = array<i64: 8, 128>}]} {
    %c0 = arith.constant 0 : index
    %c0_0 = arith.constant 0 : index
    %c0_1 = arith.constant 0 : index
    %0 = vector.load %arg2[%c0, %c0_0, %c0_1] : memref<9x8x128xf32, #tpu.memory_space<vmem>>, vector<9x8x128xf32>
    %1 = vector.shape_cast %0 : vector<9x8x128xf32> to vector<72x128xf32>
    %cst = arith.constant 2.000000e+01 : f32
    %2 = vector.broadcast %cst : f32 to vector<72x128xf32>
    %3 = arith.minimumf %1, %2 : vector<72x128xf32>
    %4 = math.exp %3 : vector<72x128xf32>
    %cst_2 = arith.constant 2.000000e+00 : f32
    %5 = vector.broadcast %cst_2 : f32 to vector<72x128xf32>
    %6 = arith.addf %4, %5 : vector<72x128xf32>
    %7 = arith.mulf %4, %6 : vector<72x128xf32>
    %cst_3 = arith.constant 2.000000e+00 : f32
    %8 = vector.broadcast %cst_3 : f32 to vector<72x128xf32>
    %9 = arith.addf %7, %8 : vector<72x128xf32>
    %10 = arith.divf %7, %9 : vector<72x128xf32>
    %11 = arith.mulf %1, %10 : vector<72x128xf32>
    %12 = arith.truncf %11 : vector<72x128xf32> to vector<72x128xbf16>
    %c0_4 = arith.constant 0 : index
    %c0_5 = arith.constant 0 : index
    %c0_6 = arith.constant 0 : index
    %c0_7 = arith.constant 0 : index
    %13 = vector.load %arg3[%c0_4, %c0_5, %c0_6, %c0_7] : memref<1x10x128x128xbf16, #tpu.memory_space<vmem>>, vector<1x1x128x128xbf16>
    %14 = vector.shape_cast %13 : vector<1x1x128x128xbf16> to vector<128x128xbf16>
    %cst_8 = arith.constant dense<0.000000e+00> : vector<72x128xf32>
    %15 = tpu.matmul %12, %14, %cst_8 {dimension_numbers = #tpu.dot_dimension_numbers<[1], [0], [0], [1], [0, 0, 1, 1], [], []>} : vector<72x128xbf16>, vector<128x128xbf16>, vector<72x128xf32> -> vector<72x128xf32>
    %c0_9 = arith.constant 0 : index
    %c0_10 = arith.constant 0 : index
    %c0_11 = arith.constant 0 : index
    %c0_12 = arith.constant 0 : index
    %16 = vector.load %arg4[%c0_9, %c0_10, %c0_11, %c0_12] : memref<1x6x1x128xf32, #tpu.memory_space<vmem>>, vector<1x1x1x128xf32>
    %17 = vector.shape_cast %16 : vector<1x1x1x128xf32> to vector<1x128xf32>
    %18 = vector.broadcast %17 : vector<1x128xf32> to vector<72x128xf32>
    %19 = arith.addf %15, %18 : vector<72x128xf32>
    %cst_13 = arith.constant 2.000000e+01 : f32
    %20 = vector.broadcast %cst_13 : f32 to vector<72x128xf32>
    %21 = arith.minimumf %19, %20 : vector<72x128xf32>
    %22 = math.exp %21 : vector<72x128xf32>
    %cst_14 = arith.constant 2.000000e+00 : f32
    %23 = vector.broadcast %cst_14 : f32 to vector<72x128xf32>
    %24 = arith.addf %22, %23 : vector<72x128xf32>
    %25 = arith.mulf %22, %24 : vector<72x128xf32>
    %cst_15 = arith.constant 2.000000e+00 : f32
    %26 = vector.broadcast %cst_15 : f32 to vector<72x128xf32>
    %27 = arith.addf %25, %26 : vector<72x128xf32>
    %28 = arith.divf %25, %27 : vector<72x128xf32>
    %29 = arith.mulf %19, %28 : vector<72x128xf32>
    %c0_16 = arith.constant 0 : index
    %c4 = arith.constant 4 : index
    %c0_17 = arith.constant 0 : index
    %c0_18 = arith.constant 0 : index
    %30 = vector.load %arg4[%c0_16, %c4, %c0_17, %c0_18] : memref<1x6x1x128xf32, #tpu.memory_space<vmem>>, vector<1x1x1x128xf32>
    %31 = vector.shape_cast %30 : vector<1x1x1x128xf32> to vector<1x128xf32>
    %32 = vector.extract_strided_slice %29 {offsets = [0, 0], sizes = [16, 128], strides = [1, 1]} : vector<72x128xf32> to vector<16x128xf32>
    %33 = arith.truncf %32 : vector<16x128xf32> to vector<16x128xbf16>
    %c0_19 = arith.constant 0 : index
    %c4_20 = arith.constant 4 : index
    %c0_21 = arith.constant 0 : index
    %c0_22 = arith.constant 0 : index
    %34 = vector.load %arg3[%c0_19, %c4_20, %c0_21, %c0_22] : memref<1x10x128x128xbf16, #tpu.memory_space<vmem>>, vector<1x1x128x128xbf16>
    %35 = vector.shape_cast %34 : vector<1x1x128x128xbf16> to vector<128x128xbf16>
    %cst_23 = arith.constant dense<0.000000e+00> : vector<16x128xf32>
    %36 = tpu.matmul %33, %35, %cst_23 {dimension_numbers = #tpu.dot_dimension_numbers<[1], [0], [0], [1], [0, 0, 1, 1], [], []>} : vector<16x128xbf16>, vector<128x128xbf16>, vector<16x128xf32> -> vector<16x128xf32>
    %37 = vector.extract_strided_slice %29 {offsets = [24, 0], sizes = [16, 128], strides = [1, 1]} : vector<72x128xf32> to vector<16x128xf32>
    %38 = arith.truncf %37 : vector<16x128xf32> to vector<16x128xbf16>
    %c0_24 = arith.constant 0 : index
    %c5 = arith.constant 5 : index
    %c0_25 = arith.constant 0 : index
    %c0_26 = arith.constant 0 : index
    %39 = vector.load %arg3[%c0_24, %c5, %c0_25, %c0_26] : memref<1x10x128x128xbf16, #tpu.memory_space<vmem>>, vector<1x1x128x128xbf16>
    %40 = vector.shape_cast %39 : vector<1x1x128x128xbf16> to vector<128x128xbf16>
    %cst_27 = arith.constant dense<0.000000e+00> : vector<16x128xf32>
    %41 = tpu.matmul %38, %40, %cst_27 {dimension_numbers = #tpu.dot_dimension_numbers<[1], [0], [0], [1], [0, 0, 1, 1], [], []>} : vector<16x128xbf16>, vector<128x128xbf16>, vector<16x128xf32> -> vector<16x128xf32>
    %42 = arith.addf %36, %41 : vector<16x128xf32>
    %43 = vector.extract_strided_slice %29 {offsets = [32, 0], sizes = [16, 128], strides = [1, 1]} : vector<72x128xf32> to vector<16x128xf32>
    %44 = arith.truncf %43 : vector<16x128xf32> to vector<16x128xbf16>
    %c0_28 = arith.constant 0 : index
    %c6 = arith.constant 6 : index
    %c0_29 = arith.constant 0 : index
    %c0_30 = arith.constant 0 : index
    %45 = vector.load %arg3[%c0_28, %c6, %c0_29, %c0_30] : memref<1x10x128x128xbf16, #tpu.memory_space<vmem>>, vector<1x1x128x128xbf16>
    %46 = vector.shape_cast %45 : vector<1x1x128x128xbf16> to vector<128x128xbf16>
    %cst_31 = arith.constant dense<0.000000e+00> : vector<16x128xf32>
    %47 = tpu.matmul %44, %46, %cst_31 {dimension_numbers = #tpu.dot_dimension_numbers<[1], [0], [0], [1], [0, 0, 1, 1], [], []>} : vector<16x128xbf16>, vector<128x128xbf16>, vector<16x128xf32> -> vector<16x128xf32>
    %48 = arith.addf %42, %47 : vector<16x128xf32>
    %49 = vector.broadcast %31 : vector<1x128xf32> to vector<16x128xf32>
    %50 = arith.addf %48, %49 : vector<16x128xf32>
    %cst_32 = arith.constant 2.000000e+01 : f32
    %51 = vector.broadcast %cst_32 : f32 to vector<16x128xf32>
    %52 = arith.minimumf %50, %51 : vector<16x128xf32>
    %53 = math.exp %52 : vector<16x128xf32>
    %cst_33 = arith.constant 2.000000e+00 : f32
    %54 = vector.broadcast %cst_33 : f32 to vector<16x128xf32>
    %55 = arith.addf %53, %54 : vector<16x128xf32>
    %56 = arith.mulf %53, %55 : vector<16x128xf32>
    %cst_34 = arith.constant 2.000000e+00 : f32
    %57 = vector.broadcast %cst_34 : f32 to vector<16x128xf32>
    %58 = arith.addf %56, %57 : vector<16x128xf32>
    %59 = arith.divf %56, %58 : vector<16x128xf32>
    %60 = arith.mulf %50, %59 : vector<16x128xf32>
    %61 = vector.extract_strided_slice %29 {offsets = [24, 0], sizes = [16, 128], strides = [1, 1]} : vector<72x128xf32> to vector<16x128xf32>
    %62 = arith.truncf %61 : vector<16x128xf32> to vector<16x128xbf16>
    %c0_35 = arith.constant 0 : index
    %c4_36 = arith.constant 4 : index
    %c0_37 = arith.constant 0 : index
    %c0_38 = arith.constant 0 : index
    %63 = vector.load %arg3[%c0_35, %c4_36, %c0_37, %c0_38] : memref<1x10x128x128xbf16, #tpu.memory_space<vmem>>, vector<1x1x128x128xbf16>
    %64 = vector.shape_cast %63 : vector<1x1x128x128xbf16> to vector<128x128xbf16>
    %cst_39 = arith.constant dense<0.000000e+00> : vector<16x128xf32>
    %65 = tpu.matmul %62, %64, %cst_39 {dimension_numbers = #tpu.dot_dimension_numbers<[1], [0], [0], [1], [0, 0, 1, 1], [], []>} : vector<16x128xbf16>, vector<128x128xbf16>, vector<16x128xf32> -> vector<16x128xf32>
    %66 = vector.extract_strided_slice %29 {offsets = [48, 0], sizes = [16, 128], strides = [1, 1]} : vector<72x128xf32> to vector<16x128xf32>
    %67 = arith.truncf %66 : vector<16x128xf32> to vector<16x128xbf16>
    %c0_40 = arith.constant 0 : index
    %c5_41 = arith.constant 5 : index
    %c0_42 = arith.constant 0 : index
    %c0_43 = arith.constant 0 : index
    %68 = vector.load %arg3[%c0_40, %c5_41, %c0_42, %c0_43] : memref<1x10x128x128xbf16, #tpu.memory_space<vmem>>, vector<1x1x128x128xbf16>
    %69 = vector.shape_cast %68 : vector<1x1x128x128xbf16> to vector<128x128xbf16>
    %cst_44 = arith.constant dense<0.000000e+00> : vector<16x128xf32>
    %70 = tpu.matmul %67, %69, %cst_44 {dimension_numbers = #tpu.dot_dimension_numbers<[1], [0], [0], [1], [0, 0, 1, 1], [], []>} : vector<16x128xbf16>, vector<128x128xbf16>, vector<16x128xf32> -> vector<16x128xf32>
    %71 = arith.addf %65, %70 : vector<16x128xf32>
    %72 = vector.extract_strided_slice %29 {offsets = [56, 0], sizes = [16, 128], strides = [1, 1]} : vector<72x128xf32> to vector<16x128xf32>
    %73 = arith.truncf %72 : vector<16x128xf32> to vector<16x128xbf16>
    %c0_45 = arith.constant 0 : index
    %c6_46 = arith.constant 6 : index
    %c0_47 = arith.constant 0 : index
    %c0_48 = arith.constant 0 : index
    %74 = vector.load %arg3[%c0_45, %c6_46, %c0_47, %c0_48] : memref<1x10x128x128xbf16, #tpu.memory_space<vmem>>, vector<1x1x128x128xbf16>
    %75 = vector.shape_cast %74 : vector<1x1x128x128xbf16> to vector<128x128xbf16>
    %cst_49 = arith.constant dense<0.000000e+00> : vector<16x128xf32>
    %76 = tpu.matmul %73, %75, %cst_49 {dimension_numbers = #tpu.dot_dimension_numbers<[1], [0], [0], [1], [0, 0, 1, 1], [], []>} : vector<16x128xbf16>, vector<128x128xbf16>, vector<16x128xf32> -> vector<16x128xf32>
    %77 = arith.addf %71, %76 : vector<16x128xf32>
    %78 = vector.broadcast %31 : vector<1x128xf32> to vector<16x128xf32>
    %79 = arith.addf %77, %78 : vector<16x128xf32>
    %cst_50 = arith.constant 2.000000e+01 : f32
    %80 = vector.broadcast %cst_50 : f32 to vector<16x128xf32>
    %81 = arith.minimumf %79, %80 : vector<16x128xf32>
    %82 = math.exp %81 : vector<16x128xf32>
    %cst_51 = arith.constant 2.000000e+00 : f32
    %83 = vector.broadcast %cst_51 : f32 to vector<16x128xf32>
    %84 = arith.addf %82, %83 : vector<16x128xf32>
    %85 = arith.mulf %82, %84 : vector<16x128xf32>
    %cst_52 = arith.constant 2.000000e+00 : f32
    %86 = vector.broadcast %cst_52 : f32 to vector<16x128xf32>
    %87 = arith.addf %85, %86 : vector<16x128xf32>
    %88 = arith.divf %85, %87 : vector<16x128xf32>
    %89 = arith.mulf %79, %88 : vector<16x128xf32>
    %90 = arith.truncf %60 : vector<16x128xf32> to vector<16x128xbf16>
    %c0_53 = arith.constant 0 : index
    %c1 = arith.constant 1 : index
    %c0_54 = arith.constant 0 : index
    %c0_55 = arith.constant 0 : index
    %91 = vector.load %arg3[%c0_53, %c1, %c0_54, %c0_55] : memref<1x10x128x128xbf16, #tpu.memory_space<vmem>>, vector<1x1x128x128xbf16>
    %92 = vector.shape_cast %91 : vector<1x1x128x128xbf16> to vector<128x128xbf16>
    %cst_56 = arith.constant dense<0.000000e+00> : vector<16x128xf32>
    %93 = tpu.matmul %90, %92, %cst_56 {dimension_numbers = #tpu.dot_dimension_numbers<[1], [0], [0], [1], [0, 0, 1, 1], [], []>} : vector<16x128xbf16>, vector<128x128xbf16>, vector<16x128xf32> -> vector<16x128xf32>
    %c0_57 = arith.constant 0 : index
    %c1_58 = arith.constant 1 : index
    %c0_59 = arith.constant 0 : index
    %c0_60 = arith.constant 0 : index
    %94 = vector.load %arg4[%c0_57, %c1_58, %c0_59, %c0_60] : memref<1x6x1x128xf32, #tpu.memory_space<vmem>>, vector<1x1x1x128xf32>
    %95 = vector.shape_cast %94 : vector<1x1x1x128xf32> to vector<1x128xf32>
    %96 = vector.broadcast %95 : vector<1x128xf32> to vector<16x128xf32>
    %97 = arith.addf %93, %96 : vector<16x128xf32>
    %cst_61 = arith.constant 2.000000e+01 : f32
    %98 = vector.broadcast %cst_61 : f32 to vector<16x128xf32>
    %99 = arith.minimumf %97, %98 : vector<16x128xf32>
    %100 = math.exp %99 : vector<16x128xf32>
    %cst_62 = arith.constant 2.000000e+00 : f32
    %101 = vector.broadcast %cst_62 : f32 to vector<16x128xf32>
    %102 = arith.addf %100, %101 : vector<16x128xf32>
    %103 = arith.mulf %100, %102 : vector<16x128xf32>
    %cst_63 = arith.constant 2.000000e+00 : f32
    %104 = vector.broadcast %cst_63 : f32 to vector<16x128xf32>
    %105 = arith.addf %103, %104 : vector<16x128xf32>
    %106 = arith.divf %103, %105 : vector<16x128xf32>
    %107 = arith.mulf %97, %106 : vector<16x128xf32>
    %108 = arith.truncf %89 : vector<16x128xf32> to vector<16x128xbf16>
    %c0_64 = arith.constant 0 : index
    %c1_65 = arith.constant 1 : index
    %c0_66 = arith.constant 0 : index
    %c0_67 = arith.constant 0 : index
    %109 = vector.load %arg3[%c0_64, %c1_65, %c0_66, %c0_67] : memref<1x10x128x128xbf16, #tpu.memory_space<vmem>>, vector<1x1x128x128xbf16>
    %110 = vector.shape_cast %109 : vector<1x1x128x128xbf16> to vector<128x128xbf16>
    %cst_68 = arith.constant dense<0.000000e+00> : vector<16x128xf32>
    %111 = tpu.matmul %108, %110, %cst_68 {dimension_numbers = #tpu.dot_dimension_numbers<[1], [0], [0], [1], [0, 0, 1, 1], [], []>} : vector<16x128xbf16>, vector<128x128xbf16>, vector<16x128xf32> -> vector<16x128xf32>
    %c0_69 = arith.constant 0 : index
    %c1_70 = arith.constant 1 : index
    %c0_71 = arith.constant 0 : index
    %c0_72 = arith.constant 0 : index
    %112 = vector.load %arg4[%c0_69, %c1_70, %c0_71, %c0_72] : memref<1x6x1x128xf32, #tpu.memory_space<vmem>>, vector<1x1x1x128xf32>
    %113 = vector.shape_cast %112 : vector<1x1x1x128xf32> to vector<1x128xf32>
    %114 = vector.broadcast %113 : vector<1x128xf32> to vector<16x128xf32>
    %115 = arith.addf %111, %114 : vector<16x128xf32>
    %cst_73 = arith.constant 2.000000e+01 : f32
    %116 = vector.broadcast %cst_73 : f32 to vector<16x128xf32>
    %117 = arith.minimumf %115, %116 : vector<16x128xf32>
    %118 = math.exp %117 : vector<16x128xf32>
    %cst_74 = arith.constant 2.000000e+00 : f32
    %119 = vector.broadcast %cst_74 : f32 to vector<16x128xf32>
    %120 = arith.addf %118, %119 : vector<16x128xf32>
    %121 = arith.mulf %118, %120 : vector<16x128xf32>
    %cst_75 = arith.constant 2.000000e+00 : f32
    %122 = vector.broadcast %cst_75 : f32 to vector<16x128xf32>
    %123 = arith.addf %121, %122 : vector<16x128xf32>
    %124 = arith.divf %121, %123 : vector<16x128xf32>
    %125 = arith.mulf %115, %124 : vector<16x128xf32>
    %126 = vector.extract_strided_slice %107 {offsets = [0, 0], sizes = [8, 128], strides = [1, 1]} : vector<16x128xf32> to vector<8x128xf32>
    %127 = arith.truncf %126 : vector<8x128xf32> to vector<8x128xbf16>
    %c0_76 = arith.constant 0 : index
    %c7 = arith.constant 7 : index
    %c0_77 = arith.constant 0 : index
    %c0_78 = arith.constant 0 : index
    %128 = vector.load %arg3[%c0_76, %c7, %c0_77, %c0_78] : memref<1x10x128x128xbf16, #tpu.memory_space<vmem>>, vector<1x1x128x128xbf16>
    %129 = vector.shape_cast %128 : vector<1x1x128x128xbf16> to vector<128x128xbf16>
    %cst_79 = arith.constant dense<0.000000e+00> : vector<8x128xf32>
    %130 = tpu.matmul %127, %129, %cst_79 {dimension_numbers = #tpu.dot_dimension_numbers<[1], [0], [0], [1], [0, 0, 1, 1], [], []>} : vector<8x128xbf16>, vector<128x128xbf16>, vector<8x128xf32> -> vector<8x128xf32>
    %131 = vector.extract_strided_slice %125 {offsets = [0, 0], sizes = [8, 128], strides = [1, 1]} : vector<16x128xf32> to vector<8x128xf32>
    %132 = arith.truncf %131 : vector<8x128xf32> to vector<8x128xbf16>
    %c0_80 = arith.constant 0 : index
    %c8 = arith.constant 8 : index
    %c0_81 = arith.constant 0 : index
    %c0_82 = arith.constant 0 : index
    %133 = vector.load %arg3[%c0_80, %c8, %c0_81, %c0_82] : memref<1x10x128x128xbf16, #tpu.memory_space<vmem>>, vector<1x1x128x128xbf16>
    %134 = vector.shape_cast %133 : vector<1x1x128x128xbf16> to vector<128x128xbf16>
    %cst_83 = arith.constant dense<0.000000e+00> : vector<8x128xf32>
    %135 = tpu.matmul %132, %134, %cst_83 {dimension_numbers = #tpu.dot_dimension_numbers<[1], [0], [0], [1], [0, 0, 1, 1], [], []>} : vector<8x128xbf16>, vector<128x128xbf16>, vector<8x128xf32> -> vector<8x128xf32>
    %136 = arith.addf %130, %135 : vector<8x128xf32>
    %137 = vector.extract_strided_slice %125 {offsets = [8, 0], sizes = [8, 128], strides = [1, 1]} : vector<16x128xf32> to vector<8x128xf32>
    %138 = arith.truncf %137 : vector<8x128xf32> to vector<8x128xbf16>
    %c0_84 = arith.constant 0 : index
    %c9 = arith.constant 9 : index
    %c0_85 = arith.constant 0 : index
    %c0_86 = arith.constant 0 : index
    %139 = vector.load %arg3[%c0_84, %c9, %c0_85, %c0_86] : memref<1x10x128x128xbf16, #tpu.memory_space<vmem>>, vector<1x1x128x128xbf16>
    %140 = vector.shape_cast %139 : vector<1x1x128x128xbf16> to vector<128x128xbf16>
    %cst_87 = arith.constant dense<0.000000e+00> : vector<8x128xf32>
    %141 = tpu.matmul %138, %140, %cst_87 {dimension_numbers = #tpu.dot_dimension_numbers<[1], [0], [0], [1], [0, 0, 1, 1], [], []>} : vector<8x128xbf16>, vector<128x128xbf16>, vector<8x128xf32> -> vector<8x128xf32>
    %142 = arith.addf %136, %141 : vector<8x128xf32>
    %c0_88 = arith.constant 0 : index
    %c5_89 = arith.constant 5 : index
    %c0_90 = arith.constant 0 : index
    %c0_91 = arith.constant 0 : index
    %143 = vector.load %arg4[%c0_88, %c5_89, %c0_90, %c0_91] : memref<1x6x1x128xf32, #tpu.memory_space<vmem>>, vector<1x1x1x128xf32>
    %144 = vector.shape_cast %143 : vector<1x1x1x128xf32> to vector<1x128xf32>
    %145 = vector.broadcast %144 : vector<1x128xf32> to vector<8x128xf32>
    %146 = arith.addf %142, %145 : vector<8x128xf32>
    %cst_92 = arith.constant 2.000000e+01 : f32
    %147 = vector.broadcast %cst_92 : f32 to vector<8x128xf32>
    %148 = arith.minimumf %146, %147 : vector<8x128xf32>
    %149 = math.exp %148 : vector<8x128xf32>
    %cst_93 = arith.constant 2.000000e+00 : f32
    %150 = vector.broadcast %cst_93 : f32 to vector<8x128xf32>
    %151 = arith.addf %149, %150 : vector<8x128xf32>
    %152 = arith.mulf %149, %151 : vector<8x128xf32>
    %cst_94 = arith.constant 2.000000e+00 : f32
    %153 = vector.broadcast %cst_94 : f32 to vector<8x128xf32>
    %154 = arith.addf %152, %153 : vector<8x128xf32>
    %155 = arith.divf %152, %154 : vector<8x128xf32>
    %156 = arith.mulf %146, %155 : vector<8x128xf32>
    %157 = arith.truncf %156 : vector<8x128xf32> to vector<8x128xbf16>
    %c0_95 = arith.constant 0 : index
    %c2 = arith.constant 2 : index
    %c0_96 = arith.constant 0 : index
    %c0_97 = arith.constant 0 : index
    %158 = vector.load %arg3[%c0_95, %c2, %c0_96, %c0_97] : memref<1x10x128x128xbf16, #tpu.memory_space<vmem>>, vector<1x1x128x128xbf16>
    %159 = vector.shape_cast %158 : vector<1x1x128x128xbf16> to vector<128x128xbf16>
    %cst_98 = arith.constant dense<0.000000e+00> : vector<8x128xf32>
    %160 = tpu.matmul %157, %159, %cst_98 {dimension_numbers = #tpu.dot_dimension_numbers<[1], [0], [0], [1], [0, 0, 1, 1], [], []>} : vector<8x128xbf16>, vector<128x128xbf16>, vector<8x128xf32> -> vector<8x128xf32>
    %c0_99 = arith.constant 0 : index
    %c2_100 = arith.constant 2 : index
    %c0_101 = arith.constant 0 : index
    %c0_102 = arith.constant 0 : index
    %161 = vector.load %arg4[%c0_99, %c2_100, %c0_101, %c0_102] : memref<1x6x1x128xf32, #tpu.memory_space<vmem>>, vector<1x1x1x128xf32>
    %162 = vector.shape_cast %161 : vector<1x1x1x128xf32> to vector<1x128xf32>
    %163 = vector.broadcast %162 : vector<1x128xf32> to vector<8x128xf32>
    %164 = arith.addf %160, %163 : vector<8x128xf32>
    %cst_103 = arith.constant 2.000000e+01 : f32
    %165 = vector.broadcast %cst_103 : f32 to vector<8x128xf32>
    %166 = arith.minimumf %164, %165 : vector<8x128xf32>
    %167 = math.exp %166 : vector<8x128xf32>
    %cst_104 = arith.constant 2.000000e+00 : f32
    %168 = vector.broadcast %cst_104 : f32 to vector<8x128xf32>
    %169 = arith.addf %167, %168 : vector<8x128xf32>
    %170 = arith.mulf %167, %169 : vector<8x128xf32>
    %cst_105 = arith.constant 2.000000e+00 : f32
    %171 = vector.broadcast %cst_105 : f32 to vector<8x128xf32>
    %172 = arith.addf %170, %171 : vector<8x128xf32>
    %173 = arith.divf %170, %172 : vector<8x128xf32>
    %174 = arith.mulf %164, %173 : vector<8x128xf32>
    %175 = arith.truncf %174 : vector<8x128xf32> to vector<8x128xbf16>
    %c0_106 = arith.constant 0 : index
    %c3 = arith.constant 3 : index
    %c0_107 = arith.constant 0 : index
    %c0_108 = arith.constant 0 : index
    %176 = vector.load %arg3[%c0_106, %c3, %c0_107, %c0_108] : memref<1x10x128x128xbf16, #tpu.memory_space<vmem>>, vector<1x1x128x128xbf16>
    %177 = vector.shape_cast %176 : vector<1x1x128x128xbf16> to vector<128x128xbf16>
    %cst_109 = arith.constant dense<0.000000e+00> : vector<8x128xf32>
    %178 = tpu.matmul %175, %177, %cst_109 {dimension_numbers = #tpu.dot_dimension_numbers<[1], [0], [0], [1], [0, 0, 1, 1], [], []>} : vector<8x128xbf16>, vector<128x128xbf16>, vector<8x128xf32> -> vector<8x128xf32>
    %c0_110 = arith.constant 0 : index
    %c3_111 = arith.constant 3 : index
    %c0_112 = arith.constant 0 : index
    %c0_113 = arith.constant 0 : index
    %179 = vector.load %arg4[%c0_110, %c3_111, %c0_112, %c0_113] : memref<1x6x1x128xf32, #tpu.memory_space<vmem>>, vector<1x1x1x128xf32>
    %180 = vector.shape_cast %179 : vector<1x1x1x128xf32> to vector<1x128xf32>
    %181 = vector.broadcast %180 : vector<1x128xf32> to vector<8x128xf32>
    %182 = arith.addf %178, %181 : vector<8x128xf32>
    %cst_114 = arith.constant -1.000000e+00 : f32
    %cst_115 = arith.constant 0.9921875 : f32
    %183 = vector.broadcast %cst_114 : f32 to vector<8x128xf32>
    %184 = arith.maximumf %183, %182 : vector<8x128xf32>
    %185 = vector.broadcast %cst_115 : f32 to vector<8x128xf32>
    %186 = arith.minimumf %185, %184 : vector<8x128xf32>
    %cst_116 = arith.constant 1.280000e+02 : f32
    %187 = vector.broadcast %cst_116 : f32 to vector<8x128xf32>
    %188 = arith.mulf %186, %187 : vector<8x128xf32>
    %189 = math.roundeven %188 : vector<8x128xf32>
    %cst_117 = arith.constant 7.812500e-03 : f32
    %190 = vector.broadcast %cst_117 : f32 to vector<8x128xf32>
    %191 = arith.mulf %189, %190 : vector<8x128xf32>
    %c0_118 = arith.constant 0 : index
    %c0_119 = arith.constant 0 : index
    %192 = vector.load %arg5[%c0_118, %c0_119] : memref<8x128xf32, #tpu.memory_space<vmem>>, vector<8x128xf32>
    tpu.vector_store %arg5[%c0_118, %c0_119], %191 {strides = array<i32>} : memref<8x128xf32, #tpu.memory_space<vmem>>, vector<8x128xf32>,
    return
  }
  func.func @transform_0(%arg0: i32, %arg1: memref<3xi32, #tpu.memory_space<smem>>) -> (i32, i32, i32) {
    %c0_i32 = arith.constant 0 : i32
    %c0_i32_0 = arith.constant 0 : i32
    %c0_i32_1 = arith.constant 0 : i32
    return %c0_i32, %arg0, %c0_i32_0 : i32, i32, i32
  }
  func.func @transform_1(%arg0: i32, %arg1: memref<3xi32, #tpu.memory_space<smem>>) -> (i32, i32, i32, i32) {
    %0 = arith.index_cast %arg0 : i32 to index
    %1 = memref.load %arg1[%0] : memref<3xi32, #tpu.memory_space<smem>>
    %c0_i32 = arith.constant 0 : i32
    %c0_i32_0 = arith.constant 0 : i32
    %c0_i32_1 = arith.constant 0 : i32
    %c0_i32_2 = arith.constant 0 : i32
    return %1, %c0_i32, %c0_i32_0, %c0_i32_1 : i32, i32, i32, i32
  }
  func.func @transform_2(%arg0: i32, %arg1: memref<3xi32, #tpu.memory_space<smem>>) -> (i32, i32, i32, i32) {
    %0 = arith.index_cast %arg0 : i32 to index
    %1 = memref.load %arg1[%0] : memref<3xi32, #tpu.memory_space<smem>>
    %c0_i32 = arith.constant 0 : i32
    %c0_i32_0 = arith.constant 0 : i32
    %c0_i32_1 = arith.constant 0 : i32
    %c0_i32_2 = arith.constant 0 : i32
    return %1, %c0_i32, %c0_i32_0, %c0_i32_1 : i32, i32, i32, i32
  }
  func.func @transform_3(%arg0: i32, %arg1: memref<3xi32, #tpu.memory_space<smem>>) -> (i32, i32) {
    %c0_i32 = arith.constant 0 : i32
    %c0_i32_0 = arith.constant 0 : i32
    return %arg0, %c0_i32 : i32, i32
  }
}

module attributes {stable_mosaic.version = 11 : i64} {
  func.func @head_kernel(%arg0: i32, %arg1: memref<8x128xf32, #tpu.memory_space<vmem>>, %arg2: memref<128x16xf32, #tpu.memory_space<vmem>>, %arg3: memref<1x16xf32, #tpu.memory_space<vmem>>, %arg4: memref<16x16xf32, #tpu.memory_space<vmem>>, %arg5: memref<1x16xf32, #tpu.memory_space<vmem>>, %arg6: memref<16x128xf32, #tpu.memory_space<vmem>>, %arg7: memref<128x32xf32, #tpu.memory_space<vmem>>, %arg8: memref<1x32xf32, #tpu.memory_space<vmem>>, %arg9: memref<32x32xf32, #tpu.memory_space<vmem>>, %arg10: memref<1x32xf32, #tpu.memory_space<vmem>>, %arg11: memref<32x32xf32, #tpu.memory_space<vmem>>, %arg12: memref<1x32xf32, #tpu.memory_space<vmem>>, %arg13: memref<32x128xf32, #tpu.memory_space<vmem>>, %arg14: memref<1x128xf32, #tpu.memory_space<vmem>>, %arg15: memref<8x128xf32, #tpu.memory_space<vmem>>, %arg16: memref<8x128xf32, #tpu.memory_space<vmem>>) attributes {dimension_semantics = [#tpu.dimension_semantics<parallel>], iteration_bounds = array<i64: 1>, scalar_prefetch = 0 : i64, scratch_operands = 0 : i64, tpu.core_type = #tpu.core_type<tc>, window_params = [{transform_indices = @transform_0, window_bounds = array<i64: 8, 128>}, {pipeline_mode = #tpu.pipeline_mode<synchronous>, transform_indices = @transform_1, window_bounds = array<i64: 128, 16>}, {pipeline_mode = #tpu.pipeline_mode<synchronous>, transform_indices = @transform_2, window_bounds = array<i64: 1, 16>}, {pipeline_mode = #tpu.pipeline_mode<synchronous>, transform_indices = @transform_3, window_bounds = array<i64: 16, 16>}, {pipeline_mode = #tpu.pipeline_mode<synchronous>, transform_indices = @transform_4, window_bounds = array<i64: 1, 16>}, {pipeline_mode = #tpu.pipeline_mode<synchronous>, transform_indices = @transform_5, window_bounds = array<i64: 16, 128>}, {pipeline_mode = #tpu.pipeline_mode<synchronous>, transform_indices = @transform_6, window_bounds = array<i64: 128, 32>}, {pipeline_mode = #tpu.pipeline_mode<synchronous>, transform_indices = @transform_7, window_bounds = array<i64: 1, 32>}, {pipeline_mode = #tpu.pipeline_mode<synchronous>, transform_indices = @transform_8, window_bounds = array<i64: 32, 32>}, {pipeline_mode = #tpu.pipeline_mode<synchronous>, transform_indices = @transform_9, window_bounds = array<i64: 1, 32>}, {pipeline_mode = #tpu.pipeline_mode<synchronous>, transform_indices = @transform_10, window_bounds = array<i64: 32, 32>}, {pipeline_mode = #tpu.pipeline_mode<synchronous>, transform_indices = @transform_11, window_bounds = array<i64: 1, 32>}, {pipeline_mode = #tpu.pipeline_mode<synchronous>, transform_indices = @transform_12, window_bounds = array<i64: 32, 128>}, {pipeline_mode = #tpu.pipeline_mode<synchronous>, transform_indices = @transform_13, window_bounds = array<i64: 1, 128>}, {transform_indices = @transform_14, window_bounds = array<i64: 8, 128>}, {transform_indices = @transform_15, window_bounds = array<i64: 8, 128>}]} {
    %c0 = arith.constant 0 : index
    %c0_0 = arith.constant 0 : index
    %0 = vector.load %arg1[%c0, %c0_0] : memref<8x128xf32, #tpu.memory_space<vmem>>, vector<8x128xf32>
    %c0_1 = arith.constant 0 : index
    %c0_2 = arith.constant 0 : index
    %1 = vector.load %arg2[%c0_1, %c0_2] : memref<128x16xf32, #tpu.memory_space<vmem>>, vector<128x16xf32>
    %cst = arith.constant dense<0.000000e+00> : vector<8x16xf32>
    %2 = tpu.matmul %0, %1, %cst {dimension_numbers = #tpu.dot_dimension_numbers<[1], [0], [0], [1], [0, 0, 1, 1], [], []>} : vector<8x128xf32>, vector<128x16xf32>, vector<8x16xf32> -> vector<8x16xf32>
    %c0_3 = arith.constant 0 : index
    %c0_4 = arith.constant 0 : index
    %3 = vector.load %arg3[%c0_3, %c0_4] : memref<1x16xf32, #tpu.memory_space<vmem>>, vector<1x16xf32>
    %4 = vector.broadcast %3 : vector<1x16xf32> to vector<8x16xf32>
    %5 = arith.addf %2, %4 : vector<8x16xf32>
    %cst_5 = arith.constant 0.000000e+00 : f32
    %6 = vector.broadcast %cst_5 : f32 to vector<8x16xf32>
    %7 = arith.maximumf %5, %6 : vector<8x16xf32>
    %c0_6 = arith.constant 0 : index
    %c0_7 = arith.constant 0 : index
    %8 = vector.load %arg4[%c0_6, %c0_7] : memref<16x16xf32, #tpu.memory_space<vmem>>, vector<16x16xf32>
    %cst_8 = arith.constant dense<0.000000e+00> : vector<8x16xf32>
    %9 = tpu.matmul %7, %8, %cst_8 {dimension_numbers = #tpu.dot_dimension_numbers<[1], [0], [0], [1], [0, 0, 1, 1], [], []>} : vector<8x16xf32>, vector<16x16xf32>, vector<8x16xf32> -> vector<8x16xf32>
    %c0_9 = arith.constant 0 : index
    %c0_10 = arith.constant 0 : index
    %10 = vector.load %arg5[%c0_9, %c0_10] : memref<1x16xf32, #tpu.memory_space<vmem>>, vector<1x16xf32>
    %11 = vector.broadcast %10 : vector<1x16xf32> to vector<8x16xf32>
    %12 = arith.addf %9, %11 : vector<8x16xf32>
    %c0_11 = arith.constant 0 : index
    %c0_12 = arith.constant 0 : index
    %13 = vector.load %arg6[%c0_11, %c0_12] : memref<16x128xf32, #tpu.memory_space<vmem>>, vector<16x128xf32>
    %cst_13 = arith.constant dense<0.000000e+00> : vector<8x128xf32>
    %14 = tpu.matmul %12, %13, %cst_13 {dimension_numbers = #tpu.dot_dimension_numbers<[1], [0], [0], [1], [0, 0, 1, 1], [], []>} : vector<8x16xf32>, vector<16x128xf32>, vector<8x128xf32> -> vector<8x128xf32>
    %c0_14 = arith.constant 0 : index
    %c0_15 = arith.constant 0 : index
    %15 = vector.load %arg15[%c0_14, %c0_15] : memref<8x128xf32, #tpu.memory_space<vmem>>, vector<8x128xf32>
    tpu.vector_store %arg15[%c0_14, %c0_15], %14 {strides = array<i32>} : memref<8x128xf32, #tpu.memory_space<vmem>>, vector<8x128xf32>,
    %cst_16 = arith.constant 0.000000e+00 : f32
    %cst_17 = arith.constant 0.9921875 : f32
    %16 = vector.broadcast %cst_16 : f32 to vector<8x128xf32>
    %17 = arith.maximumf %16, %0 : vector<8x128xf32>
    %18 = vector.broadcast %cst_17 : f32 to vector<8x128xf32>
    %19 = arith.minimumf %18, %17 : vector<8x128xf32>
    %c0_18 = arith.constant 0 : index
    %c0_19 = arith.constant 0 : index
    %20 = vector.load %arg7[%c0_18, %c0_19] : memref<128x32xf32, #tpu.memory_space<vmem>>, vector<128x32xf32>
    %cst_20 = arith.constant dense<0.000000e+00> : vector<8x32xf32>
    %21 = tpu.matmul %19, %20, %cst_20 {dimension_numbers = #tpu.dot_dimension_numbers<[1], [0], [0], [1], [0, 0, 1, 1], [], []>} : vector<8x128xf32>, vector<128x32xf32>, vector<8x32xf32> -> vector<8x32xf32>
    %c0_21 = arith.constant 0 : index
    %c0_22 = arith.constant 0 : index
    %22 = vector.load %arg8[%c0_21, %c0_22] : memref<1x32xf32, #tpu.memory_space<vmem>>, vector<1x32xf32>
    %23 = vector.broadcast %22 : vector<1x32xf32> to vector<8x32xf32>
    %24 = arith.addf %21, %23 : vector<8x32xf32>
    %cst_23 = arith.constant 0.000000e+00 : f32
    %cst_24 = arith.constant 0.9921875 : f32
    %25 = vector.broadcast %cst_23 : f32 to vector<8x32xf32>
    %26 = arith.maximumf %25, %24 : vector<8x32xf32>
    %27 = vector.broadcast %cst_24 : f32 to vector<8x32xf32>
    %28 = arith.minimumf %27, %26 : vector<8x32xf32>
    %c0_25 = arith.constant 0 : index
    %c0_26 = arith.constant 0 : index
    %29 = vector.load %arg9[%c0_25, %c0_26] : memref<32x32xf32, #tpu.memory_space<vmem>>, vector<32x32xf32>
    %cst_27 = arith.constant dense<0.000000e+00> : vector<8x32xf32>
    %30 = tpu.matmul %28, %29, %cst_27 {dimension_numbers = #tpu.dot_dimension_numbers<[1], [0], [0], [1], [0, 0, 1, 1], [], []>} : vector<8x32xf32>, vector<32x32xf32>, vector<8x32xf32> -> vector<8x32xf32>
    %c0_28 = arith.constant 0 : index
    %c0_29 = arith.constant 0 : index
    %31 = vector.load %arg10[%c0_28, %c0_29] : memref<1x32xf32, #tpu.memory_space<vmem>>, vector<1x32xf32>
    %32 = vector.broadcast %31 : vector<1x32xf32> to vector<8x32xf32>
    %33 = arith.addf %30, %32 : vector<8x32xf32>
    %cst_30 = arith.constant 0.000000e+00 : f32
    %cst_31 = arith.constant 0.9921875 : f32
    %34 = vector.broadcast %cst_30 : f32 to vector<8x32xf32>
    %35 = arith.maximumf %34, %33 : vector<8x32xf32>
    %36 = vector.broadcast %cst_31 : f32 to vector<8x32xf32>
    %37 = arith.minimumf %36, %35 : vector<8x32xf32>
    %c0_32 = arith.constant 0 : index
    %c0_33 = arith.constant 0 : index
    %38 = vector.load %arg11[%c0_32, %c0_33] : memref<32x32xf32, #tpu.memory_space<vmem>>, vector<32x32xf32>
    %cst_34 = arith.constant dense<0.000000e+00> : vector<8x32xf32>
    %39 = tpu.matmul %37, %38, %cst_34 {dimension_numbers = #tpu.dot_dimension_numbers<[1], [0], [0], [1], [0, 0, 1, 1], [], []>} : vector<8x32xf32>, vector<32x32xf32>, vector<8x32xf32> -> vector<8x32xf32>
    %c0_35 = arith.constant 0 : index
    %c0_36 = arith.constant 0 : index
    %40 = vector.load %arg12[%c0_35, %c0_36] : memref<1x32xf32, #tpu.memory_space<vmem>>, vector<1x32xf32>
    %41 = vector.broadcast %40 : vector<1x32xf32> to vector<8x32xf32>
    %42 = arith.addf %39, %41 : vector<8x32xf32>
    %cst_37 = arith.constant 0.000000e+00 : f32
    %cst_38 = arith.constant 0.9921875 : f32
    %43 = vector.broadcast %cst_37 : f32 to vector<8x32xf32>
    %44 = arith.maximumf %43, %42 : vector<8x32xf32>
    %45 = vector.broadcast %cst_38 : f32 to vector<8x32xf32>
    %46 = arith.minimumf %45, %44 : vector<8x32xf32>
    %c0_39 = arith.constant 0 : index
    %c0_40 = arith.constant 0 : index
    %47 = vector.load %arg13[%c0_39, %c0_40] : memref<32x128xf32, #tpu.memory_space<vmem>>, vector<32x128xf32>
    %cst_41 = arith.constant dense<0.000000e+00> : vector<8x128xf32>
    %48 = tpu.matmul %46, %47, %cst_41 {dimension_numbers = #tpu.dot_dimension_numbers<[1], [0], [0], [1], [0, 0, 1, 1], [], []>} : vector<8x32xf32>, vector<32x128xf32>, vector<8x128xf32> -> vector<8x128xf32>
    %c0_42 = arith.constant 0 : index
    %c0_43 = arith.constant 0 : index
    %49 = vector.load %arg14[%c0_42, %c0_43] : memref<1x128xf32, #tpu.memory_space<vmem>>, vector<1x128xf32>
    %50 = vector.broadcast %49 : vector<1x128xf32> to vector<8x128xf32>
    %51 = arith.addf %48, %50 : vector<8x128xf32>
    %c0_44 = arith.constant 0 : index
    %c0_45 = arith.constant 0 : index
    %52 = vector.load %arg16[%c0_44, %c0_45] : memref<8x128xf32, #tpu.memory_space<vmem>>, vector<8x128xf32>
    tpu.vector_store %arg16[%c0_44, %c0_45], %51 {strides = array<i32>} : memref<8x128xf32, #tpu.memory_space<vmem>>, vector<8x128xf32>,
    return
  }
  func.func @transform_0(%arg0: i32) -> (i32, i32) {
    %c0_i32 = arith.constant 0 : i32
    %c0_i32_0 = arith.constant 0 : i32
    return %arg0, %c0_i32 : i32, i32
  }
  func.func @transform_1(%arg0: i32) -> (i32, i32) {
    %c0_i32 = arith.constant 0 : i32
    %c0_i32_0 = arith.constant 0 : i32
    %c0_i32_1 = arith.constant 0 : i32
    return %c0_i32, %c0_i32_0 : i32, i32
  }
  func.func @transform_2(%arg0: i32) -> (i32, i32) {
    %c0_i32 = arith.constant 0 : i32
    %c0_i32_0 = arith.constant 0 : i32
    %c0_i32_1 = arith.constant 0 : i32
    return %c0_i32, %c0_i32_0 : i32, i32
  }
  func.func @transform_3(%arg0: i32) -> (i32, i32) {
    %c0_i32 = arith.constant 0 : i32
    %c0_i32_0 = arith.constant 0 : i32
    %c0_i32_1 = arith.constant 0 : i32
    return %c0_i32, %c0_i32_0 : i32, i32
  }
  func.func @transform_4(%arg0: i32) -> (i32, i32) {
    %c0_i32 = arith.constant 0 : i32
    %c0_i32_0 = arith.constant 0 : i32
    %c0_i32_1 = arith.constant 0 : i32
    return %c0_i32, %c0_i32_0 : i32, i32
  }
  func.func @transform_5(%arg0: i32) -> (i32, i32) {
    %c0_i32 = arith.constant 0 : i32
    %c0_i32_0 = arith.constant 0 : i32
    %c0_i32_1 = arith.constant 0 : i32
    return %c0_i32, %c0_i32_0 : i32, i32
  }
  func.func @transform_6(%arg0: i32) -> (i32, i32) {
    %c0_i32 = arith.constant 0 : i32
    %c0_i32_0 = arith.constant 0 : i32
    %c0_i32_1 = arith.constant 0 : i32
    return %c0_i32, %c0_i32_0 : i32, i32
  }
  func.func @transform_7(%arg0: i32) -> (i32, i32) {
    %c0_i32 = arith.constant 0 : i32
    %c0_i32_0 = arith.constant 0 : i32
    %c0_i32_1 = arith.constant 0 : i32
    return %c0_i32, %c0_i32_0 : i32, i32
  }
  func.func @transform_8(%arg0: i32) -> (i32, i32) {
    %c0_i32 = arith.constant 0 : i32
    %c0_i32_0 = arith.constant 0 : i32
    %c0_i32_1 = arith.constant 0 : i32
    return %c0_i32, %c0_i32_0 : i32, i32
  }
  func.func @transform_9(%arg0: i32) -> (i32, i32) {
    %c0_i32 = arith.constant 0 : i32
    %c0_i32_0 = arith.constant 0 : i32
    %c0_i32_1 = arith.constant 0 : i32
    return %c0_i32, %c0_i32_0 : i32, i32
  }
  func.func @transform_10(%arg0: i32) -> (i32, i32) {
    %c0_i32 = arith.constant 0 : i32
    %c0_i32_0 = arith.constant 0 : i32
    %c0_i32_1 = arith.constant 0 : i32
    return %c0_i32, %c0_i32_0 : i32, i32
  }
  func.func @transform_11(%arg0: i32) -> (i32, i32) {
    %c0_i32 = arith.constant 0 : i32
    %c0_i32_0 = arith.constant 0 : i32
    %c0_i32_1 = arith.constant 0 : i32
    return %c0_i32, %c0_i32_0 : i32, i32
  }
  func.func @transform_12(%arg0: i32) -> (i32, i32) {
    %c0_i32 = arith.constant 0 : i32
    %c0_i32_0 = arith.constant 0 : i32
    %c0_i32_1 = arith.constant 0 : i32
    return %c0_i32, %c0_i32_0 : i32, i32
  }
  func.func @transform_13(%arg0: i32) -> (i32, i32) {
    %c0_i32 = arith.constant 0 : i32
    %c0_i32_0 = arith.constant 0 : i32
    %c0_i32_1 = arith.constant 0 : i32
    return %c0_i32, %c0_i32_0 : i32, i32
  }
  func.func @transform_14(%arg0: i32) -> (i32, i32) {
    %c0_i32 = arith.constant 0 : i32
    %c0_i32_0 = arith.constant 0 : i32
    return %arg0, %c0_i32 : i32, i32
  }
  func.func @transform_15(%arg0: i32) -> (i32, i32) {
    %c0_i32 = arith.constant 0 : i32
    %c0_i32_0 = arith.constant 0 : i32
    return %arg0, %c0_i32 : i32, i32
  }
}

</mosaic_0001>

<llo_original>
// kernel: forward.3
$region0: #{forward.3}
  #allocation0 [shape = 'u32[]', space=smem, size = 0x4, offset = 0x4, fixed_abs, tag = 'smem constant byte address 0x4 - core index']
  #allocation1 [shape = 'u32[144,128]{1,0:T(1,128)}', space=vmem, size = 0x12000, scoped, tag = 'internal scratch']
  %s0 = inlined_call_operand.vmem [shape: f32[8,128], index: 0, kind: input, shape index: {}]
  %s1 = inlined_call_operand.vmem [shape: f32[128,16], index: 1, kind: input, shape index: {}]
  %s2 = inlined_call_operand.vmem [shape: f32[1,16], index: 2, kind: input, shape index: {}]
  %s3 = inlined_call_operand.vmem [shape: f32[16,16], index: 3, kind: input, shape index: {}]
  %s4 = inlined_call_operand.vmem [shape: f32[1,16], index: 4, kind: input, shape index: {}]
  %s5 = inlined_call_operand.vmem [shape: f32[16,128], index: 5, kind: input, shape index: {}]
  %s6 = inlined_call_operand.vmem [shape: f32[128,32], index: 6, kind: input, shape index: {}]
  %s7 = inlined_call_operand.vmem [shape: f32[1,32], index: 7, kind: input, shape index: {}]
  %s8 = inlined_call_operand.vmem [shape: f32[32,32], index: 8, kind: input, shape index: {}]
  %s9 = inlined_call_operand.vmem [shape: f32[1,32], index: 9, kind: input, shape index: {}]
  %s10 = inlined_call_operand.vmem [shape: f32[32,32], index: 10, kind: input, shape index: {}]
  %s11 = inlined_call_operand.vmem [shape: f32[1,32], index: 11, kind: input, shape index: {}]
  %s12 = inlined_call_operand.vmem [shape: f32[32,128], index: 12, kind: input, shape index: {}]
  %s13 = inlined_call_operand.vmem [shape: f32[1,128], index: 13, kind: input, shape index: {}]
  %s14 = inlined_call_operand.vmem [shape: f32[8,128], index: 14, kind: output, shape index: {0}]
  %s15 = inlined_call_operand.vmem [shape: f32[8,128], index: 15, kind: output, shape index: {1}]
  %16 = xla_tuple %s14, %s15
  %s17 = sld [smem:[#allocation0]]
  $region74: #{forward.3} parent=0
    _
  %s19 = ssub.s32 1, %s17
  %s20 = scalar_select 0, %s19, %s17
  // Predicated region
  $region2: #{forward.3} parent=0 // pred_check
    _
  $region3: #{forward.3} parent=0 // pred_check_branch
    %22 = sbr.rel (0) target = $region5
  $region4: #{forward.3} parent=0 // pred_region
    _
  $region5: #{forward.3} parent=0 // pred_fallthru
    _
  // Predicated region
  $region6: #{forward.3} parent=0 // pred_check
    _
  $region7: #{forward.3} parent=0 // pred_check_branch
    %24 = sbr.rel (0) target = $region9
  $region8: #{forward.3} parent=0 // pred_region
    _
  $region9: #{forward.3} parent=0 // pred_fallthru
    _
  // Predicated region
  $region10: #{forward.3} parent=0 // pred_check
    _
  $region11: #{forward.3} parent=0 // pred_check_branch
    %26 = sbr.rel (0) target = $region13
  $region12: #{forward.3} parent=0 // pred_region
    _
  $region13: #{forward.3} parent=0 // pred_fallthru
    _
  // Predicated region
  $region14: #{forward.3} parent=0 // pred_check
    _
  $region15: #{forward.3} parent=0 // pred_check_branch
    %28 = sbr.rel (0) target = $region17
  $region16: #{forward.3} parent=0 // pred_region
    _
  $region17: #{forward.3} parent=0 // pred_fallthru
    _
  // Predicated region
  $region18: #{forward.3} parent=0 // pred_check
    _
  $region19: #{forward.3} parent=0 // pred_check_branch
    %30 = sbr.rel (0) target = $region21
  $region20: #{forward.3} parent=0 // pred_region
    _
  $region21: #{forward.3} parent=0 // pred_fallthru
    _
  // Predicated region
  $region22: #{forward.3} parent=0 // pred_check
    _
  $region23: #{forward.3} parent=0 // pred_check_branch
    %32 = sbr.rel (0) target = $region25
  $region24: #{forward.3} parent=0 // pred_region
    _
  $region25: #{forward.3} parent=0 // pred_fallthru
    _
  // Predicated region
  $region26: #{forward.3} parent=0 // pred_check
    _
  $region27: #{forward.3} parent=0 // pred_check_branch
    %34 = sbr.rel (0) target = $region29
  $region28: #{forward.3} parent=0 // pred_region
    _
  $region29: #{forward.3} parent=0 // pred_fallthru
    _
  // Predicated region
  $region30: #{forward.3} parent=0 // pred_check
    _
  $region31: #{forward.3} parent=0 // pred_check_branch
    %36 = sbr.rel (0) target = $region33
  $region32: #{forward.3} parent=0 // pred_region
    _
  $region33: #{forward.3} parent=0 // pred_fallthru
    _
  // Predicated region
  $region34: #{forward.3} parent=0 // pred_check
    _
  $region35: #{forward.3} parent=0 // pred_check_branch
    %38 = sbr.rel (0) target = $region37
  $region36: #{forward.3} parent=0 // pred_region
    _
  $region37: #{forward.3} parent=0 // pred_fallthru
    _
  // Predicated region
  $region38: #{forward.3} parent=0 // pred_check
    _
  $region39: #{forward.3} parent=0 // pred_check_branch
    %40 = sbr.rel (0) target = $region41
  $region40: #{forward.3} parent=0 // pred_region
    _
  $region41: #{forward.3} parent=0 // pred_fallthru
    _
  // Predicated region
  $region42: #{forward.3} parent=0 // pred_check
    _
  $region43: #{forward.3} parent=0 // pred_check_branch
    %42 = sbr.rel (0) target = $region45
  $region44: #{forward.3} parent=0 // pred_region
    _
  $region45: #{forward.3} parent=0 // pred_fallthru
    _
  // Predicated region
  $region46: #{forward.3} parent=0 // pred_check
    _
  $region47: #{forward.3} parent=0 // pred_check_branch
    %44 = sbr.rel (0) target = $region49
  $region48: #{forward.3} parent=0 // pred_region
    _
  $region49: #{forward.3} parent=0 // pred_fallthru
    _
  // Predicated region
  $region50: #{forward.3} parent=0 // pred_check
    _
  $region51: #{forward.3} parent=0 // pred_check_branch
    %46 = sbr.rel (0) target = $region53
  $region52: #{forward.3} parent=0 // pred_region
    _
  $region53: #{forward.3} parent=0 // pred_fallthru
    _
  // Predicated region
  $region54: #{forward.3} parent=0 // pred_check
    _
  $region55: #{forward.3} parent=0 // pred_check_branch
    %48 = sbr.rel (0) target = $region57
  $region56: #{forward.3} parent=0 // pred_region
    _
  $region57: #{forward.3} parent=0 // pred_fallthru
    _
  %v49 = vld [vmem:[%s0] sm:$0xff]
  %v50 = vld [vmem:[%s1] sm:$0xff]
  %v51 = vld [vmem:[%s1 + $0x8] sm:$0xff]
  %v52 = vld [vmem:[%s1 + $0x10] sm:$0xff]
  %v53 = vld [vmem:[%s1 + $0x18] sm:$0xff]
  %v54 = vld [vmem:[%s1 + $0x20] sm:$0xff]
  %v55 = vld [vmem:[%s1 + $0x28] sm:$0xff]
  %v56 = vld [vmem:[%s1 + $0x30] sm:$0xff]
  %v57 = vld [vmem:[%s1 + $0x38] sm:$0xff]
  %v58 = vld [vmem:[%s1 + $0x40] sm:$0xff]
  %v59 = vld [vmem:[%s1 + $0x48] sm:$0xff]
  %v60 = vld [vmem:[%s1 + $0x50] sm:$0xff]
  %v61 = vld [vmem:[%s1 + $0x58] sm:$0xff]
  %v62 = vld [vmem:[%s1 + $0x60] sm:$0xff]
  %v63 = vld [vmem:[%s1 + $0x68] sm:$0xff]
  %v64 = vld [vmem:[%s1 + $0x70] sm:$0xff]
  %v65 = vld [vmem:[%s1 + $0x78] sm:$0xff]
  %v66 = vld [vmem:[%s2] sm:$0x1]
  %v68 = vlaneseq
  %v69 = vshrl.u32 %v68, 7
  %v70 = vsub.s32 0, %v69
  %v71 = vrot.slane %v66, %v70
  %73 = vmatprep.subr.mxu0 0.0
  %74 = vmatpush1.msra.mxu0 %v50
  %75 = vmatprep.subr.mxu0 0.0
  %76 = vmatpush1.msra.mxu0 %v51
  %77 = vmatprep.subr.mxu0 0.0
  %78 = vmatpush1.msra.mxu0 %v52
  %79 = vmatprep.subr.mxu0 0.0
  %80 = vmatpush1.msra.mxu0 %v53
  %81 = vmatprep.subr.mxu0 0.0
  %82 = vmatpush1.msra.mxu0 %v54
  %83 = vmatprep.subr.mxu0 0.0
  %84 = vmatpush1.msra.mxu0 %v55
  %85 = vmatprep.subr.mxu0 0.0
  %86 = vmatpush1.msra.mxu0 %v56
  %87 = vmatprep.subr.mxu0 0.0
  %88 = vmatpush1.msra.mxu0 %v57
  %89 = vmatprep.subr.mxu0 0.0
  %90 = vmatpush1.msra.mxu0 %v58
  %91 = vmatprep.subr.mxu0 0.0
  %92 = vmatpush1.msra.mxu0 %v59
  %93 = vmatprep.subr.mxu0 0.0
  %94 = vmatpush1.msra.mxu0 %v60
  %95 = vmatprep.subr.mxu0 0.0
  %96 = vmatpush1.msra.mxu0 %v61
  %97 = vmatprep.subr.mxu0 0.0
  %98 = vmatpush1.msra.mxu0 %v62
  %99 = vmatprep.subr.mxu0 0.0
  %100 = vmatpush1.msra.mxu0 %v63
  %101 = vmatprep.subr.mxu0 0.0
  %102 = vmatpush1.msra.mxu0 %v64
  %103 = vmatprep.subr.mxu0 0.0
  %104 = vmatpush1.msra.mxu0 %v65
  %105 = vmatprep.subr.mxu0 0.0
  %106 = vmatpush1.msra.mxu0 0.0
  %107 = vmatprep.subr.mxu0 0.0
  %108 = vmatpush1.msra.mxu0 0.0
  %109 = vmatprep.subr.mxu0 0.0
  %110 = vmatpush1.msra.mxu0 0.0
  %111 = vmatprep.subr.mxu0 0.0
  %112 = vmatpush1.msra.mxu0 0.0
  %113 = vmatprep.subr.mxu0 0.0
  %114 = vmatpush1.msra.mxu0 0.0
  %115 = vmatprep.subr.mxu0 0.0
  %116 = vmatpush1.msra.mxu0 0.0
  %117 = vmatprep.subr.mxu0 0.0
  %118 = vmatpush1.msra.mxu0 0.0
  %119 = vmatprep.subr.mxu0 0.0
  %120 = vmatpush1.msra.mxu0 0.0
  %121 = vmatprep.subr.mxu0 0.0
  %122 = vmatpush1.msra.mxu0 0.0
  %123 = vmatprep.subr.mxu0 0.0
  %124 = vmatpush1.msra.mxu0 0.0
  %125 = vmatprep.subr.mxu0 0.0
  %126 = vmatpush1.msra.mxu0 0.0
  %127 = vmatprep.subr.mxu0 0.0
  %128 = vmatpush1.msra.mxu0 0.0
  %129 = vmatprep.subr.mxu0 0.0
  %130 = vmatpush1.msra.mxu0 0.0
  %131 = vmatprep.subr.mxu0 0.0
  %132 = vmatpush1.msra.mxu0 0.0
  %133 = vmatprep.subr.mxu0 0.0
  %134 = vmatpush1.msra.mxu0 0.0
  %135 = vmatprep.subr.mxu0 0.0
  %136 = vmatpush1.msra.mxu0 0.0
  %137 = vmatprep.mubr.f32.mxu0 0.0
  %138 = vmatmul.mubr.f32.gmra.mrb[0].mxu0 %v49
  %v139 = vpop.f32.mrb[0].mxu0
  %v140 = vadd.f32 %v71, %v139
  %v141 = vpop.f32.mrb[0].mxu0
  %142 = vdwg.mxu0
  %v143 = vmax.f32 %v140, 0.0
  %v144 = vld [vmem:[%s3] sm:$0xff]
  %v145 = vld [vmem:[%s3 + $0x8] sm:$0xff]
  %v146 = vld [vmem:[%s4] sm:$0x1]
  %v148 = vlaneseq
  %v149 = vshrl.u32 %v148, 7
  %v150 = vsub.s32 0, %v149
  %v151 = vrot.slane %v146, %v150
  %vm153 = vcmask 130048
  %v155 = vsel %vm153, %v143, 0
  %157 = vmatprep.subr.mxu0 0.0
  %158 = vmatpush1.msra.mxu0 %v144
  %159 = vmatprep.subr.mxu0 0.0
  %160 = vmatpush1.msra.mxu0 %v145
  %161 = vmatprep.subr.mxu0 0.0
  %162 = vmatpush1.msra.mxu0 0.0
  %163 = vmatprep.subr.mxu0 0.0
  %164 = vmatpush1.msra.mxu0 0.0
  %165 = vmatprep.subr.mxu0 0.0
  %166 = vmatpush1.msra.mxu0 0.0
  %167 = vmatprep.subr.mxu0 0.0
  %168 = vmatpush1.msra.mxu0 0.0
  %169 = vmatprep.subr.mxu0 0.0
  %170 = vmatpush1.msra.mxu0 0.0
  %171 = vmatprep.subr.mxu0 0.0
  %172 = vmatpush1.msra.mxu0 0.0
  %173 = vmatprep.subr.mxu0 0.0
  %174 = vmatpush1.msra.mxu0 0.0
  %175 = vmatprep.subr.mxu0 0.0
  %176 = vmatpush1.msra.mxu0 0.0
  %177 = vmatprep.subr.mxu0 0.0
  %178 = vmatpush1.msra.mxu0 0.0
  %179 = vmatprep.subr.mxu0 0.0
  %180 = vmatpush1.msra.mxu0 0.0
  %181 = vmatprep.subr.mxu0 0.0
  %182 = vmatpush1.msra.mxu0 0.0
  %183 = vmatprep.subr.mxu0 0.0
  %184 = vmatpush1.msra.mxu0 0.0
  %185 = vmatprep.subr.mxu0 0.0
  %186 = vmatpush1.msra.mxu0 0.0
  %187 = vmatprep.subr.mxu0 0.0
  %188 = vmatpush1.msra.mxu0 0.0
  %189 = vmatprep.subr.mxu0 0.0
  %190 = vmatpush1.msra.mxu0 0.0
  %191 = vmatprep.subr.mxu0 0.0
  %192 = vmatpush1.msra.mxu0 0.0
  %193 = vmatprep.subr.mxu0 0.0
  %194 = vmatpush1.msra.mxu0 0.0
  %195 = vmatprep.subr.mxu0 0.0
  %196 = vmatpush1.msra.mxu0 0.0
  %197 = vmatprep.subr.mxu0 0.0
  %198 = vmatpush1.msra.mxu0 0.0
  %199 = vmatprep.subr.mxu0 0.0
  %200 = vmatpush1.msra.mxu0 0.0
  %201 = vmatprep.subr.mxu0 0.0
  %202 = vmatpush1.msra.mxu0 0.0
  %203 = vmatprep.subr.mxu0 0.0
  %204 = vmatpush1.msra.mxu0 0.0
  %205 = vmatprep.subr.mxu0 0.0
  %206 = vmatpush1.msra.mxu0 0.0
  %207 = vmatprep.subr.mxu0 0.0
  %208 = vmatpush1.msra.mxu0 0.0
  %209 = vmatprep.subr.mxu0 0.0
  %210 = vmatpush1.msra.mxu0 0.0
  %211 = vmatprep.subr.mxu0 0.0
  %212 = vmatpush1.msra.mxu0 0.0
  %213 = vmatprep.subr.mxu0 0.0
  %214 = vmatpush1.msra.mxu0 0.0
  %215 = vmatprep.subr.mxu0 0.0
  %216 = vmatpush1.msra.mxu0 0.0
  %217 = vmatprep.subr.mxu0 0.0
  %218 = vmatpush1.msra.mxu0 0.0
  %219 = vmatprep.subr.mxu0 0.0
  %220 = vmatpush1.msra.mxu0 0.0
  %221 = vmatprep.mubr.f32.mxu0 0.0
  %222 = vmatmul.mubr.f32.gmra.mrb[0].mxu0 %v155
  %v223 = vpop.f32.mrb[0].mxu0
  %v224 = vadd.f32 %v151, %v223
  %v225 = vpop.f32.mrb[0].mxu0
  %226 = vdwg.mxu0
  %v227 = vld [vmem:[%s5] sm:$0xff]
  %v228 = vld [vmem:[%s5 + $0x8] sm:$0xff]
  %v230 = vsel %vm153, %v224, 0
  %232 = vmatprep.subr.mxu0 0.0
  %233 = vmatpush1.msra.mxu0 %v227
  %234 = vmatprep.subr.mxu0 0.0
  %235 = vmatpush1.msra.mxu0 %v228
  %236 = vmatprep.subr.mxu0 0.0
  %237 = vmatpush1.msra.mxu0 0.0
  %238 = vmatprep.subr.mxu0 0.0
  %239 = vmatpush1.msra.mxu0 0.0
  %240 = vmatprep.subr.mxu0 0.0
  %241 = vmatpush1.msra.mxu0 0.0
  %242 = vmatprep.subr.mxu0 0.0
  %243 = vmatpush1.msra.mxu0 0.0
  %244 = vmatprep.subr.mxu0 0.0
  %245 = vmatpush1.msra.mxu0 0.0
  %246 = vmatprep.subr.mxu0 0.0
  %247 = vmatpush1.msra.mxu0 0.0
  %248 = vmatprep.subr.mxu0 0.0
  %249 = vmatpush1.msra.mxu0 0.0
  %250 = vmatprep.subr.mxu0 0.0
  %251 = vmatpush1.msra.mxu0 0.0
  %252 = vmatprep.subr.mxu0 0.0
  %253 = vmatpush1.msra.mxu0 0.0
  %254 = vmatprep.subr.mxu0 0.0
  %255 = vmatpush1.msra.mxu0 0.0
  %256 = vmatprep.subr.mxu0 0.0
  %257 = vmatpush1.msra.mxu0 0.0
  %258 = vmatprep.subr.mxu0 0.0
  %259 = vmatpush1.msra.mxu0 0.0
  %260 = vmatprep.subr.mxu0 0.0
  %261 = vmatpush1.msra.mxu0 0.0
  %262 = vmatprep.subr.mxu0 0.0
  %263 = vmatpush1.msra.mxu0 0.0
  %264 = vmatprep.subr.mxu0 0.0
  %265 = vmatpush1.msra.mxu0 0.0
  %266 = vmatprep.subr.mxu0 0.0
  %267 = vmatpush1.msra.mxu0 0.0
  %268 = vmatprep.subr.mxu0 0.0
  %269 = vmatpush1.msra.mxu0 0.0
  %270 = vmatprep.subr.mxu0 0.0
  %271 = vmatpush1.msra.mxu0 0.0
  %272 = vmatprep.subr.mxu0 0.0
  %273 = vmatpush1.msra.mxu0 0.0
  %274 = vmatprep.subr.mxu0 0.0
  %275 = vmatpush1.msra.mxu0 0.0
  %276 = vmatprep.subr.mxu0 0.0
  %277 = vmatpush1.msra.mxu0 0.0
  %278 = vmatprep.subr.mxu0 0.0
  %279 = vmatpush1.msra.mxu0 0.0
  %280 = vmatprep.subr.mxu0 0.0
  %281 = vmatpush1.msra.mxu0 0.0
  %282 = vmatprep.subr.mxu0 0.0
  %283 = vmatpush1.msra.mxu0 0.0
  %284 = vmatprep.subr.mxu0 0.0
  %285 = vmatpush1.msra.mxu0 0.0
  %286 = vmatprep.subr.mxu0 0.0
  %287 = vmatpush1.msra.mxu0 0.0
  %288 = vmatprep.subr.mxu0 0.0
  %289 = vmatpush1.msra.mxu0 0.0
  %290 = vmatprep.subr.mxu0 0.0
  %291 = vmatpush1.msra.mxu0 0.0
  %292 = vmatprep.subr.mxu0 0.0
  %293 = vmatpush1.msra.mxu0 0.0
  %294 = vmatprep.subr.mxu0 0.0
  %295 = vmatpush1.msra.mxu0 0.0
  %296 = vmatprep.mubr.f32.mxu0 0.0
  %297 = vmatmul.mubr.f32.gmra.mrb[0].mxu0 %v230
  %v298 = vpop.f32.mrb[0].mxu0
  %v299 = vadd.f32 0.0, %v298
  %v300 = vpop.f32.mrb[0].mxu0
  %301 = vdwg.mxu0
  %302 = vst [vmem:[%s14] sm:$0xff] %v299
  %v303 = vmax.f32 %v49, 0.0
  %v304 = vmin.f32 %v303, 0.9921875
  %v305 = vld [vmem:[%s6] sm:$0xff]
  %v306 = vld [vmem:[%s6 + $0x8] sm:$0xff]
  %v307 = vld [vmem:[%s6 + $0x10] sm:$0xff]
  %v308 = vld [vmem:[%s6 + $0x18] sm:$0xff]
  %v309 = vld [vmem:[%s6 + $0x20] sm:$0xff]
  %v310 = vld [vmem:[%s6 + $0x28] sm:$0xff]
  %v311 = vld [vmem:[%s6 + $0x30] sm:$0xff]
  %v312 = vld [vmem:[%s6 + $0x38] sm:$0xff]
  %v313 = vld [vmem:[%s6 + $0x40] sm:$0xff]
  %v314 = vld [vmem:[%s6 + $0x48] sm:$0xff]
  %v315 = vld [vmem:[%s6 + $0x50] sm:$0xff]
  %v316 = vld [vmem:[%s6 + $0x58] sm:$0xff]
  %v317 = vld [vmem:[%s6 + $0x60] sm:$0xff]
  %v318 = vld [vmem:[%s6 + $0x68] sm:$0xff]
  %v319 = vld [vmem:[%s6 + $0x70] sm:$0xff]
  %v320 = vld [vmem:[%s6 + $0x78] sm:$0xff]
  %v321 = vld [vmem:[%s7] sm:$0x1]
  %v323 = vlaneseq
  %v324 = vshrl.u32 %v323, 7
  %v325 = vsub.s32 0, %v324
  %v326 = vrot.slane %v321, %v325
  %328 = vmatprep.subr.mxu0 0.0
  %329 = vmatpush1.msra.mxu0 %v305
  %330 = vmatprep.subr.mxu0 0.0
  %331 = vmatpush1.msra.mxu0 %v306
  %332 = vmatprep.subr.mxu0 0.0
  %333 = vmatpush1.msra.mxu0 %v307
  %334 = vmatprep.subr.mxu0 0.0
  %335 = vmatpush1.msra.mxu0 %v308
  %336 = vmatprep.subr.mxu0 0.0
  %337 = vmatpush1.msra.mxu0 %v309
  %338 = vmatprep.subr.mxu0 0.0
  %339 = vmatpush1.msra.mxu0 %v310
  %340 = vmatprep.subr.mxu0 0.0
  %341 = vmatpush1.msra.mxu0 %v311
  %342 = vmatprep.subr.mxu0 0.0
  %343 = vmatpush1.msra.mxu0 %v312
  %344 = vmatprep.subr.mxu0 0.0
  %345 = vmatpush1.msra.mxu0 %v313
  %346 = vmatprep.subr.mxu0 0.0
  %347 = vmatpush1.msra.mxu0 %v314
  %348 = vmatprep.subr.mxu0 0.0
  %349 = vmatpush1.msra.mxu0 %v315
  %350 = vmatprep.subr.mxu0 0.0
  %351 = vmatpush1.msra.mxu0 %v316
  %352 = vmatprep.subr.mxu0 0.0
  %353 = vmatpush1.msra.mxu0 %v317
  %354 = vmatprep.subr.mxu0 0.0
  %355 = vmatpush1.msra.mxu0 %v318
  %356 = vmatprep.subr.mxu0 0.0
  %357 = vmatpush1.msra.mxu0 %v319
  %358 = vmatprep.subr.mxu0 0.0
  %359 = vmatpush1.msra.mxu0 %v320
  %360 = vmatprep.subr.mxu0 0.0
  %361 = vmatpush1.msra.mxu0 0.0
  %362 = vmatprep.subr.mxu0 0.0
  %363 = vmatpush1.msra.mxu0 0.0
  %364 = vmatprep.subr.mxu0 0.0
  %365 = vmatpush1.msra.mxu0 0.0
  %366 = vmatprep.subr.mxu0 0.0
  %367 = vmatpush1.msra.mxu0 0.0
  %368 = vmatprep.subr.mxu0 0.0
  %369 = vmatpush1.msra.mxu0 0.0
  %370 = vmatprep.subr.mxu0 0.0
  %371 = vmatpush1.msra.mxu0 0.0
  %372 = vmatprep.subr.mxu0 0.0
  %373 = vmatpush1.msra.mxu0 0.0
  %374 = vmatprep.subr.mxu0 0.0
  %375 = vmatpush1.msra.mxu0 0.0
  %376 = vmatprep.subr.mxu0 0.0
  %377 = vmatpush1.msra.mxu0 0.0
  %378 = vmatprep.subr.mxu0 0.0
  %379 = vmatpush1.msra.mxu0 0.0
  %380 = vmatprep.subr.mxu0 0.0
  %381 = vmatpush1.msra.mxu0 0.0
  %382 = vmatprep.subr.mxu0 0.0
  %383 = vmatpush1.msra.mxu0 0.0
  %384 = vmatprep.subr.mxu0 0.0
  %385 = vmatpush1.msra.mxu0 0.0
  %386 = vmatprep.subr.mxu0 0.0
  %387 = vmatpush1.msra.mxu0 0.0
  %388 = vmatprep.subr.mxu0 0.0
  %389 = vmatpush1.msra.mxu0 0.0
  %390 = vmatprep.subr.mxu0 0.0
  %391 = vmatpush1.msra.mxu0 0.0
  %392 = vmatprep.mubr.f32.mxu0 0.0
  %393 = vmatmul.mubr.f32.gmra.mrb[0].mxu0 %v304
  %v394 = vpop.f32.mrb[0].mxu0
  %v395 = vadd.f32 %v326, %v394
  %v396 = vpop.f32.mrb[0].mxu0
  %397 = vdwg.mxu0
  %v398 = vmax.f32 %v395, 0.0
  %v399 = vmin.f32 %v398, 0.9921875
  %v400 = vld [vmem:[%s8] sm:$0xff]
  %v401 = vld [vmem:[%s8 + $0x8] sm:$0xff]
  %v402 = vld [vmem:[%s8 + $0x10] sm:$0xff]
  %v403 = vld [vmem:[%s8 + $0x18] sm:$0xff]
  %v404 = vld [vmem:[%s9] sm:$0x1]
  %v406 = vlaneseq
  %v407 = vshrl.u32 %v406, 7
  %v408 = vsub.s32 0, %v407
  %v409 = vrot.slane %v404, %v408
  %vm411 = vcmask 261120
  %v413 = vsel %vm411, %v399, 0
  %415 = vmatprep.subr.mxu0 0.0
  %416 = vmatpush1.msra.mxu0 %v400
  %417 = vmatprep.subr.mxu0 0.0
  %418 = vmatpush1.msra.mxu0 %v401
  %419 = vmatprep.subr.mxu0 0.0
  %420 = vmatpush1.msra.mxu0 %v402
  %421 = vmatprep.subr.mxu0 0.0
  %422 = vmatpush1.msra.mxu0 %v403
  %423 = vmatprep.subr.mxu0 0.0
  %424 = vmatpush1.msra.mxu0 0.0
  %425 = vmatprep.subr.mxu0 0.0
  %426 = vmatpush1.msra.mxu0 0.0
  %427 = vmatprep.subr.mxu0 0.0
  %428 = vmatpush1.msra.mxu0 0.0
  %429 = vmatprep.subr.mxu0 0.0
  %430 = vmatpush1.msra.mxu0 0.0
  %431 = vmatprep.subr.mxu0 0.0
  %432 = vmatpush1.msra.mxu0 0.0
  %433 = vmatprep.subr.mxu0 0.0
  %434 = vmatpush1.msra.mxu0 0.0
  %435 = vmatprep.subr.mxu0 0.0
  %436 = vmatpush1.msra.mxu0 0.0
  %437 = vmatprep.subr.mxu0 0.0
  %438 = vmatpush1.msra.mxu0 0.0
  %439 = vmatprep.subr.mxu0 0.0
  %440 = vmatpush1.msra.mxu0 0.0
  %441 = vmatprep.subr.mxu0 0.0
  %442 = vmatpush1.msra.mxu0 0.0
  %443 = vmatprep.subr.mxu0 0.0
  %444 = vmatpush1.msra.mxu0 0.0
  %445 = vmatprep.subr.mxu0 0.0
  %446 = vmatpush1.msra.mxu0 0.0
  %447 = vmatprep.subr.mxu0 0.0
  %448 = vmatpush1.msra.mxu0 0.0
  %449 = vmatprep.subr.mxu0 0.0
  %450 = vmatpush1.msra.mxu0 0.0
  %451 = vmatprep.subr.mxu0 0.0
  %452 = vmatpush1.msra.mxu0 0.0
  %453 = vmatprep.subr.mxu0 0.0
  %454 = vmatpush1.msra.mxu0 0.0
  %455 = vmatprep.subr.mxu0 0.0
  %456 = vmatpush1.msra.mxu0 0.0
  %457 = vmatprep.subr.mxu0 0.0
  %458 = vmatpush1.msra.mxu0 0.0
  %459 = vmatprep.subr.mxu0 0.0
  %460 = vmatpush1.msra.mxu0 0.0
  %461 = vmatprep.subr.mxu0 0.0
  %462 = vmatpush1.msra.mxu0 0.0
  %463 = vmatprep.subr.mxu0 0.0
  %464 = vmatpush1.msra.mxu0 0.0
  %465 = vmatprep.subr.mxu0 0.0
  %466 = vmatpush1.msra.mxu0 0.0
  %467 = vmatprep.subr.mxu0 0.0
  %468 = vmatpush1.msra.mxu0 0.0
  %469 = vmatprep.subr.mxu0 0.0
  %470 = vmatpush1.msra.mxu0 0.0
  %471 = vmatprep.subr.mxu0 0.0
  %472 = vmatpush1.msra.mxu0 0.0
  %473 = vmatprep.subr.mxu0 0.0
  %474 = vmatpush1.msra.mxu0 0.0
  %475 = vmatprep.subr.mxu0 0.0
  %476 = vmatpush1.msra.mxu0 0.0
  %477 = vmatprep.subr.mxu0 0.0
  %478 = vmatpush1.msra.mxu0 0.0
  %479 = vmatprep.mubr.f32.mxu0 0.0
  %480 = vmatmul.mubr.f32.gmra.mrb[0].mxu0 %v413
  %v481 = vpop.f32.mrb[0].mxu0
  %v482 = vadd.f32 %v409, %v481
  %v483 = vpop.f32.mrb[0].mxu0
  %484 = vdwg.mxu0
  %v485 = vmax.f32 %v482, 0.0
  %v486 = vmin.f32 %v485, 0.9921875
  %v487 = vld [vmem:[%s10] sm:$0xff]
  %v488 = vld [vmem:[%s10 + $0x8] sm:$0xff]
  %v489 = vld [vmem:[%s10 + $0x10] sm:$0xff]
  %v490 = vld [vmem:[%s10 + $0x18] sm:$0xff]
  %v491 = vld [vmem:[%s11] sm:$0x1]
  %v493 = vlaneseq
  %v494 = vshrl.u32 %v493, 7
  %v495 = vsub.s32 0, %v494
  %v496 = vrot.slane %v491, %v495
  %v499 = vsel %vm411, %v486, 0
  %501 = vmatprep.subr.mxu0 0.0
  %502 = vmatpush1.msra.mxu0 %v487
  %503 = vmatprep.subr.mxu0 0.0
  %504 = vmatpush1.msra.mxu0 %v488
  %505 = vmatprep.subr.mxu0 0.0
  %506 = vmatpush1.msra.mxu0 %v489
  %507 = vmatprep.subr.mxu0 0.0
  %508 = vmatpush1.msra.mxu0 %v490
  %509 = vmatprep.subr.mxu0 0.0
  %510 = vmatpush1.msra.mxu0 0.0
  %511 = vmatprep.subr.mxu0 0.0
  %512 = vmatpush1.msra.mxu0 0.0
  %513 = vmatprep.subr.mxu0 0.0
  %514 = vmatpush1.msra.mxu0 0.0
  %515 = vmatprep.subr.mxu0 0.0
  %516 = vmatpush1.msra.mxu0 0.0
  %517 = vmatprep.subr.mxu0 0.0
  %518 = vmatpush1.msra.mxu0 0.0
  %519 = vmatprep.subr.mxu0 0.0
  %520 = vmatpush1.msra.mxu0 0.0
  %521 = vmatprep.subr.mxu0 0.0
  %522 = vmatpush1.msra.mxu0 0.0
  %523 = vmatprep.subr.mxu0 0.0
  %524 = vmatpush1.msra.mxu0 0.0
  %525 = vmatprep.subr.mxu0 0.0
  %526 = vmatpush1.msra.mxu0 0.0
  %527 = vmatprep.subr.mxu0 0.0
  %528 = vmatpush1.msra.mxu0 0.0
  %529 = vmatprep.subr.mxu0 0.0
  %530 = vmatpush1.msra.mxu0 0.0
  %531 = vmatprep.subr.mxu0 0.0
  %532 = vmatpush1.msra.mxu0 0.0
  %533 = vmatprep.subr.mxu0 0.0
  %534 = vmatpush1.msra.mxu0 0.0
  %535 = vmatprep.subr.mxu0 0.0
  %536 = vmatpush1.msra.mxu0 0.0
  %537 = vmatprep.subr.mxu0 0.0
  %538 = vmatpush1.msra.mxu0 0.0
  %539 = vmatprep.subr.mxu0 0.0
  %540 = vmatpush1.msra.mxu0 0.0
  %541 = vmatprep.subr.mxu0 0.0
  %542 = vmatpush1.msra.mxu0 0.0
  %543 = vmatprep.subr.mxu0 0.0
  %544 = vmatpush1.msra.mxu0 0.0
  %545 = vmatprep.subr.mxu0 0.0
  %546 = vmatpush1.msra.mxu0 0.0
  %547 = vmatprep.subr.mxu0 0.0
  %548 = vmatpush1.msra.mxu0 0.0
  %549 = vmatprep.subr.mxu0 0.0
  %550 = vmatpush1.msra.mxu0 0.0
  %551 = vmatprep.subr.mxu0 0.0
  %552 = vmatpush1.msra.mxu0 0.0
  %553 = vmatprep.subr.mxu0 0.0
  %554 = vmatpush1.msra.mxu0 0.0
  %555 = vmatprep.subr.mxu0 0.0
  %556 = vmatpush1.msra.mxu0 0.0
  %557 = vmatprep.subr.mxu0 0.0
  %558 = vmatpush1.msra.mxu0 0.0
  %559 = vmatprep.subr.mxu0 0.0
  %560 = vmatpush1.msra.mxu0 0.0
  %561 = vmatprep.subr.mxu0 0.0
  %562 = vmatpush1.msra.mxu0 0.0
  %563 = vmatprep.subr.mxu0 0.0
  %564 = vmatpush1.msra.mxu0 0.0
  %565 = vmatprep.mubr.f32.mxu0 0.0
  %566 = vmatmul.mubr.f32.gmra.mrb[0].mxu0 %v499
  %v567 = vpop.f32.mrb[0].mxu0
  %v568 = vadd.f32 %v496, %v567
  %v569 = vpop.f32.mrb[0].mxu0
  %570 = vdwg.mxu0
  %v571 = vmax.f32 %v568, 0.0
  %v572 = vmin.f32 %v571, 0.9921875
  %v573 = vld [vmem:[%s12] sm:$0xff]
  %v574 = vld [vmem:[%s12 + $0x8] sm:$0xff]
  %v575 = vld [vmem:[%s12 + $0x10] sm:$0xff]
  %v576 = vld [vmem:[%s12 + $0x18] sm:$0xff]
  %v577 = vld [vmem:[%s13] sm:$0x1]
  %v579 = vlaneseq
  %v580 = vshrl.u32 %v579, 7
  %v581 = vsub.s32 0, %v580
  %v582 = vrot.slane %v577, %v581
  %v585 = vsel %vm411, %v572, 0
  %587 = vmatprep.subr.mxu0 0.0
  %588 = vmatpush1.msra.mxu0 %v573
  %589 = vmatprep.subr.mxu0 0.0
  %590 = vmatpush1.msra.mxu0 %v574
  %591 = vmatprep.subr.mxu0 0.0
  %592 = vmatpush1.msra.mxu0 %v575
  %593 = vmatprep.subr.mxu0 0.0
  %594 = vmatpush1.msra.mxu0 %v576
  %595 = vmatprep.subr.mxu0 0.0
  %596 = vmatpush1.msra.mxu0 0.0
  %597 = vmatprep.subr.mxu0 0.0
  %598 = vmatpush1.msra.mxu0 0.0
  %599 = vmatprep.subr.mxu0 0.0
  %600 = vmatpush1.msra.mxu0 0.0
  %601 = vmatprep.subr.mxu0 0.0
  %602 = vmatpush1.msra.mxu0 0.0
  %603 = vmatprep.subr.mxu0 0.0
  %604 = vmatpush1.msra.mxu0 0.0
  %605 = vmatprep.subr.mxu0 0.0
  %606 = vmatpush1.msra.mxu0 0.0
  %607 = vmatprep.subr.mxu0 0.0
  %608 = vmatpush1.msra.mxu0 0.0
  %609 = vmatprep.subr.mxu0 0.0
  %610 = vmatpush1.msra.mxu0 0.0
  %611 = vmatprep.subr.mxu0 0.0
  %612 = vmatpush1.msra.mxu0 0.0
  %613 = vmatprep.subr.mxu0 0.0
  %614 = vmatpush1.msra.mxu0 0.0
  %615 = vmatprep.subr.mxu0 0.0
  %616 = vmatpush1.msra.mxu0 0.0
  %617 = vmatprep.subr.mxu0 0.0
  %618 = vmatpush1.msra.mxu0 0.0
  %619 = vmatprep.subr.mxu0 0.0
  %620 = vmatpush1.msra.mxu0 0.0
  %621 = vmatprep.subr.mxu0 0.0
  %622 = vmatpush1.msra.mxu0 0.0
  %623 = vmatprep.subr.mxu0 0.0
  %624 = vmatpush1.msra.mxu0 0.0
  %625 = vmatprep.subr.mxu0 0.0
  %626 = vmatpush1.msra.mxu0 0.0
  %627 = vmatprep.subr.mxu0 0.0
  %628 = vmatpush1.msra.mxu0 0.0
  %629 = vmatprep.subr.mxu0 0.0
  %630 = vmatpush1.msra.mxu0 0.0
  %631 = vmatprep.subr.mxu0 0.0
  %632 = vmatpush1.msra.mxu0 0.0
  %633 = vmatprep.subr.mxu0 0.0
  %634 = vmatpush1.msra.mxu0 0.0
  %635 = vmatprep.subr.mxu0 0.0
  %636 = vmatpush1.msra.mxu0 0.0
  %637 = vmatprep.subr.mxu0 0.0
  %638 = vmatpush1.msra.mxu0 0.0
  %639 = vmatprep.subr.mxu0 0.0
  %640 = vmatpush1.msra.mxu0 0.0
  %641 = vmatprep.subr.mxu0 0.0
  %642 = vmatpush1.msra.mxu0 0.0
  %643 = vmatprep.subr.mxu0 0.0
  %644 = vmatpush1.msra.mxu0 0.0
  %645 = vmatprep.subr.mxu0 0.0
  %646 = vmatpush1.msra.mxu0 0.0
  %647 = vmatprep.subr.mxu0 0.0
  %648 = vmatpush1.msra.mxu0 0.0
  %649 = vmatprep.subr.mxu0 0.0
  %650 = vmatpush1.msra.mxu0 0.0
  %651 = vmatprep.mubr.f32.mxu0 0.0
  %652 = vmatmul.mubr.f32.gmra.mrb[0].mxu0 %v585
  %v653 = vpop.f32.mrb[0].mxu0
  %v654 = vadd.f32 %v582, %v653
  %v655 = vpop.f32.mrb[0].mxu0
  %656 = vdwg.mxu0
  %657 = vst [vmem:[%s15] sm:$0xff] %v654
  // Predicated region
  $region58: #{forward.3} parent=0 // pred_check
    _
  $region59: #{forward.3} parent=0 // pred_check_branch
    %659 = sbr.rel (0) target = $region61
  $region60: #{forward.3} parent=0 // pred_region
    _
  $region61: #{forward.3} parent=0 // pred_fallthru
    _
  // Predicated region
  $region62: #{forward.3} parent=0 // pred_check
    _
  $region63: #{forward.3} parent=0 // pred_check_branch
    %661 = sbr.rel (0) target = $region65
  $region64: #{forward.3} parent=0 // pred_region
    _
  $region65: #{forward.3} parent=0 // pred_fallthru
    _
  // Predicated region
  $region66: #{forward.3} parent=0 // pred_check
    _
  $region67: #{forward.3} parent=0 // pred_check_branch
    %663 = sbr.rel (0) target = $region69
  $region68: #{forward.3} parent=0 // pred_region
    _
  $region69: #{forward.3} parent=0 // pred_fallthru
    _
  // Predicated region
  $region70: #{forward.3} parent=0 // pred_check
    _
  $region71: #{forward.3} parent=0 // pred_check_branch
    %665 = sbr.rel (0) target = $region73
  $region72: #{forward.3} parent=0 // pred_region
    _
  $region73: #{forward.3} parent=0 // pred_fallthru
    _

// kernel: forward.2
$region0: #{forward.2}
  #allocation0 [shape = 'u32[]', space=smem, size = 0x4, offset = 0x4, fixed_abs, tag = 'smem constant byte address 0x4 - core index']
  #allocation1 [shape = 'u32[144,128]{1,0:T(1,128)}', space=vmem, size = 0x12000, scoped, tag = 'internal scratch']
  #allocation2 [shape = 's32[1]{0}', space=sflag, size = 0x4, scoped, tag = 'scoped memory for forward.2']
  #allocation3 [shape = 'u8[512]{0}', space=smem, size = 0x200, scoped, tag = 'prefetched SMEM operand 0']
  %s0 = inlined_call_operand.vmem [shape: s32[3], index: 0, kind: input, shape index: {}]
  %s1 = inlined_call_operand.vmem [shape: f32[9,24,128], index: 1, kind: input, shape index: {}]
  %s2 = inlined_call_operand.vmem [shape: bf16[2,10,128,128], index: 2, kind: input, shape index: {}]
  %s3 = inlined_call_operand.vmem [shape: f32[2,6,1,128], index: 3, kind: input, shape index: {}]
  %s4 = inlined_call_operand.vmem [shape: f32[24,128], index: 4, kind: output, shape index: {}]
  %s5 = sld [smem:[#allocation0]]
  $region83: #{forward.2} parent=0
    _
  %s7 = ssub.s32 1, %s5
  %s8 = scalar_select 0, %s7, %s5
  %s9 = sshll.u32 %s0, 4
  %s10 = int_to_ptr.vmem [resolvable:$true] %s9
  %12 = dma.vmem_to_smem %s10, 16, [#allocation3], [#allocation2]
  %13 = dma.done [#allocation2], 16
  %14 = sfence
  $region1: #{forward.2} parent=0
    #allocation4 [shape = 'u8[73728]{0}', space=vmem, size = 0x12000, scoped, tag = 'input window, operand 1']
    loop: start=0, step=1, limit=5
    $region2: #{forward.2} parent=1 // loop_pre_header
      _
    $region3: #{forward.2} parent=1 // loop_header
      %s16 = sphi 0, %s20
      %p17 = scmp.ge.s32.totalorder %s16, 5
      %s26 = sphi 0, %s28
      %s29 = sphi 0, %s26
      %s30 = sphi 0, %s29
      %s46 = sphi 0, %s30
      %s54 = sphi 0, %s56
      %s57 = sphi 0, %s54
      %s58 = sphi 0, %s57
      %s74 = sphi 0, %s58
      %s82 = sphi 0, %s84
      %s85 = sphi 0, %s82
      %s86 = sphi 0, %s85
      %s102 = sphi 0, %s86
      %s108 = sphi 0, %s110
      %s111 = sphi 0, %s108
      %s112 = sphi 0, %s111
      %s128 = sphi 0, %s112
    $region4: #{forward.2} parent=1 // loop_header_branch
      %19 = sbr.rel (%p17) target = $region8
    $region5: #{forward.2} parent=1 // loop_body
      %s21 = ssub.s32 %s16, 1
      %s22 = ssub.s32 %s16, 2
      %s23 = sadd.s32 %s16, 1
      %s24 = ssub.s32 %s16, %s23
      %p25 = scmp.eq.s32.totalorder %s24, 0
      %s27 = sadd.s32 %s26, 1
      %s28 = scalar_select %p25, %s26, %s27
      %p31 = pneg %p25
      %p32 = scmp.eq.s32.totalorder %s16, 2
      %p33 = por %p31, %p32
      %p34 = scmp.ne.s32.totalorder %s26, %s29
      %p35 = scmp.eq.s32.totalorder %s16, 0
      %p36 = por %p34, %p35
      %p37 = scmp.ne.s32.totalorder %s26, %s29
      %p38 = scmp.eq.s32.totalorder %s21, 2
      %p39 = por %p37, %p38
      %p40 = scmp.ne.s32.totalorder %s29, %s30
      %p41 = scmp.eq.s32.totalorder %s21, 0
      %p42 = por %p40, %p41
      %p43 = scmp.ne.s32.totalorder %s29, %s30
      %p44 = scmp.eq.s32.totalorder %s22, 2
      %p45 = por %p43, %p44
      %p47 = scmp.ne.s32.totalorder %s30, %s46
      %p48 = scmp.eq.s32.totalorder %s22, 0
      %p49 = por %p47, %p48
      %s50 = sld [smem:[#allocation3 + %s16]]
      %s51 = sld [smem:[#allocation3 + %s23]]
      %s52 = ssub.s32 %s50, %s51
      %p53 = scmp.eq.s32.totalorder %s52, 0
      %s55 = sadd.s32 %s54, 1
      %s56 = scalar_select %p53, %s54, %s55
      %p59 = pneg %p53
      %p60 = scmp.eq.s32.totalorder %s16, 2
      %p61 = por %p59, %p60
      %p62 = scmp.ne.s32.totalorder %s54, %s57
      %p63 = scmp.eq.s32.totalorder %s16, 0
      %p64 = por %p62, %p63
      %p65 = scmp.ne.s32.totalorder %s54, %s57
      %p66 = scmp.eq.s32.totalorder %s21, 2
      %p67 = por %p65, %p66
      %p68 = scmp.ne.s32.totalorder %s57, %s58
      %p69 = scmp.eq.s32.totalorder %s21, 0
      %p70 = por %p68, %p69
      %p71 = scmp.ne.s32.totalorder %s57, %s58
      %p72 = scmp.eq.s32.totalorder %s22, 2
      %p73 = por %p71, %p72
      %p75 = scmp.ne.s32.totalorder %s58, %s74
      %p76 = scmp.eq.s32.totalorder %s22, 0
      %p77 = por %p75, %p76
      %s78 = sld [smem:[#allocation3 + %s16]]
      %s79 = sld [smem:[#allocation3 + %s23]]
      %s80 = ssub.s32 %s78, %s79
      %p81 = scmp.eq.s32.totalorder %s80, 0
      %s83 = sadd.s32 %s82, 1
      %s84 = scalar_select %p81, %s82, %s83
      %p87 = pneg %p81
      %p88 = scmp.eq.s32.totalorder %s16, 2
      %p89 = por %p87, %p88
      %p90 = scmp.ne.s32.totalorder %s82, %s85
      %p91 = scmp.eq.s32.totalorder %s16, 0
      %p92 = por %p90, %p91
      %p93 = scmp.ne.s32.totalorder %s82, %s85
      %p94 = scmp.eq.s32.totalorder %s21, 2
      %p95 = por %p93, %p94
      %p96 = scmp.ne.s32.totalorder %s85, %s86
      %p97 = scmp.eq.s32.totalorder %s21, 0
      %p98 = por %p96, %p97
      %p99 = scmp.ne.s32.totalorder %s85, %s86
      %p100 = scmp.eq.s32.totalorder %s22, 2
      %p101 = por %p99, %p100
      %p103 = scmp.ne.s32.totalorder %s86, %s102
      %p104 = scmp.eq.s32.totalorder %s22, 0
      %p105 = por %p103, %p104
      %s106 = ssub.s32 %s16, %s23
      %p107 = scmp.eq.s32.totalorder %s106, 0
      %s109 = sadd.s32 %s108, 1
      %s110 = scalar_select %p107, %s108, %s109
      %p113 = pneg %p107
      %p114 = scmp.eq.s32.totalorder %s16, 2
      %p115 = por %p113, %p114
      %p116 = scmp.ne.s32.totalorder %s108, %s111
      %p117 = scmp.eq.s32.totalorder %s16, 0
      %p118 = por %p116, %p117
      %p119 = scmp.ne.s32.totalorder %s108, %s111
      %p120 = scmp.eq.s32.totalorder %s21, 2
      %p121 = por %p119, %p120
      %p122 = scmp.ne.s32.totalorder %s111, %s112
      %p123 = scmp.eq.s32.totalorder %s21, 0
      %p124 = por %p122, %p123
      %p125 = scmp.ne.s32.totalorder %s111, %s112
      %p126 = scmp.eq.s32.totalorder %s22, 2
      %p127 = por %p125, %p126
      %p129 = scmp.ne.s32.totalorder %s112, %s128
      %p130 = scmp.eq.s32.totalorder %s22, 0
      %p131 = por %p129, %p130
      %p132 = scmp.le.s32.totalorder 1, %s16
      %p133 = scmp.lt.s32.totalorder %s16, 4
      %p134 = pnand %p132, %p133
      %p135 = pneg %p134
      // Predicated region
      $region9: #{forward.2} parent=5 // pred_check
        _
      $region10: #{forward.2} parent=5 // pred_check_branch
        %137 = sbr.rel (%p134) target = $region12
      $region11: #{forward.2} parent=5 // pred_region
        %s138 = ssub.s32 %s16, 1
      $region12: #{forward.2} parent=5 // pred_fallthru
        _
      %p139 = scmp.lt.s32.totalorder %s16, 3
      // Predicated region
      $region13: #{forward.2} parent=5 // pred_check
        %p140 = pneg %p139
      $region14: #{forward.2} parent=5 // pred_check_branch
        %142 = sbr.rel (%p140) target = $region16
      $region15: #{forward.2} parent=5 // pred_region
        // Predicated region
        $region17: #{forward.2} parent=15 // pred_check
          %p143 = pneg %p36
        $region18: #{forward.2} parent=15 // pred_check_branch
          %145 = sbr.rel (%p143) target = $region20
        $region19: #{forward.2} parent=15 // pred_region
          %s146 = sand.u32 %s26, 1
          %s147 = sand.u32 %s26, 1
          %s148 = smul.addr %s147, 72
          %s149 = scalar_lea.vmem [#allocation4], %s148
          %s150 = smul.addr %s16, 8
          %s151 = scalar_lea.vmem %s1, %s150
          // Predicated region
          $region21: #{forward.2} parent=19 // pred_check
            _
          $region22: #{forward.2} parent=19 // pred_check_branch
            %153 = sbr.rel (0) target = $region24
          $region23: #{forward.2} parent=19 // pred_region
            // Predicated region
            $region25: #{forward.2} parent=23 // pred_check
              _
            $region26: #{forward.2} parent=23 // pred_check_branch
              %155 = sbr.rel (0) target = $region28
            $region27: #{forward.2} parent=23 // pred_region
              // Predicated region
              $region40: #{forward.2} parent=27 // pred_check
                _
              $region41: #{forward.2} parent=27 // pred_check_branch
                %186 = sbr.rel (0) target = $region43
              $region42: #{forward.2} parent=27 // pred_region
                loop: start=0, step=1, limit=1
                $region44: #{forward.2} parent=42 // loop_pre_header
                  _
                $region45: #{forward.2} parent=42 // loop_header
                  %s188 = sphi 0, %s192
                  %p189 = scmp.ge.s32.totalorder %s188, 1
                  %s193 = sphi %s151, %s151
                  %s194 = sphi %s149, %s149
                $region46: #{forward.2} parent=42 // loop_header_branch
                  %191 = sbr.rel (%p189) target = $region50
                $region47: #{forward.2} parent=42 // loop_body
                  %v195 = vld [vmem:[%s193] sm:$0xff]
                  %196 = vst [vmem:[%s194] sm:$0xff] %v195
                  %v197 = vld [vmem:[%s193 + $0x18] sm:$0xff]
                  %198 = vst [vmem:[%s194 + $0x8] sm:$0xff] %v197
                  %v199 = vld [vmem:[%s193 + $0x30] sm:$0xff]
                  %200 = vst [vmem:[%s194 + $0x10] sm:$0xff] %v199
                  %v201 = vld [vmem:[%s193 + $0x48] sm:$0xff]
                  %202 = vst [vmem:[%s194 + $0x18] sm:$0xff] %v201
                  %v203 = vld [vmem:[%s193 + $0x60] sm:$0xff]
                  %204 = vst [vmem:[%s194 + $0x20] sm:$0xff] %v203
                  %v205 = vld [vmem:[%s193 + $0x78] sm:$0xff]
                  %206 = vst [vmem:[%s194 + $0x28] sm:$0xff] %v205
                  %v207 = vld [vmem:[%s193 + $0x90] sm:$0xff]
                  %208 = vst [vmem:[%s194 + $0x30] sm:$0xff] %v207
                  %v209 = vld [vmem:[%s193 + $0xa8] sm:$0xff]
                  %210 = vst [vmem:[%s194 + $0x38] sm:$0xff] %v209
                  %v211 = vld [vmem:[%s193 + $0xc0] sm:$0xff]
                  %212 = vst [vmem:[%s194 + $0x40] sm:$0xff] %v211
                $region48: #{forward.2} parent=42 // loop_footer
                  %s192 = sadd.s32 1, %s188
                $region49: #{forward.2} parent=42 // loop_footer_branch
                  %187 = sbr.rel target = $region45
                $region50: #{forward.2} parent=42 // loop_exit
                  _
              $region43: #{forward.2} parent=27 // pred_fallthru
                _
              // Predicated region
              $region51: #{forward.2} parent=27 // pred_check
                _
              $region52: #{forward.2} parent=27 // pred_check_branch
                %214 = sbr.rel target = $region54
              $region53: #{forward.2} parent=27 // pred_region
                _
              $region54: #{forward.2} parent=27 // pred_fallthru
                _
            $region28: #{forward.2} parent=23 // pred_fallthru
              _
            // Predicated region
            $region29: #{forward.2} parent=23 // pred_check
              _
            $region30: #{forward.2} parent=23 // pred_check_branch
              %157 = sbr.rel target = $region32
            $region31: #{forward.2} parent=23 // pred_region
              loop: start=0, step=1, limit=1
              $region33: #{forward.2} parent=31 // loop_pre_header
                _
              $region34: #{forward.2} parent=31 // loop_header
                %s160 = sphi 0, %s164
                %p161 = scmp.ge.s32.totalorder %s160, 1
                %s165 = sphi %s151, %s151
                %s166 = sphi %s149, %s149
              $region35: #{forward.2} parent=31 // loop_header_branch
                %163 = sbr.rel (%p161) target = $region39
              $region36: #{forward.2} parent=31 // loop_body
                %v167 = vld [vmem:[%s165] sm:$0xff]
                %168 = vst [vmem:[%s166] sm:$0xff] %v167
                %v169 = vld [vmem:[%s165 + $0x18] sm:$0xff]
                %170 = vst [vmem:[%s166 + $0x8] sm:$0xff] %v169
                %v171 = vld [vmem:[%s165 + $0x30] sm:$0xff]
                %172 = vst [vmem:[%s166 + $0x10] sm:$0xff] %v171
                %v173 = vld [vmem:[%s165 + $0x48] sm:$0xff]
                %174 = vst [vmem:[%s166 + $0x18] sm:$0xff] %v173
                %v175 = vld [vmem:[%s165 + $0x60] sm:$0xff]
                %176 = vst [vmem:[%s166 + $0x20] sm:$0xff] %v175
                %v177 = vld [vmem:[%s165 + $0x78] sm:$0xff]
                %178 = vst [vmem:[%s166 + $0x28] sm:$0xff] %v177
                %v179 = vld [vmem:[%s165 + $0x90] sm:$0xff]
                %180 = vst [vmem:[%s166 + $0x30] sm:$0xff] %v179
                %v181 = vld [vmem:[%s165 + $0xa8] sm:$0xff]
                %182 = vst [vmem:[%s166 + $0x38] sm:$0xff] %v181
                %v183 = vld [vmem:[%s165 + $0xc0] sm:$0xff]
                %184 = vst [vmem:[%s166 + $0x40] sm:$0xff] %v183
              $region37: #{forward.2} parent=31 // loop_footer
                %s164 = sadd.s32 1, %s160
              $region38: #{forward.2} parent=31 // loop_footer_branch
                %159 = sbr.rel target = $region34
              $region39: #{forward.2} parent=31 // loop_exit
                _
            $region32: #{forward.2} parent=23 // pred_fallthru
              _
          $region24: #{forward.2} parent=19 // pred_fallthru
            _
          %215 = vnop
        $region20: #{forward.2} parent=15 // pred_fallthru
          _
        // Predicated region
        $region55: #{forward.2} parent=15 // pred_check
          %p216 = pneg %p64
        $region56: #{forward.2} parent=15 // pred_check_branch
          %218 = sbr.rel (%p216) target = $region58
        $region57: #{forward.2} parent=15 // pred_region
          %s219 = sld [smem:[#allocation3 + %s16]]
          %p220 = scmp.lt.s32.totalorder %s219, 1
          %s221 = scalar_select %p220, %s219, 1
          %s222 = smul.addr %s221, 160
          %s223 = smul.addr %s222, 4
          %s224 = scalar_lea.vmem %s2, %s223
          %s225 = sld [smem:[#allocation3 + %s16]]
        $region58: #{forward.2} parent=15 // pred_fallthru
          _
        // Predicated region
        $region59: #{forward.2} parent=15 // pred_check
          %p226 = pneg %p92
        $region60: #{forward.2} parent=15 // pred_check_branch
          %228 = sbr.rel (%p226) target = $region62
        $region61: #{forward.2} parent=15 // pred_region
          %s229 = sld [smem:[#allocation3 + %s16]]
          %p230 = scmp.lt.s32.totalorder %s229, 1
          %s231 = scalar_select %p230, %s229, 1
          %s232 = smul.addr %s231, 6
          %s233 = scalar_lea.vmem %s3, %s232
          %s234 = sld [smem:[#allocation3 + %s16]]
        $region62: #{forward.2} parent=15 // pred_fallthru
          _
      $region16: #{forward.2} parent=5 // pred_fallthru
        _
      %p235 = scmp.le.s32.totalorder 1, %s16
      %p236 = scmp.lt.s32.totalorder %s16, 4
      %p237 = pnand %p235, %p236
      %p238 = pneg %p237
      // Predicated region
      $region63: #{forward.2} parent=5 // pred_check
        _
      $region64: #{forward.2} parent=5 // pred_check_branch
        %240 = sbr.rel (%p237) target = $region66
      $region65: #{forward.2} parent=5 // pred_region
        %s241 = ssub.s32 %s16, 1
        %s242 = sand.u32 %s29, 1
        %s243 = sand.u32 %s29, 1
        %s244 = smul.addr %s243, 72
        %s245 = scalar_lea.vmem [#allocation4], %s244
        // Predicated region
        $region67: #{forward.2} parent=65 // pred_check
          %p246 = pneg %p42
        $region68: #{forward.2} parent=65 // pred_check_branch
          %248 = sbr.rel (%p246) target = $region70
        $region69: #{forward.2} parent=65 // pred_region
          _
        $region70: #{forward.2} parent=65 // pred_fallthru
          _
        %s249 = sand.u32 %s29, 1
        %s250 = sand.u32 %s29, 1
        %s251 = smul.addr %s250, 72
        %s252 = scalar_lea.vmem [#allocation4], %s251
        %p253 = pneg %p42
        %p254 = pneg %p39
        %s255 = sld [smem:[#allocation3 + %s21]]
        %p256 = scmp.lt.s32.totalorder %s255, 1
        %s257 = scalar_select %p256, %s255, 1
        %s258 = smul.addr %s257, 160
        %s259 = smul.addr %s258, 4
        %s260 = scalar_lea.vmem %s2, %s259
        %p261 = pneg %p70
        %p262 = pneg %p67
        %s263 = sld [smem:[#allocation3 + %s21]]
        %p264 = scmp.lt.s32.totalorder %s263, 1
        %s265 = scalar_select %p264, %s263, 1
        %s266 = smul.addr %s265, 6
        %s267 = scalar_lea.vmem %s3, %s266
        %p268 = pneg %p98
        %p269 = pneg %p95
        %p270 = pneg %p124
        %p271 = pneg %p121
        %p272 = scmp.lt.s32.totalorder %s21, 2
        %s273 = scalar_select %p272, %s21, 2
        %s274 = smul.addr %s273, 8
        %s275 = scalar_lea.vmem %s4, %s274
        %s276 = sld [smem:[#allocation3 + %s21]]
        %p277 = scmp.lt.s32.totalorder %s276, 1
        %s278 = scalar_select %p277, %s276, 1
        %s279 = smul.addr %s278, 160
        %s280 = smul.addr %s279, 4
        %s281 = scalar_lea.vmem %s2, %s280
        %s282 = sld [smem:[#allocation3 + %s21]]
        %s283 = sld [smem:[#allocation3 + %s21]]
        %p284 = scmp.lt.s32.totalorder %s283, 1
        %s285 = scalar_select %p284, %s283, 1
        %s286 = smul.addr %s285, 6
        %s287 = scalar_lea.vmem %s3, %s286
        %s288 = sld [smem:[#allocation3 + %s21]]
        %p289 = scmp.lt.s32.totalorder %s21, 2
        %s290 = scalar_select %p289, %s21, 2
        %s291 = smul.addr %s290, 8
        %s292 = scalar_lea.vmem %s4, %s291
        %v294 = vld [vmem:[%s245] sm:$0xff]
        %v295 = vld [vmem:[%s245 + $0x8] sm:$0xff]
        %v296 = vld [vmem:[%s245 + $0x10] sm:$0xff]
        %v297 = vld [vmem:[%s245 + $0x18] sm:$0xff]
        %v298 = vld [vmem:[%s245 + $0x20] sm:$0xff]
        %v299 = vld [vmem:[%s245 + $0x28] sm:$0xff]
        %v300 = vld [vmem:[%s245 + $0x30] sm:$0xff]
        %v301 = vld [vmem:[%s245 + $0x38] sm:$0xff]
        %v302 = vld [vmem:[%s245 + $0x40] sm:$0xff]
        %v303 = vmin.f32 %v294, 20.0
        %v304 = vmin.f32 %v295, 20.0
        %v305 = vmin.f32 %v296, 20.0
        %v306 = vmin.f32 %v297, 20.0
        %v307 = vmin.f32 %v298, 20.0
        %v308 = vmin.f32 %v299, 20.0
        %v309 = vmin.f32 %v300, 20.0
        %v310 = vmin.f32 %v301, 20.0
        %v311 = vmin.f32 %v302, 20.0
        %v312 = vmul.f32 %v303, 1.442695
        %v313 = vpow.pop %v312
        %v314 = vmul.f32 %v304, 1.442695
        %v315 = vpow.pop %v314
        %v316 = vmul.f32 %v305, 1.442695
        %v317 = vpow.pop %v316
        %v318 = vmul.f32 %v306, 1.442695
        %v319 = vpow.pop %v318
        %v320 = vmul.f32 %v307, 1.442695
        %v321 = vpow.pop %v320
        %v322 = vmul.f32 %v308, 1.442695
        %v323 = vpow.pop %v322
        %v324 = vmul.f32 %v309, 1.442695
        %v325 = vpow.pop %v324
        %v326 = vmul.f32 %v310, 1.442695
        %v327 = vpow.pop %v326
        %v328 = vmul.f32 %v311, 1.442695
        %v329 = vpow.pop %v328
        %v330 = vadd.f32 %v313, 2.0
        %v331 = vadd.f32 %v315, 2.0
        %v332 = vadd.f32 %v317, 2.0
        %v333 = vadd.f32 %v319, 2.0
        %v334 = vadd.f32 %v321, 2.0
        %v335 = vadd.f32 %v323, 2.0
        %v336 = vadd.f32 %v325, 2.0
        %v337 = vadd.f32 %v327, 2.0
        %v338 = vadd.f32 %v329, 2.0
        %v339 = vmul.f32 %v313, %v330
        %v340 = vmul.f32 %v315, %v331
        %v341 = vmul.f32 %v317, %v332
        %v342 = vmul.f32 %v319, %v333
        %v343 = vmul.f32 %v321, %v334
        %v344 = vmul.f32 %v323, %v335
        %v345 = vmul.f32 %v325, %v336
        %v346 = vmul.f32 %v327, %v337
        %v347 = vmul.f32 %v329, %v338
        %v348 = vadd.f32 %v339, 2.0
        %v349 = vadd.f32 %v340, 2.0
        %v350 = vadd.f32 %v341, 2.0
        %v351 = vadd.f32 %v342, 2.0
        %v352 = vadd.f32 %v343, 2.0
        %v353 = vadd.f32 %v344, 2.0
        %v354 = vadd.f32 %v345, 2.0
        %v355 = vadd.f32 %v346, 2.0
        %v356 = vadd.f32 %v347, 2.0
        %v357 = vrcp.pop %v348
        %v358 = vmul.f32 %v339, %v357
        %v359 = vrcp.pop %v349
        %v360 = vmul.f32 %v340, %v359
        %v361 = vrcp.pop %v350
        %v362 = vmul.f32 %v341, %v361
        %v363 = vrcp.pop %v351
        %v364 = vmul.f32 %v342, %v363
        %v365 = vrcp.pop %v352
        %v366 = vmul.f32 %v343, %v365
        %v367 = vrcp.pop %v353
        %v368 = vmul.f32 %v344, %v367
        %v369 = vrcp.pop %v354
        %v370 = vmul.f32 %v345, %v369
        %v371 = vrcp.pop %v355
        %v372 = vmul.f32 %v346, %v371
        %v373 = vrcp.pop %v356
        %v374 = vmul.f32 %v347, %v373
        %v375 = vmul.f32 %v294, %v358
        %v376 = vmul.f32 %v295, %v360
        %v377 = vmul.f32 %v296, %v362
        %v378 = vmul.f32 %v297, %v364
        %v379 = vmul.f32 %v298, %v366
        %v380 = vmul.f32 %v299, %v368
        %v381 = vmul.f32 %v300, %v370
        %v382 = vmul.f32 %v301, %v372
        %v383 = vmul.f32 %v302, %v374
        %v384 = vpack.c.bf16 %v376, %v375
        %v385 = vpack.c.bf16 %v378, %v377
        %v386 = vpack.c.bf16 %v380, %v379
        %v387 = vpack.c.bf16 %v382, %v381
        %v388 = vpack.c.bf16 %v383, %v383
        %v389 = vld [vmem:[%s281] sm:$0xf]
        %v390 = vld [vmem:[%s281 + $0x4] sm:$0xf]
        %v391 = vld [vmem:[%s281 + $0x8] sm:$0xf]
        %v392 = vld [vmem:[%s281 + $0xc] sm:$0xf]
        %v393 = vld [vmem:[%s281 + $0x10] sm:$0xf]
        %v394 = vld [vmem:[%s281 + $0x14] sm:$0xf]
        %v395 = vld [vmem:[%s281 + $0x18] sm:$0xf]
        %v396 = vld [vmem:[%s281 + $0x1c] sm:$0xf]
        %v397 = vld [vmem:[%s281 + $0x20] sm:$0xf]
        %v398 = vld [vmem:[%s281 + $0x24] sm:$0xf]
        %v399 = vld [vmem:[%s281 + $0x28] sm:$0xf]
        %v400 = vld [vmem:[%s281 + $0x2c] sm:$0xf]
        %v401 = vld [vmem:[%s281 + $0x30] sm:$0xf]
        %v402 = vld [vmem:[%s281 + $0x34] sm:$0xf]
        %v403 = vld [vmem:[%s281 + $0x38] sm:$0xf]
        %v404 = vld [vmem:[%s281 + $0x3c] sm:$0xf]
        %v405 = vld [vmem:[%s287] sm:$0x1]
        %v407 = vlaneseq
        %v408 = vshrl.u32 %v407, 7
        %v409 = vsub.s32 0, %v408
        %v410 = vrot.slane %v405, %v409
        %v428 = vunpack.c.l.b16 %v389
        %v429 = vunpack.c.l.b16 %v390
        %v430 = vunpack.c.l.b16 %v391
        %v431 = vunpack.c.l.b16 %v392
        %v432 = vunpack.c.l.b16 %v393
        %v433 = vunpack.c.l.b16 %v394
        %v434 = vunpack.c.l.b16 %v395
        %v435 = vunpack.c.l.b16 %v396
        %v436 = vunpack.c.l.b16 %v397
        %v437 = vunpack.c.l.b16 %v398
        %v438 = vunpack.c.l.b16 %v399
        %v439 = vunpack.c.l.b16 %v400
        %v440 = vunpack.c.l.b16 %v401
        %v441 = vunpack.c.l.b16 %v402
        %v442 = vunpack.c.l.b16 %v403
        %v443 = vunpack.c.l.b16 %v404
        %v444 = vpack.c.b16 %v429, %v428
        %v445 = vpack.c.b16 %v431, %v430
        %v446 = vpack.c.b16 %v433, %v432
        %v447 = vpack.c.b16 %v435, %v434
        %v448 = vpack.c.b16 %v437, %v436
        %v449 = vpack.c.b16 %v439, %v438
        %v450 = vpack.c.b16 %v441, %v440
        %v451 = vpack.c.b16 %v443, %v442
        %460 = vmatprep.subr.bf16.mxu0 0
        %461 = vmatpush1.bf16.msra.mxu0 %v444
        %462 = vmatprep.subr.bf16.mxu0 0
        %463 = vmatpush1.bf16.msra.mxu0 %v445
        %464 = vmatprep.subr.bf16.mxu0 0
        %465 = vmatpush1.bf16.msra.mxu0 %v446
        %466 = vmatprep.subr.bf16.mxu0 0
        %467 = vmatpush1.bf16.msra.mxu0 %v447
        %468 = vmatprep.subr.bf16.mxu0 0
        %469 = vmatpush1.bf16.msra.mxu0 %v448
        %470 = vmatprep.subr.bf16.mxu0 0
        %471 = vmatpush1.bf16.msra.mxu0 %v449
        %472 = vmatprep.subr.bf16.mxu0 0
        %473 = vmatpush1.bf16.msra.mxu0 %v450
        %474 = vmatprep.subr.bf16.mxu0 0
        %475 = vmatpush1.bf16.msra.mxu0 %v451
        %476 = vmatprep.subr.bf16.mxu0 0
        %477 = vmatpush1.bf16.msra.mxu0 0
        %478 = vmatprep.subr.bf16.mxu0 0
        %479 = vmatpush1.bf16.msra.mxu0 0
        %480 = vmatprep.subr.bf16.mxu0 0
        %481 = vmatpush1.bf16.msra.mxu0 0
        %482 = vmatprep.subr.bf16.mxu0 0
        %483 = vmatpush1.bf16.msra.mxu0 0
        %484 = vmatprep.subr.bf16.mxu0 0
        %485 = vmatpush1.bf16.msra.mxu0 0
        %486 = vmatprep.subr.bf16.mxu0 0
        %487 = vmatpush1.bf16.msra.mxu0 0
        %488 = vmatprep.subr.bf16.mxu0 0
        %489 = vmatpush1.bf16.msra.mxu0 0
        %490 = vmatprep.subr.bf16.mxu0 0
        %491 = vmatpush1.bf16.msra.mxu0 0
        %492 = vmatprep.mubr.bf16.mxu0 0
        %493 = vmatmul.mubr.bf16.gmra.mrb[0].mxu0 %v384
        %v494 = vpop.f32.mrb[0].mxu0
        %v495 = vadd.f32 %v410, %v494
        %v496 = vpop.f32.mrb[0].mxu0
        %v497 = vpop.f32.mrb[0].mxu0
        %v498 = vadd.f32 %v410, %v497
        %v499 = vpop.f32.mrb[0].mxu0
        %500 = vmatprep.mubr.bf16.mxu0 0
        %501 = vmatmul.mubr.bf16.gmra.mrb[0].mxu0 %v385
        %v502 = vpop.f32.mrb[0].mxu0
        %v503 = vpop.f32.mrb[0].mxu0
        %v504 = vpop.f32.mrb[0].mxu0
        %v505 = vadd.f32 %v410, %v504
        %v506 = vpop.f32.mrb[0].mxu0
        %507 = vmatprep.mubr.bf16.mxu0 0
        %508 = vmatmul.mubr.bf16.gmra.mrb[0].mxu0 %v386
        %v509 = vpop.f32.mrb[0].mxu0
        %v510 = vadd.f32 %v410, %v509
        %v511 = vpop.f32.mrb[0].mxu0
        %v512 = vpop.f32.mrb[0].mxu0
        %v513 = vadd.f32 %v410, %v512
        %v514 = vpop.f32.mrb[0].mxu0
        %515 = vmatprep.mubr.bf16.mxu0 0
        %516 = vmatmul.mubr.bf16.gmra.mrb[0].mxu0 %v387
        %v517 = vpop.f32.mrb[0].mxu0
        %v518 = vadd.f32 %v410, %v517
        %v519 = vpop.f32.mrb[0].mxu0
        %v520 = vpop.f32.mrb[0].mxu0
        %v521 = vadd.f32 %v410, %v520
        %v522 = vpop.f32.mrb[0].mxu0
        %523 = vmatprep.mubr.bf16.mxu0 0
        %524 = vmatmul.mubr.bf16.gmra.mrb[0].mxu0 %v388
        %v525 = vpop.f32.mrb[0].mxu0
        %v526 = vadd.f32 %v410, %v525
        %v527 = vpop.f32.mrb[0].mxu0
        %v528 = vpop.f32.mrb[0].mxu0
        %v529 = vpop.f32.mrb[0].mxu0
        %530 = vdwg.mxu0
        %v531 = vmin.f32 %v495, 20.0
        %v532 = vmin.f32 %v498, 20.0
        %v533 = vmin.f32 %v505, 20.0
        %v534 = vmin.f32 %v510, 20.0
        %v535 = vmin.f32 %v513, 20.0
        %v536 = vmin.f32 %v518, 20.0
        %v537 = vmin.f32 %v521, 20.0
        %v538 = vmin.f32 %v526, 20.0
        %v539 = vmul.f32 %v531, 1.442695
        %v540 = vpow.pop %v539
        %v541 = vmul.f32 %v532, 1.442695
        %v542 = vpow.pop %v541
        %v543 = vmul.f32 %v533, 1.442695
        %v544 = vpow.pop %v543
        %v545 = vmul.f32 %v534, 1.442695
        %v546 = vpow.pop %v545
        %v547 = vmul.f32 %v535, 1.442695
        %v548 = vpow.pop %v547
        %v549 = vmul.f32 %v536, 1.442695
        %v550 = vpow.pop %v549
        %v551 = vmul.f32 %v537, 1.442695
        %v552 = vpow.pop %v551
        %v553 = vmul.f32 %v538, 1.442695
        %v554 = vpow.pop %v553
        %v555 = vadd.f32 %v540, 2.0
        %v556 = vadd.f32 %v542, 2.0
        %v557 = vadd.f32 %v544, 2.0
        %v558 = vadd.f32 %v546, 2.0
        %v559 = vadd.f32 %v548, 2.0
        %v560 = vadd.f32 %v550, 2.0
        %v561 = vadd.f32 %v552, 2.0
        %v562 = vadd.f32 %v554, 2.0
        %v563 = vmul.f32 %v540, %v555
        %v564 = vmul.f32 %v542, %v556
        %v565 = vmul.f32 %v544, %v557
        %v566 = vmul.f32 %v546, %v558
        %v567 = vmul.f32 %v548, %v559
        %v568 = vmul.f32 %v550, %v560
        %v569 = vmul.f32 %v552, %v561
        %v570 = vmul.f32 %v554, %v562
        %v571 = vadd.f32 %v563, 2.0
        %v572 = vadd.f32 %v564, 2.0
        %v573 = vadd.f32 %v565, 2.0
        %v574 = vadd.f32 %v566, 2.0
        %v575 = vadd.f32 %v567, 2.0
        %v576 = vadd.f32 %v568, 2.0
        %v577 = vadd.f32 %v569, 2.0
        %v578 = vadd.f32 %v570, 2.0
        %v579 = vrcp.pop %v571
        %v580 = vmul.f32 %v563, %v579
        %v581 = vrcp.pop %v572
        %v582 = vmul.f32 %v564, %v581
        %v583 = vrcp.pop %v573
        %v584 = vmul.f32 %v565, %v583
        %v585 = vrcp.pop %v574
        %v586 = vmul.f32 %v566, %v585
        %v587 = vrcp.pop %v575
        %v588 = vmul.f32 %v567, %v587
        %v589 = vrcp.pop %v576
        %v590 = vmul.f32 %v568, %v589
        %v591 = vrcp.pop %v577
        %v592 = vmul.f32 %v569, %v591
        %v593 = vrcp.pop %v578
        %v594 = vmul.f32 %v570, %v593
        %v595 = vmul.f32 %v495, %v580
        %v596 = vmul.f32 %v498, %v582
        %v597 = vmul.f32 %v505, %v584
        %v598 = vmul.f32 %v510, %v586
        %v599 = vmul.f32 %v513, %v588
        %v600 = vmul.f32 %v518, %v590
        %v601 = vmul.f32 %v521, %v592
        %v602 = vmul.f32 %v526, %v594
        %s603 = scalar_lea.vmem %s287, 4
        %v604 = vld [vmem:[%s603] sm:$0x1]
        %v605 = vpack.c.bf16 %v596, %v595
        %s606 = scalar_lea.vmem %s281, 256
        %v607 = vld [vmem:[%s606] sm:$0xf]
        %v608 = vld [vmem:[%s606 + $0x4] sm:$0xf]
        %v609 = vld [vmem:[%s606 + $0x8] sm:$0xf]
        %v610 = vld [vmem:[%s606 + $0xc] sm:$0xf]
        %v611 = vld [vmem:[%s606 + $0x10] sm:$0xf]
        %v612 = vld [vmem:[%s606 + $0x14] sm:$0xf]
        %v613 = vld [vmem:[%s606 + $0x18] sm:$0xf]
        %v614 = vld [vmem:[%s606 + $0x1c] sm:$0xf]
        %v615 = vld [vmem:[%s606 + $0x20] sm:$0xf]
        %v616 = vld [vmem:[%s606 + $0x24] sm:$0xf]
        %v617 = vld [vmem:[%s606 + $0x28] sm:$0xf]
        %v618 = vld [vmem:[%s606 + $0x2c] sm:$0xf]
        %v619 = vld [vmem:[%s606 + $0x30] sm:$0xf]
        %v620 = vld [vmem:[%s606 + $0x34] sm:$0xf]
        %v621 = vld [vmem:[%s606 + $0x38] sm:$0xf]
        %v622 = vld [vmem:[%s606 + $0x3c] sm:$0xf]
        %v623 = vpack.c.bf16 %v598, %v597
        %s624 = scalar_lea.vmem %s281, 320
        %v625 = vld [vmem:[%s624] sm:$0xf]
        %v626 = vld [vmem:[%s624 + $0x4] sm:$0xf]
        %v627 = vld [vmem:[%s624 + $0x8] sm:$0xf]
        %v628 = vld [vmem:[%s624 + $0xc] sm:$0xf]
        %v629 = vld [vmem:[%s624 + $0x10] sm:$0xf]
        %v630 = vld [vmem:[%s624 + $0x14] sm:$0xf]
        %v631 = vld [vmem:[%s624 + $0x18] sm:$0xf]
        %v632 = vld [vmem:[%s624 + $0x1c] sm:$0xf]
        %v633 = vld [vmem:[%s624 + $0x20] sm:$0xf]
        %v634 = vld [vmem:[%s624 + $0x24] sm:$0xf]
        %v635 = vld [vmem:[%s624 + $0x28] sm:$0xf]
        %v636 = vld [vmem:[%s624 + $0x2c] sm:$0xf]
        %v637 = vld [vmem:[%s624 + $0x30] sm:$0xf]
        %v638 = vld [vmem:[%s624 + $0x34] sm:$0xf]
        %v639 = vld [vmem:[%s624 + $0x38] sm:$0xf]
        %v640 = vld [vmem:[%s624 + $0x3c] sm:$0xf]
        %v657 = vunpack.c.l.b16 %v625
        %v658 = vunpack.c.l.b16 %v626
        %v659 = vunpack.c.l.b16 %v627
        %v660 = vunpack.c.l.b16 %v628
        %v661 = vunpack.c.l.b16 %v629
        %v662 = vunpack.c.l.b16 %v630
        %v663 = vunpack.c.l.b16 %v631
        %v664 = vunpack.c.l.b16 %v632
        %v665 = vunpack.c.l.b16 %v633
        %v666 = vunpack.c.l.b16 %v634
        %v667 = vunpack.c.l.b16 %v635
        %v668 = vunpack.c.l.b16 %v636
        %v669 = vunpack.c.l.b16 %v637
        %v670 = vunpack.c.l.b16 %v638
        %v671 = vunpack.c.l.b16 %v639
        %v672 = vunpack.c.l.b16 %v640
        %v673 = vpack.c.b16 %v658, %v657
        %v674 = vpack.c.b16 %v660, %v659
        %v675 = vpack.c.b16 %v662, %v661
        %v676 = vpack.c.b16 %v664, %v663
        %v677 = vpack.c.b16 %v666, %v665
        %v678 = vpack.c.b16 %v668, %v667
        %v679 = vpack.c.b16 %v670, %v669
        %v680 = vpack.c.b16 %v672, %v671
        %689 = vmatprep.subr.bf16.mxu0 0
        %690 = vmatpush1.bf16.msra.mxu0 %v673
        %691 = vmatprep.subr.bf16.mxu0 0
        %692 = vmatpush1.bf16.msra.mxu0 %v674
        %693 = vmatprep.subr.bf16.mxu0 0
        %694 = vmatpush1.bf16.msra.mxu0 %v675
        %695 = vmatprep.subr.bf16.mxu0 0
        %696 = vmatpush1.bf16.msra.mxu0 %v676
        %697 = vmatprep.subr.bf16.mxu0 0
        %698 = vmatpush1.bf16.msra.mxu0 %v677
        %699 = vmatprep.subr.bf16.mxu0 0
        %700 = vmatpush1.bf16.msra.mxu0 %v678
        %701 = vmatprep.subr.bf16.mxu0 0
        %702 = vmatpush1.bf16.msra.mxu0 %v679
        %703 = vmatprep.subr.bf16.mxu0 0
        %704 = vmatpush1.bf16.msra.mxu0 %v680
        %705 = vmatprep.subr.bf16.mxu0 0
        %706 = vmatpush1.bf16.msra.mxu0 0
        %707 = vmatprep.subr.bf16.mxu0 0
        %708 = vmatpush1.bf16.msra.mxu0 0
        %709 = vmatprep.subr.bf16.mxu0 0
        %710 = vmatpush1.bf16.msra.mxu0 0
        %711 = vmatprep.subr.bf16.mxu0 0
        %712 = vmatpush1.bf16.msra.mxu0 0
        %713 = vmatprep.subr.bf16.mxu0 0
        %714 = vmatpush1.bf16.msra.mxu0 0
        %715 = vmatprep.subr.bf16.mxu0 0
        %716 = vmatpush1.bf16.msra.mxu0 0
        %717 = vmatprep.subr.bf16.mxu0 0
        %718 = vmatpush1.bf16.msra.mxu0 0
        %719 = vmatprep.subr.bf16.mxu0 0
        %720 = vmatpush1.bf16.msra.mxu0 0
        %721 = vmatprep.mubr.bf16.mxu0 0
        %722 = vmatmul.mubr.bf16.gmra.mrb[0].mxu0 %v623
        %v723 = vpop.f32.mrb[0].mxu0
        %v724 = vadd.f32 0.0, %v723
        %v725 = vpop.f32.mrb[0].mxu0
        %v726 = vpop.f32.mrb[0].mxu0
        %v727 = vadd.f32 0.0, %v726
        %v728 = vpop.f32.mrb[0].mxu0
        %729 = vdwg.mxu0
        %v746 = vunpack.c.l.b16 %v607
        %v747 = vunpack.c.l.b16 %v608
        %v748 = vunpack.c.l.b16 %v609
        %v749 = vunpack.c.l.b16 %v610
        %v750 = vunpack.c.l.b16 %v611
        %v751 = vunpack.c.l.b16 %v612
        %v752 = vunpack.c.l.b16 %v613
        %v753 = vunpack.c.l.b16 %v614
        %v754 = vunpack.c.l.b16 %v615
        %v755 = vunpack.c.l.b16 %v616
        %v756 = vunpack.c.l.b16 %v617
        %v757 = vunpack.c.l.b16 %v618
        %v758 = vunpack.c.l.b16 %v619
        %v759 = vunpack.c.l.b16 %v620
        %v760 = vunpack.c.l.b16 %v621
        %v761 = vunpack.c.l.b16 %v622
        %v762 = vpack.c.b16 %v747, %v746
        %v763 = vpack.c.b16 %v749, %v748
        %v764 = vpack.c.b16 %v751, %v750
        %v765 = vpack.c.b16 %v753, %v752
        %v766 = vpack.c.b16 %v755, %v754
        %v767 = vpack.c.b16 %v757, %v756
        %v768 = vpack.c.b16 %v759, %v758
        %v769 = vpack.c.b16 %v761, %v760
        %778 = vmatprep.subr.bf16.mxu0 0
        %779 = vmatpush1.bf16.msra.mxu0 %v762
        %780 = vmatprep.subr.bf16.mxu0 0
        %781 = vmatpush1.bf16.msra.mxu0 %v763
        %782 = vmatprep.subr.bf16.mxu0 0
        %783 = vmatpush1.bf16.msra.mxu0 %v764
        %784 = vmatprep.subr.bf16.mxu0 0
        %785 = vmatpush1.bf16.msra.mxu0 %v765
        %786 = vmatprep.subr.bf16.mxu0 0
        %787 = vmatpush1.bf16.msra.mxu0 %v766
        %788 = vmatprep.subr.bf16.mxu0 0
        %789 = vmatpush1.bf16.msra.mxu0 %v767
        %790 = vmatprep.subr.bf16.mxu0 0
        %791 = vmatpush1.bf16.msra.mxu0 %v768
        %792 = vmatprep.subr.bf16.mxu0 0
        %793 = vmatpush1.bf16.msra.mxu0 %v769
        %794 = vmatprep.subr.bf16.mxu0 0
        %795 = vmatpush1.bf16.msra.mxu0 0
        %796 = vmatprep.subr.bf16.mxu0 0
        %797 = vmatpush1.bf16.msra.mxu0 0
        %798 = vmatprep.subr.bf16.mxu0 0
        %799 = vmatpush1.bf16.msra.mxu0 0
        %800 = vmatprep.subr.bf16.mxu0 0
        %801 = vmatpush1.bf16.msra.mxu0 0
        %802 = vmatprep.subr.bf16.mxu0 0
        %803 = vmatpush1.bf16.msra.mxu0 0
        %804 = vmatprep.subr.bf16.mxu0 0
        %805 = vmatpush1.bf16.msra.mxu0 0
        %806 = vmatprep.subr.bf16.mxu0 0
        %807 = vmatpush1.bf16.msra.mxu0 0
        %808 = vmatprep.subr.bf16.mxu0 0
        %809 = vmatpush1.bf16.msra.mxu0 0
        %810 = vmatprep.mubr.bf16.mxu0 0
        %811 = vmatmul.mubr.bf16.gmra.mrb[0].mxu0 %v605
        %v812 = vpop.f32.mrb[0].mxu0
        %v813 = vadd.f32 %v724, %v812
        %v814 = vpop.f32.mrb[0].mxu0
        %v815 = vpop.f32.mrb[0].mxu0
        %v816 = vadd.f32 %v727, %v815
        %v817 = vpop.f32.mrb[0].mxu0
        %818 = vdwg.mxu0
        %v819 = vpack.c.bf16 %v599, %v598
        %s820 = scalar_lea.vmem %s281, 384
        %v821 = vld [vmem:[%s820] sm:$0xf]
        %v822 = vld [vmem:[%s820 + $0x4] sm:$0xf]
        %v823 = vld [vmem:[%s820 + $0x8] sm:$0xf]
        %v824 = vld [vmem:[%s820 + $0xc] sm:$0xf]
        %v825 = vld [vmem:[%s820 + $0x10] sm:$0xf]
        %v826 = vld [vmem:[%s820 + $0x14] sm:$0xf]
        %v827 = vld [vmem:[%s820 + $0x18] sm:$0xf]
        %v828 = vld [vmem:[%s820 + $0x1c] sm:$0xf]
        %v829 = vld [vmem:[%s820 + $0x20] sm:$0xf]
        %v830 = vld [vmem:[%s820 + $0x24] sm:$0xf]
        %v831 = vld [vmem:[%s820 + $0x28] sm:$0xf]
        %v832 = vld [vmem:[%s820 + $0x2c] sm:$0xf]
        %v833 = vld [vmem:[%s820 + $0x30] sm:$0xf]
        %v834 = vld [vmem:[%s820 + $0x34] sm:$0xf]
        %v835 = vld [vmem:[%s820 + $0x38] sm:$0xf]
        %v836 = vld [vmem:[%s820 + $0x3c] sm:$0xf]
        %v853 = vunpack.c.l.b16 %v821
        %v854 = vunpack.c.l.b16 %v822
        %v855 = vunpack.c.l.b16 %v823
        %v856 = vunpack.c.l.b16 %v824
        %v857 = vunpack.c.l.b16 %v825
        %v858 = vunpack.c.l.b16 %v826
        %v859 = vunpack.c.l.b16 %v827
        %v860 = vunpack.c.l.b16 %v828
        %v861 = vunpack.c.l.b16 %v829
        %v862 = vunpack.c.l.b16 %v830
        %v863 = vunpack.c.l.b16 %v831
        %v864 = vunpack.c.l.b16 %v832
        %v865 = vunpack.c.l.b16 %v833
        %v866 = vunpack.c.l.b16 %v834
        %v867 = vunpack.c.l.b16 %v835
        %v868 = vunpack.c.l.b16 %v836
        %v869 = vpack.c.b16 %v854, %v853
        %v870 = vpack.c.b16 %v856, %v855
        %v871 = vpack.c.b16 %v858, %v857
        %v872 = vpack.c.b16 %v860, %v859
        %v873 = vpack.c.b16 %v862, %v861
        %v874 = vpack.c.b16 %v864, %v863
        %v875 = vpack.c.b16 %v866, %v865
        %v876 = vpack.c.b16 %v868, %v867
        %885 = vmatprep.subr.bf16.mxu0 0
        %886 = vmatpush1.bf16.msra.mxu0 %v869
        %887 = vmatprep.subr.bf16.mxu0 0
        %888 = vmatpush1.bf16.msra.mxu0 %v870
        %889 = vmatprep.subr.bf16.mxu0 0
        %890 = vmatpush1.bf16.msra.mxu0 %v871
        %891 = vmatprep.subr.bf16.mxu0 0
        %892 = vmatpush1.bf16.msra.mxu0 %v872
        %893 = vmatprep.subr.bf16.mxu0 0
        %894 = vmatpush1.bf16.msra.mxu0 %v873
        %895 = vmatprep.subr.bf16.mxu0 0
        %896 = vmatpush1.bf16.msra.mxu0 %v874
        %897 = vmatprep.subr.bf16.mxu0 0
        %898 = vmatpush1.bf16.msra.mxu0 %v875
        %899 = vmatprep.subr.bf16.mxu0 0
        %900 = vmatpush1.bf16.msra.mxu0 %v876
        %901 = vmatprep.subr.bf16.mxu0 0
        %902 = vmatpush1.bf16.msra.mxu0 0
        %903 = vmatprep.subr.bf16.mxu0 0
        %904 = vmatpush1.bf16.msra.mxu0 0
        %905 = vmatprep.subr.bf16.mxu0 0
        %906 = vmatpush1.bf16.msra.mxu0 0
        %907 = vmatprep.subr.bf16.mxu0 0
        %908 = vmatpush1.bf16.msra.mxu0 0
        %909 = vmatprep.subr.bf16.mxu0 0
        %910 = vmatpush1.bf16.msra.mxu0 0
        %911 = vmatprep.subr.bf16.mxu0 0
        %912 = vmatpush1.bf16.msra.mxu0 0
        %913 = vmatprep.subr.bf16.mxu0 0
        %914 = vmatpush1.bf16.msra.mxu0 0
        %915 = vmatprep.subr.bf16.mxu0 0
        %916 = vmatpush1.bf16.msra.mxu0 0
        %917 = vmatprep.mubr.bf16.mxu0 0
        %918 = vmatmul.mubr.bf16.gmra.mrb[0].mxu0 %v819
        %v919 = vpop.f32.mrb[0].mxu0
        %v920 = vadd.f32 0.0, %v919
        %v921 = vpop.f32.mrb[0].mxu0
        %v922 = vpop.f32.mrb[0].mxu0
        %v923 = vadd.f32 0.0, %v922
        %v924 = vpop.f32.mrb[0].mxu0
        %925 = vdwg.mxu0
        %v926 = vadd.f32 %v813, %v920
        %v927 = vadd.f32 %v816, %v923
        %v929 = vlaneseq
        %v930 = vshrl.u32 %v929, 7
        %v931 = vsub.s32 0, %v930
        %v932 = vrot.slane %v604, %v931
        %v934 = vadd.f32 %v926, %v932
        %v935 = vadd.f32 %v927, %v932
        %v936 = vmin.f32 %v934, 20.0
        %v937 = vmin.f32 %v935, 20.0
        %v938 = vmul.f32 %v936, 1.442695
        %v939 = vpow.pop %v938
        %v940 = vmul.f32 %v937, 1.442695
        %v941 = vpow.pop %v940
        %v942 = vadd.f32 %v939, 2.0
        %v943 = vadd.f32 %v941, 2.0
        %v944 = vmul.f32 %v939, %v942
        %v945 = vmul.f32 %v941, %v943
        %v946 = vadd.f32 %v944, 2.0
        %v947 = vadd.f32 %v945, 2.0
        %v948 = vrcp.pop %v946
        %v949 = vmul.f32 %v944, %v948
        %v950 = vrcp.pop %v947
        %v951 = vmul.f32 %v945, %v950
        %v952 = vmul.f32 %v934, %v949
        %v953 = vmul.f32 %v935, %v951
        %v954 = vpack.c.bf16 %v601, %v600
        %955 = vmatprep.subr.bf16.mxu0 0
        %956 = vmatpush1.bf16.msra.mxu0 %v673
        %957 = vmatprep.subr.bf16.mxu0 0
        %958 = vmatpush1.bf16.msra.mxu0 %v674
        %959 = vmatprep.subr.bf16.mxu0 0
        %960 = vmatpush1.bf16.msra.mxu0 %v675
        %961 = vmatprep.subr.bf16.mxu0 0
        %962 = vmatpush1.bf16.msra.mxu0 %v676
        %963 = vmatprep.subr.bf16.mxu0 0
        %964 = vmatpush1.bf16.msra.mxu0 %v677
        %965 = vmatprep.subr.bf16.mxu0 0
        %966 = vmatpush1.bf16.msra.mxu0 %v678
        %967 = vmatprep.subr.bf16.mxu0 0
        %968 = vmatpush1.bf16.msra.mxu0 %v679
        %969 = vmatprep.subr.bf16.mxu0 0
        %970 = vmatpush1.bf16.msra.mxu0 %v680
        %971 = vmatprep.subr.bf16.mxu0 0
        %972 = vmatpush1.bf16.msra.mxu0 0
        %973 = vmatprep.subr.bf16.mxu0 0
        %974 = vmatpush1.bf16.msra.mxu0 0
        %975 = vmatprep.subr.bf16.mxu0 0
        %976 = vmatpush1.bf16.msra.mxu0 0
        %977 = vmatprep.subr.bf16.mxu0 0
        %978 = vmatpush1.bf16.msra.mxu0 0
        %979 = vmatprep.subr.bf16.mxu0 0
        %980 = vmatpush1.bf16.msra.mxu0 0
        %981 = vmatprep.subr.bf16.mxu0 0
        %982 = vmatpush1.bf16.msra.mxu0 0
        %983 = vmatprep.subr.bf16.mxu0 0
        %984 = vmatpush1.bf16.msra.mxu0 0
        %985 = vmatprep.subr.bf16.mxu0 0
        %986 = vmatpush1.bf16.msra.mxu0 0
        %987 = vmatprep.mubr.bf16.mxu0 0
        %988 = vmatmul.mubr.bf16.gmra.mrb[0].mxu0 %v954
        %v989 = vpop.f32.mrb[0].mxu0
        %v990 = vadd.f32 0.0, %v989
        %v991 = vpop.f32.mrb[0].mxu0
        %v992 = vpop.f32.mrb[0].mxu0
        %v993 = vadd.f32 0.0, %v992
        %v994 = vpop.f32.mrb[0].mxu0
        %995 = vdwg.mxu0
        %996 = vmatprep.subr.bf16.mxu0 0
        %997 = vmatpush1.bf16.msra.mxu0 %v762
        %998 = vmatprep.subr.bf16.mxu0 0
        %999 = vmatpush1.bf16.msra.mxu0 %v763
        %1000 = vmatprep.subr.bf16.mxu0 0
        %1001 = vmatpush1.bf16.msra.mxu0 %v764
        %1002 = vmatprep.subr.bf16.mxu0 0
        %1003 = vmatpush1.bf16.msra.mxu0 %v765
        %1004 = vmatprep.subr.bf16.mxu0 0
        %1005 = vmatpush1.bf16.msra.mxu0 %v766
        %1006 = vmatprep.subr.bf16.mxu0 0
        %1007 = vmatpush1.bf16.msra.mxu0 %v767
        %1008 = vmatprep.subr.bf16.mxu0 0
        %1009 = vmatpush1.bf16.msra.mxu0 %v768
        %1010 = vmatprep.subr.bf16.mxu0 0
        %1011 = vmatpush1.bf16.msra.mxu0 %v769
        %1012 = vmatprep.subr.bf16.mxu0 0
        %1013 = vmatpush1.bf16.msra.mxu0 0
        %1014 = vmatprep.subr.bf16.mxu0 0
        %1015 = vmatpush1.bf16.msra.mxu0 0
        %1016 = vmatprep.subr.bf16.mxu0 0
        %1017 = vmatpush1.bf16.msra.mxu0 0
        %1018 = vmatprep.subr.bf16.mxu0 0
        %1019 = vmatpush1.bf16.msra.mxu0 0
        %1020 = vmatprep.subr.bf16.mxu0 0
        %1021 = vmatpush1.bf16.msra.mxu0 0
        %1022 = vmatprep.subr.bf16.mxu0 0
        %1023 = vmatpush1.bf16.msra.mxu0 0
        %1024 = vmatprep.subr.bf16.mxu0 0
        %1025 = vmatpush1.bf16.msra.mxu0 0
        %1026 = vmatprep.subr.bf16.mxu0 0
        %1027 = vmatpush1.bf16.msra.mxu0 0
        %1028 = vmatprep.mubr.bf16.mxu0 0
        %1029 = vmatmul.mubr.bf16.gmra.mrb[0].mxu0 %v623
        %v1030 = vpop.f32.mrb[0].mxu0
        %v1031 = vadd.f32 %v990, %v1030
        %v1032 = vpop.f32.mrb[0].mxu0
        %v1033 = vpop.f32.mrb[0].mxu0
        %v1034 = vadd.f32 %v993, %v1033
        %v1035 = vpop.f32.mrb[0].mxu0
        %1036 = vdwg.mxu0
        %v1037 = vpack.c.bf16 %v602, %v601
        %1038 = vmatprep.subr.bf16.mxu0 0
        %1039 = vmatpush1.bf16.msra.mxu0 %v869
        %1040 = vmatprep.subr.bf16.mxu0 0
        %1041 = vmatpush1.bf16.msra.mxu0 %v870
        %1042 = vmatprep.subr.bf16.mxu0 0
        %1043 = vmatpush1.bf16.msra.mxu0 %v871
        %1044 = vmatprep.subr.bf16.mxu0 0
        %1045 = vmatpush1.bf16.msra.mxu0 %v872
        %1046 = vmatprep.subr.bf16.mxu0 0
        %1047 = vmatpush1.bf16.msra.mxu0 %v873
        %1048 = vmatprep.subr.bf16.mxu0 0
        %1049 = vmatpush1.bf16.msra.mxu0 %v874
        %1050 = vmatprep.subr.bf16.mxu0 0
        %1051 = vmatpush1.bf16.msra.mxu0 %v875
        %1052 = vmatprep.subr.bf16.mxu0 0
        %1053 = vmatpush1.bf16.msra.mxu0 %v876
        %1054 = vmatprep.subr.bf16.mxu0 0
        %1055 = vmatpush1.bf16.msra.mxu0 0
        %1056 = vmatprep.subr.bf16.mxu0 0
        %1057 = vmatpush1.bf16.msra.mxu0 0
        %1058 = vmatprep.subr.bf16.mxu0 0
        %1059 = vmatpush1.bf16.msra.mxu0 0
        %1060 = vmatprep.subr.bf16.mxu0 0
        %1061 = vmatpush1.bf16.msra.mxu0 0
        %1062 = vmatprep.subr.bf16.mxu0 0
        %1063 = vmatpush1.bf16.msra.mxu0 0
        %1064 = vmatprep.subr.bf16.mxu0 0
        %1065 = vmatpush1.bf16.msra.mxu0 0
        %1066 = vmatprep.subr.bf16.mxu0 0
        %1067 = vmatpush1.bf16.msra.mxu0 0
        %1068 = vmatprep.subr.bf16.mxu0 0
        %1069 = vmatpush1.bf16.msra.mxu0 0
        %1070 = vmatprep.mubr.bf16.mxu0 0
        %1071 = vmatmul.mubr.bf16.gmra.mrb[0].mxu0 %v1037
        %v1072 = vpop.f32.mrb[0].mxu0
        %v1073 = vadd.f32 0.0, %v1072
        %v1074 = vpop.f32.mrb[0].mxu0
        %v1075 = vpop.f32.mrb[0].mxu0
        %v1076 = vadd.f32 0.0, %v1075
        %v1077 = vpop.f32.mrb[0].mxu0
        %1078 = vdwg.mxu0
        %v1079 = vadd.f32 %v1031, %v1073
        %v1080 = vadd.f32 %v1034, %v1076
        %v1081 = vadd.f32 %v1079, %v932
        %v1082 = vadd.f32 %v1080, %v932
        %v1083 = vmin.f32 %v1081, 20.0
        %v1084 = vmin.f32 %v1082, 20.0
        %v1085 = vmul.f32 %v1083, 1.442695
        %v1086 = vpow.pop %v1085
        %v1087 = vmul.f32 %v1084, 1.442695
        %v1088 = vpow.pop %v1087
        %v1089 = vadd.f32 %v1086, 2.0
        %v1090 = vadd.f32 %v1088, 2.0
        %v1091 = vmul.f32 %v1086, %v1089
        %v1092 = vmul.f32 %v1088, %v1090
        %v1093 = vadd.f32 %v1091, 2.0
        %v1094 = vadd.f32 %v1092, 2.0
        %v1095 = vrcp.pop %v1093
        %v1096 = vmul.f32 %v1091, %v1095
        %v1097 = vrcp.pop %v1094
        %v1098 = vmul.f32 %v1092, %v1097
        %v1099 = vmul.f32 %v1081, %v1096
        %v1100 = vmul.f32 %v1082, %v1098
        %v1101 = vpack.c.bf16 %v953, %v952
        %s1102 = scalar_lea.vmem %s281, 64
        %v1103 = vld [vmem:[%s1102] sm:$0xf]
        %v1104 = vld [vmem:[%s1102 + $0x4] sm:$0xf]
        %v1105 = vld [vmem:[%s1102 + $0x8] sm:$0xf]
        %v1106 = vld [vmem:[%s1102 + $0xc] sm:$0xf]
        %v1107 = vld [vmem:[%s1102 + $0x10] sm:$0xf]
        %v1108 = vld [vmem:[%s1102 + $0x14] sm:$0xf]
        %v1109 = vld [vmem:[%s1102 + $0x18] sm:$0xf]
        %v1110 = vld [vmem:[%s1102 + $0x1c] sm:$0xf]
        %v1111 = vld [vmem:[%s1102 + $0x20] sm:$0xf]
        %v1112 = vld [vmem:[%s1102 + $0x24] sm:$0xf]
        %v1113 = vld [vmem:[%s1102 + $0x28] sm:$0xf]
        %v1114 = vld [vmem:[%s1102 + $0x2c] sm:$0xf]
        %v1115 = vld [vmem:[%s1102 + $0x30] sm:$0xf]
        %v1116 = vld [vmem:[%s1102 + $0x34] sm:$0xf]
        %v1117 = vld [vmem:[%s1102 + $0x38] sm:$0xf]
        %v1118 = vld [vmem:[%s1102 + $0x3c] sm:$0xf]
        %s1119 = scalar_lea.vmem %s287, 1
        %v1120 = vld [vmem:[%s1119] sm:$0x1]
        %v1122 = vlaneseq
        %v1123 = vshrl.u32 %v1122, 7
        %v1124 = vsub.s32 0, %v1123
        %v1125 = vrot.slane %v1120, %v1124
        %v1143 = vunpack.c.l.b16 %v1103
        %v1144 = vunpack.c.l.b16 %v1104
        %v1145 = vunpack.c.l.b16 %v1105
        %v1146 = vunpack.c.l.b16 %v1106
        %v1147 = vunpack.c.l.b16 %v1107
        %v1148 = vunpack.c.l.b16 %v1108
        %v1149 = vunpack.c.l.b16 %v1109
        %v1150 = vunpack.c.l.b16 %v1110
        %v1151 = vunpack.c.l.b16 %v1111
        %v1152 = vunpack.c.l.b16 %v1112
        %v1153 = vunpack.c.l.b16 %v1113
        %v1154 = vunpack.c.l.b16 %v1114
        %v1155 = vunpack.c.l.b16 %v1115
        %v1156 = vunpack.c.l.b16 %v1116
        %v1157 = vunpack.c.l.b16 %v1117
        %v1158 = vunpack.c.l.b16 %v1118
        %v1159 = vpack.c.b16 %v1144, %v1143
        %v1160 = vpack.c.b16 %v1146, %v1145
        %v1161 = vpack.c.b16 %v1148, %v1147
        %v1162 = vpack.c.b16 %v1150, %v1149
        %v1163 = vpack.c.b16 %v1152, %v1151
        %v1164 = vpack.c.b16 %v1154, %v1153
        %v1165 = vpack.c.b16 %v1156, %v1155
        %v1166 = vpack.c.b16 %v1158, %v1157
        %1175 = vmatprep.subr.bf16.mxu0 0
        %1176 = vmatpush1.bf16.msra.mxu0 %v1159
        %1177 = vmatprep.subr.bf16.mxu0 0
        %1178 = vmatpush1.bf16.msra.mxu0 %v1160
        %1179 = vmatprep.subr.bf16.mxu0 0
        %1180 = vmatpush1.bf16.msra.mxu0 %v1161
        %1181 = vmatprep.subr.bf16.mxu0 0
        %1182 = vmatpush1.bf16.msra.mxu0 %v1162
        %1183 = vmatprep.subr.bf16.mxu0 0
        %1184 = vmatpush1.bf16.msra.mxu0 %v1163
        %1185 = vmatprep.subr.bf16.mxu0 0
        %1186 = vmatpush1.bf16.msra.mxu0 %v1164
        %1187 = vmatprep.subr.bf16.mxu0 0
        %1188 = vmatpush1.bf16.msra.mxu0 %v1165
        %1189 = vmatprep.subr.bf16.mxu0 0
        %1190 = vmatpush1.bf16.msra.mxu0 %v1166
        %1191 = vmatprep.subr.bf16.mxu0 0
        %1192 = vmatpush1.bf16.msra.mxu0 0
        %1193 = vmatprep.subr.bf16.mxu0 0
        %1194 = vmatpush1.bf16.msra.mxu0 0
        %1195 = vmatprep.subr.bf16.mxu0 0
        %1196 = vmatpush1.bf16.msra.mxu0 0
        %1197 = vmatprep.subr.bf16.mxu0 0
        %1198 = vmatpush1.bf16.msra.mxu0 0
        %1199 = vmatprep.subr.bf16.mxu0 0
        %1200 = vmatpush1.bf16.msra.mxu0 0
        %1201 = vmatprep.subr.bf16.mxu0 0
        %1202 = vmatpush1.bf16.msra.mxu0 0
        %1203 = vmatprep.subr.bf16.mxu0 0
        %1204 = vmatpush1.bf16.msra.mxu0 0
        %1205 = vmatprep.subr.bf16.mxu0 0
        %1206 = vmatpush1.bf16.msra.mxu0 0
        %1207 = vmatprep.mubr.bf16.mxu0 0
        %1208 = vmatmul.mubr.bf16.gmra.mrb[0].mxu0 %v1101
        %v1209 = vpop.f32.mrb[0].mxu0
        %v1210 = vadd.f32 %v1125, %v1209
        %v1211 = vpop.f32.mrb[0].mxu0
        %v1212 = vpop.f32.mrb[0].mxu0
        %v1213 = vpop.f32.mrb[0].mxu0
        %1214 = vdwg.mxu0
        %v1215 = vmin.f32 %v1210, 20.0
        %v1216 = vmul.f32 %v1215, 1.442695
        %v1217 = vpow.pop %v1216
        %v1218 = vadd.f32 %v1217, 2.0
        %v1219 = vmul.f32 %v1217, %v1218
        %v1220 = vadd.f32 %v1219, 2.0
        %v1221 = vrcp.pop %v1220
        %v1222 = vmul.f32 %v1219, %v1221
        %v1223 = vmul.f32 %v1210, %v1222
        %v1224 = vpack.c.bf16 %v1100, %v1099
        %1225 = vmatprep.subr.bf16.mxu0 0
        %1226 = vmatpush1.bf16.msra.mxu0 %v1159
        %1227 = vmatprep.subr.bf16.mxu0 0
        %1228 = vmatpush1.bf16.msra.mxu0 %v1160
        %1229 = vmatprep.subr.bf16.mxu0 0
        %1230 = vmatpush1.bf16.msra.mxu0 %v1161
        %1231 = vmatprep.subr.bf16.mxu0 0
        %1232 = vmatpush1.bf16.msra.mxu0 %v1162
        %1233 = vmatprep.subr.bf16.mxu0 0
        %1234 = vmatpush1.bf16.msra.mxu0 %v1163
        %1235 = vmatprep.subr.bf16.mxu0 0
        %1236 = vmatpush1.bf16.msra.mxu0 %v1164
        %1237 = vmatprep.subr.bf16.mxu0 0
        %1238 = vmatpush1.bf16.msra.mxu0 %v1165
        %1239 = vmatprep.subr.bf16.mxu0 0
        %1240 = vmatpush1.bf16.msra.mxu0 %v1166
        %1241 = vmatprep.subr.bf16.mxu0 0
        %1242 = vmatpush1.bf16.msra.mxu0 0
        %1243 = vmatprep.subr.bf16.mxu0 0
        %1244 = vmatpush1.bf16.msra.mxu0 0
        %1245 = vmatprep.subr.bf16.mxu0 0
        %1246 = vmatpush1.bf16.msra.mxu0 0
        %1247 = vmatprep.subr.bf16.mxu0 0
        %1248 = vmatpush1.bf16.msra.mxu0 0
        %1249 = vmatprep.subr.bf16.mxu0 0
        %1250 = vmatpush1.bf16.msra.mxu0 0
        %1251 = vmatprep.subr.bf16.mxu0 0
        %1252 = vmatpush1.bf16.msra.mxu0 0
        %1253 = vmatprep.subr.bf16.mxu0 0
        %1254 = vmatpush1.bf16.msra.mxu0 0
        %1255 = vmatprep.subr.bf16.mxu0 0
        %1256 = vmatpush1.bf16.msra.mxu0 0
        %1257 = vmatprep.mubr.bf16.mxu0 0
        %1258 = vmatmul.mubr.bf16.gmra.mrb[0].mxu0 %v1224
        %v1259 = vpop.f32.mrb[0].mxu0
        %v1260 = vadd.f32 %v1125, %v1259
        %v1261 = vpop.f32.mrb[0].mxu0
        %v1262 = vpop.f32.mrb[0].mxu0
        %v1263 = vadd.f32 %v1125, %v1262
        %v1264 = vpop.f32.mrb[0].mxu0
        %1265 = vdwg.mxu0
        %v1266 = vmin.f32 %v1260, 20.0
        %v1267 = vmin.f32 %v1263, 20.0
        %v1268 = vmul.f32 %v1266, 1.442695
        %v1269 = vpow.pop %v1268
        %v1270 = vmul.f32 %v1267, 1.442695
        %v1271 = vpow.pop %v1270
        %v1272 = vadd.f32 %v1269, 2.0
        %v1273 = vadd.f32 %v1271, 2.0
        %v1274 = vmul.f32 %v1269, %v1272
        %v1275 = vmul.f32 %v1271, %v1273
        %v1276 = vadd.f32 %v1274, 2.0
        %v1277 = vadd.f32 %v1275, 2.0
        %v1278 = vrcp.pop %v1276
        %v1279 = vmul.f32 %v1274, %v1278
        %v1280 = vrcp.pop %v1277
        %v1281 = vmul.f32 %v1275, %v1280
        %v1282 = vmul.f32 %v1260, %v1279
        %v1283 = vmul.f32 %v1263, %v1281
        %v1284 = vpack.c.bf16 %v1223, %v1223
        %s1285 = scalar_lea.vmem %s281, 448
        %v1286 = vld [vmem:[%s1285] sm:$0xf]
        %v1287 = vld [vmem:[%s1285 + $0x4] sm:$0xf]
        %v1288 = vld [vmem:[%s1285 + $0x8] sm:$0xf]
        %v1289 = vld [vmem:[%s1285 + $0xc] sm:$0xf]
        %v1290 = vld [vmem:[%s1285 + $0x10] sm:$0xf]
        %v1291 = vld [vmem:[%s1285 + $0x14] sm:$0xf]
        %v1292 = vld [vmem:[%s1285 + $0x18] sm:$0xf]
        %v1293 = vld [vmem:[%s1285 + $0x1c] sm:$0xf]
        %v1294 = vld [vmem:[%s1285 + $0x20] sm:$0xf]
        %v1295 = vld [vmem:[%s1285 + $0x24] sm:$0xf]
        %v1296 = vld [vmem:[%s1285 + $0x28] sm:$0xf]
        %v1297 = vld [vmem:[%s1285 + $0x2c] sm:$0xf]
        %v1298 = vld [vmem:[%s1285 + $0x30] sm:$0xf]
        %v1299 = vld [vmem:[%s1285 + $0x34] sm:$0xf]
        %v1300 = vld [vmem:[%s1285 + $0x38] sm:$0xf]
        %v1301 = vld [vmem:[%s1285 + $0x3c] sm:$0xf]
        %v1302 = vpack.c.bf16 %v1282, %v1282
        %s1303 = scalar_lea.vmem %s281, 512
        %v1304 = vld [vmem:[%s1303] sm:$0xf]
        %v1305 = vld [vmem:[%s1303 + $0x4] sm:$0xf]
        %v1306 = vld [vmem:[%s1303 + $0x8] sm:$0xf]
        %v1307 = vld [vmem:[%s1303 + $0xc] sm:$0xf]
        %v1308 = vld [vmem:[%s1303 + $0x10] sm:$0xf]
        %v1309 = vld [vmem:[%s1303 + $0x14] sm:$0xf]
        %v1310 = vld [vmem:[%s1303 + $0x18] sm:$0xf]
        %v1311 = vld [vmem:[%s1303 + $0x1c] sm:$0xf]
        %v1312 = vld [vmem:[%s1303 + $0x20] sm:$0xf]
        %v1313 = vld [vmem:[%s1303 + $0x24] sm:$0xf]
        %v1314 = vld [vmem:[%s1303 + $0x28] sm:$0xf]
        %v1315 = vld [vmem:[%s1303 + $0x2c] sm:$0xf]
        %v1316 = vld [vmem:[%s1303 + $0x30] sm:$0xf]
        %v1317 = vld [vmem:[%s1303 + $0x34] sm:$0xf]
        %v1318 = vld [vmem:[%s1303 + $0x38] sm:$0xf]
        %v1319 = vld [vmem:[%s1303 + $0x3c] sm:$0xf]
        %v1336 = vunpack.c.l.b16 %v1304
        %v1337 = vunpack.c.l.b16 %v1305
        %v1338 = vunpack.c.l.b16 %v1306
        %v1339 = vunpack.c.l.b16 %v1307
        %v1340 = vunpack.c.l.b16 %v1308
        %v1341 = vunpack.c.l.b16 %v1309
        %v1342 = vunpack.c.l.b16 %v1310
        %v1343 = vunpack.c.l.b16 %v1311
        %v1344 = vunpack.c.l.b16 %v1312
        %v1345 = vunpack.c.l.b16 %v1313
        %v1346 = vunpack.c.l.b16 %v1314
        %v1347 = vunpack.c.l.b16 %v1315
        %v1348 = vunpack.c.l.b16 %v1316
        %v1349 = vunpack.c.l.b16 %v1317
        %v1350 = vunpack.c.l.b16 %v1318
        %v1351 = vunpack.c.l.b16 %v1319
        %v1352 = vpack.c.b16 %v1337, %v1336
        %v1353 = vpack.c.b16 %v1339, %v1338
        %v1354 = vpack.c.b16 %v1341, %v1340
        %v1355 = vpack.c.b16 %v1343, %v1342
        %v1356 = vpack.c.b16 %v1345, %v1344
        %v1357 = vpack.c.b16 %v1347, %v1346
        %v1358 = vpack.c.b16 %v1349, %v1348
        %v1359 = vpack.c.b16 %v1351, %v1350
        %1368 = vmatprep.subr.bf16.mxu0 0
        %1369 = vmatpush1.bf16.msra.mxu0 %v1352
        %1370 = vmatprep.subr.bf16.mxu0 0
        %1371 = vmatpush1.bf16.msra.mxu0 %v1353
        %1372 = vmatprep.subr.bf16.mxu0 0
        %1373 = vmatpush1.bf16.msra.mxu0 %v1354
        %1374 = vmatprep.subr.bf16.mxu0 0
        %1375 = vmatpush1.bf16.msra.mxu0 %v1355
        %1376 = vmatprep.subr.bf16.mxu0 0
        %1377 = vmatpush1.bf16.msra.mxu0 %v1356
        %1378 = vmatprep.subr.bf16.mxu0 0
        %1379 = vmatpush1.bf16.msra.mxu0 %v1357
        %1380 = vmatprep.subr.bf16.mxu0 0
        %1381 = vmatpush1.bf16.msra.mxu0 %v1358
        %1382 = vmatprep.subr.bf16.mxu0 0
        %1383 = vmatpush1.bf16.msra.mxu0 %v1359
        %1384 = vmatprep.subr.bf16.mxu0 0
        %1385 = vmatpush1.bf16.msra.mxu0 0
        %1386 = vmatprep.subr.bf16.mxu0 0
        %1387 = vmatpush1.bf16.msra.mxu0 0
        %1388 = vmatprep.subr.bf16.mxu0 0
        %1389 = vmatpush1.bf16.msra.mxu0 0
        %1390 = vmatprep.subr.bf16.mxu0 0
        %1391 = vmatpush1.bf16.msra.mxu0 0
        %1392 = vmatprep.subr.bf16.mxu0 0
        %1393 = vmatpush1.bf16.msra.mxu0 0
        %1394 = vmatprep.subr.bf16.mxu0 0
        %1395 = vmatpush1.bf16.msra.mxu0 0
        %1396 = vmatprep.subr.bf16.mxu0 0
        %1397 = vmatpush1.bf16.msra.mxu0 0
        %1398 = vmatprep.subr.bf16.mxu0 0
        %1399 = vmatpush1.bf16.msra.mxu0 0
        %1400 = vmatprep.mubr.bf16.mxu0 0
        %1401 = vmatmul.mubr.bf16.gmra.mrb[0].mxu0 %v1302
        %v1402 = vpop.f32.mrb[0].mxu0
        %v1403 = vadd.f32 0.0, %v1402
        %v1404 = vpop.f32.mrb[0].mxu0
        %v1405 = vpop.f32.mrb[0].mxu0
        %v1406 = vpop.f32.mrb[0].mxu0
        %1407 = vdwg.mxu0
        %v1424 = vunpack.c.l.b16 %v1286
        %v1425 = vunpack.c.l.b16 %v1287
        %v1426 = vunpack.c.l.b16 %v1288
        %v1427 = vunpack.c.l.b16 %v1289
        %v1428 = vunpack.c.l.b16 %v1290
        %v1429 = vunpack.c.l.b16 %v1291
        %v1430 = vunpack.c.l.b16 %v1292
        %v1431 = vunpack.c.l.b16 %v1293
        %v1432 = vunpack.c.l.b16 %v1294
        %v1433 = vunpack.c.l.b16 %v1295
        %v1434 = vunpack.c.l.b16 %v1296
        %v1435 = vunpack.c.l.b16 %v1297
        %v1436 = vunpack.c.l.b16 %v1298
        %v1437 = vunpack.c.l.b16 %v1299
        %v1438 = vunpack.c.l.b16 %v1300
        %v1439 = vunpack.c.l.b16 %v1301
        %v1440 = vpack.c.b16 %v1425, %v1424
        %v1441 = vpack.c.b16 %v1427, %v1426
        %v1442 = vpack.c.b16 %v1429, %v1428
        %v1443 = vpack.c.b16 %v1431, %v1430
        %v1444 = vpack.c.b16 %v1433, %v1432
        %v1445 = vpack.c.b16 %v1435, %v1434
        %v1446 = vpack.c.b16 %v1437, %v1436
        %v1447 = vpack.c.b16 %v1439, %v1438
        %1456 = vmatprep.subr.bf16.mxu0 0
        %1457 = vmatpush1.bf16.msra.mxu0 %v1440
        %1458 = vmatprep.subr.bf16.mxu0 0
        %1459 = vmatpush1.bf16.msra.mxu0 %v1441
        %1460 = vmatprep.subr.bf16.mxu0 0
        %1461 = vmatpush1.bf16.msra.mxu0 %v1442
        %1462 = vmatprep.subr.bf16.mxu0 0
        %1463 = vmatpush1.bf16.msra.mxu0 %v1443
        %1464 = vmatprep.subr.bf16.mxu0 0
        %1465 = vmatpush1.bf16.msra.mxu0 %v1444
        %1466 = vmatprep.subr.bf16.mxu0 0
        %1467 = vmatpush1.bf16.msra.mxu0 %v1445
        %1468 = vmatprep.subr.bf16.mxu0 0
        %1469 = vmatpush1.bf16.msra.mxu0 %v1446
        %1470 = vmatprep.subr.bf16.mxu0 0
        %1471 = vmatpush1.bf16.msra.mxu0 %v1447
        %1472 = vmatprep.subr.bf16.mxu0 0
        %1473 = vmatpush1.bf16.msra.mxu0 0
        %1474 = vmatprep.subr.bf16.mxu0 0
        %1475 = vmatpush1.bf16.msra.mxu0 0
        %1476 = vmatprep.subr.bf16.mxu0 0
        %1477 = vmatpush1.bf16.msra.mxu0 0
        %1478 = vmatprep.subr.bf16.mxu0 0
        %1479 = vmatpush1.bf16.msra.mxu0 0
        %1480 = vmatprep.subr.bf16.mxu0 0
        %1481 = vmatpush1.bf16.msra.mxu0 0
        %1482 = vmatprep.subr.bf16.mxu0 0
        %1483 = vmatpush1.bf16.msra.mxu0 0
        %1484 = vmatprep.subr.bf16.mxu0 0
        %1485 = vmatpush1.bf16.msra.mxu0 0
        %1486 = vmatprep.subr.bf16.mxu0 0
        %1487 = vmatpush1.bf16.msra.mxu0 0
        %1488 = vmatprep.mubr.bf16.mxu0 0
        %1489 = vmatmul.mubr.bf16.gmra.mrb[0].mxu0 %v1284
        %v1490 = vpop.f32.mrb[0].mxu0
        %v1491 = vadd.f32 %v1403, %v1490
        %v1492 = vpop.f32.mrb[0].mxu0
        %v1493 = vpop.f32.mrb[0].mxu0
        %v1494 = vpop.f32.mrb[0].mxu0
        %1495 = vdwg.mxu0
        %v1496 = vpack.c.bf16 %v1283, %v1283
        %s1497 = scalar_lea.vmem %s281, 576
        %v1498 = vld [vmem:[%s1497] sm:$0xf]
        %v1499 = vld [vmem:[%s1497 + $0x4] sm:$0xf]
        %v1500 = vld [vmem:[%s1497 + $0x8] sm:$0xf]
        %v1501 = vld [vmem:[%s1497 + $0xc] sm:$0xf]
        %v1502 = vld [vmem:[%s1497 + $0x10] sm:$0xf]
        %v1503 = vld [vmem:[%s1497 + $0x14] sm:$0xf]
        %v1504 = vld [vmem:[%s1497 + $0x18] sm:$0xf]
        %v1505 = vld [vmem:[%s1497 + $0x1c] sm:$0xf]
        %v1506 = vld [vmem:[%s1497 + $0x20] sm:$0xf]
        %v1507 = vld [vmem:[%s1497 + $0x24] sm:$0xf]
        %v1508 = vld [vmem:[%s1497 + $0x28] sm:$0xf]
        %v1509 = vld [vmem:[%s1497 + $0x2c] sm:$0xf]
        %v1510 = vld [vmem:[%s1497 + $0x30] sm:$0xf]
        %v1511 = vld [vmem:[%s1497 + $0x34] sm:$0xf]
        %v1512 = vld [vmem:[%s1497 + $0x38] sm:$0xf]
        %v1513 = vld [vmem:[%s1497 + $0x3c] sm:$0xf]
        %v1530 = vunpack.c.l.b16 %v1498
        %v1531 = vunpack.c.l.b16 %v1499
        %v1532 = vunpack.c.l.b16 %v1500
        %v1533 = vunpack.c.l.b16 %v1501
        %v1534 = vunpack.c.l.b16 %v1502
        %v1535 = vunpack.c.l.b16 %v1503
        %v1536 = vunpack.c.l.b16 %v1504
        %v1537 = vunpack.c.l.b16 %v1505
        %v1538 = vunpack.c.l.b16 %v1506
        %v1539 = vunpack.c.l.b16 %v1507
        %v1540 = vunpack.c.l.b16 %v1508
        %v1541 = vunpack.c.l.b16 %v1509
        %v1542 = vunpack.c.l.b16 %v1510
        %v1543 = vunpack.c.l.b16 %v1511
        %v1544 = vunpack.c.l.b16 %v1512
        %v1545 = vunpack.c.l.b16 %v1513
        %v1546 = vpack.c.b16 %v1531, %v1530
        %v1547 = vpack.c.b16 %v1533, %v1532
        %v1548 = vpack.c.b16 %v1535, %v1534
        %v1549 = vpack.c.b16 %v1537, %v1536
        %v1550 = vpack.c.b16 %v1539, %v1538
        %v1551 = vpack.c.b16 %v1541, %v1540
        %v1552 = vpack.c.b16 %v1543, %v1542
        %v1553 = vpack.c.b16 %v1545, %v1544
        %1562 = vmatprep.subr.bf16.mxu0 0
        %1563 = vmatpush1.bf16.msra.mxu0 %v1546
        %1564 = vmatprep.subr.bf16.mxu0 0
        %1565 = vmatpush1.bf16.msra.mxu0 %v1547
        %1566 = vmatprep.subr.bf16.mxu0 0
        %1567 = vmatpush1.bf16.msra.mxu0 %v1548
        %1568 = vmatprep.subr.bf16.mxu0 0
        %1569 = vmatpush1.bf16.msra.mxu0 %v1549
        %1570 = vmatprep.subr.bf16.mxu0 0
        %1571 = vmatpush1.bf16.msra.mxu0 %v1550
        %1572 = vmatprep.subr.bf16.mxu0 0
        %1573 = vmatpush1.bf16.msra.mxu0 %v1551
        %1574 = vmatprep.subr.bf16.mxu0 0
        %1575 = vmatpush1.bf16.msra.mxu0 %v1552
        %1576 = vmatprep.subr.bf16.mxu0 0
        %1577 = vmatpush1.bf16.msra.mxu0 %v1553
        %1578 = vmatprep.subr.bf16.mxu0 0
        %1579 = vmatpush1.bf16.msra.mxu0 0
        %1580 = vmatprep.subr.bf16.mxu0 0
        %1581 = vmatpush1.bf16.msra.mxu0 0
        %1582 = vmatprep.subr.bf16.mxu0 0
        %1583 = vmatpush1.bf16.msra.mxu0 0
        %1584 = vmatprep.subr.bf16.mxu0 0
        %1585 = vmatpush1.bf16.msra.mxu0 0
        %1586 = vmatprep.subr.bf16.mxu0 0
        %1587 = vmatpush1.bf16.msra.mxu0 0
        %1588 = vmatprep.subr.bf16.mxu0 0
        %1589 = vmatpush1.bf16.msra.mxu0 0
        %1590 = vmatprep.subr.bf16.mxu0 0
        %1591 = vmatpush1.bf16.msra.mxu0 0
        %1592 = vmatprep.subr.bf16.mxu0 0
        %1593 = vmatpush1.bf16.msra.mxu0 0
        %1594 = vmatprep.mubr.bf16.mxu0 0
        %1595 = vmatmul.mubr.bf16.gmra.mrb[0].mxu0 %v1496
        %v1596 = vpop.f32.mrb[0].mxu0
        %v1597 = vadd.f32 0.0, %v1596
        %v1598 = vpop.f32.mrb[0].mxu0
        %v1599 = vpop.f32.mrb[0].mxu0
        %v1600 = vpop.f32.mrb[0].mxu0
        %1601 = vdwg.mxu0
        %v1602 = vadd.f32 %v1491, %v1597
        %s1603 = scalar_lea.vmem %s287, 5
        %v1604 = vld [vmem:[%s1603] sm:$0x1]
        %v1606 = vlaneseq
        %v1607 = vshrl.u32 %v1606, 7
        %v1608 = vsub.s32 0, %v1607
        %v1609 = vrot.slane %v1604, %v1608
        %v1611 = vadd.f32 %v1602, %v1609
        %v1612 = vmin.f32 %v1611, 20.0
        %v1613 = vmul.f32 %v1612, 1.442695
        %v1614 = vpow.pop %v1613
        %v1615 = vadd.f32 %v1614, 2.0
        %v1616 = vmul.f32 %v1614, %v1615
        %v1617 = vadd.f32 %v1616, 2.0
        %v1618 = vrcp.pop %v1617
        %v1619 = vmul.f32 %v1616, %v1618
        %v1620 = vmul.f32 %v1611, %v1619
        %v1621 = vpack.c.bf16 %v1620, %v1620
        %s1622 = scalar_lea.vmem %s281, 128
        %v1623 = vld [vmem:[%s1622] sm:$0xf]
        %v1624 = vld [vmem:[%s1622 + $0x4] sm:$0xf]
        %v1625 = vld [vmem:[%s1622 + $0x8] sm:$0xf]
        %v1626 = vld [vmem:[%s1622 + $0xc] sm:$0xf]
        %v1627 = vld [vmem:[%s1622 + $0x10] sm:$0xf]
        %v1628 = vld [vmem:[%s1622 + $0x14] sm:$0xf]
        %v1629 = vld [vmem:[%s1622 + $0x18] sm:$0xf]
        %v1630 = vld [vmem:[%s1622 + $0x1c] sm:$0xf]
        %v1631 = vld [vmem:[%s1622 + $0x20] sm:$0xf]
        %v1632 = vld [vmem:[%s1622 + $0x24] sm:$0xf]
        %v1633 = vld [vmem:[%s1622 + $0x28] sm:$0xf]
        %v1634 = vld [vmem:[%s1622 + $0x2c] sm:$0xf]
        %v1635 = vld [vmem:[%s1622 + $0x30] sm:$0xf]
        %v1636 = vld [vmem:[%s1622 + $0x34] sm:$0xf]
        %v1637 = vld [vmem:[%s1622 + $0x38] sm:$0xf]
        %v1638 = vld [vmem:[%s1622 + $0x3c] sm:$0xf]
        %s1639 = scalar_lea.vmem %s287, 2
        %v1640 = vld [vmem:[%s1639] sm:$0x1]
        %v1642 = vlaneseq
        %v1643 = vshrl.u32 %v1642, 7
        %v1644 = vsub.s32 0, %v1643
        %v1645 = vrot.slane %v1640, %v1644
        %v1663 = vunpack.c.l.b16 %v1623
        %v1664 = vunpack.c.l.b16 %v1624
        %v1665 = vunpack.c.l.b16 %v1625
        %v1666 = vunpack.c.l.b16 %v1626
        %v1667 = vunpack.c.l.b16 %v1627
        %v1668 = vunpack.c.l.b16 %v1628
        %v1669 = vunpack.c.l.b16 %v1629
        %v1670 = vunpack.c.l.b16 %v1630
        %v1671 = vunpack.c.l.b16 %v1631
        %v1672 = vunpack.c.l.b16 %v1632
        %v1673 = vunpack.c.l.b16 %v1633
        %v1674 = vunpack.c.l.b16 %v1634
        %v1675 = vunpack.c.l.b16 %v1635
        %v1676 = vunpack.c.l.b16 %v1636
        %v1677 = vunpack.c.l.b16 %v1637
        %v1678 = vunpack.c.l.b16 %v1638
        %v1679 = vpack.c.b16 %v1664, %v1663
        %v1680 = vpack.c.b16 %v1666, %v1665
        %v1681 = vpack.c.b16 %v1668, %v1667
        %v1682 = vpack.c.b16 %v1670, %v1669
        %v1683 = vpack.c.b16 %v1672, %v1671
        %v1684 = vpack.c.b16 %v1674, %v1673
        %v1685 = vpack.c.b16 %v1676, %v1675
        %v1686 = vpack.c.b16 %v1678, %v1677
        %1695 = vmatprep.subr.bf16.mxu0 0
        %1696 = vmatpush1.bf16.msra.mxu0 %v1679
        %1697 = vmatprep.subr.bf16.mxu0 0
        %1698 = vmatpush1.bf16.msra.mxu0 %v1680
        %1699 = vmatprep.subr.bf16.mxu0 0
        %1700 = vmatpush1.bf16.msra.mxu0 %v1681
        %1701 = vmatprep.subr.bf16.mxu0 0
        %1702 = vmatpush1.bf16.msra.mxu0 %v1682
        %1703 = vmatprep.subr.bf16.mxu0 0
        %1704 = vmatpush1.bf16.msra.mxu0 %v1683
        %1705 = vmatprep.subr.bf16.mxu0 0
        %1706 = vmatpush1.bf16.msra.mxu0 %v1684
        %1707 = vmatprep.subr.bf16.mxu0 0
        %1708 = vmatpush1.bf16.msra.mxu0 %v1685
        %1709 = vmatprep.subr.bf16.mxu0 0
        %1710 = vmatpush1.bf16.msra.mxu0 %v1686
        %1711 = vmatprep.subr.bf16.mxu0 0
        %1712 = vmatpush1.bf16.msra.mxu0 0
        %1713 = vmatprep.subr.bf16.mxu0 0
        %1714 = vmatpush1.bf16.msra.mxu0 0
        %1715 = vmatprep.subr.bf16.mxu0 0
        %1716 = vmatpush1.bf16.msra.mxu0 0
        %1717 = vmatprep.subr.bf16.mxu0 0
        %1718 = vmatpush1.bf16.msra.mxu0 0
        %1719 = vmatprep.subr.bf16.mxu0 0
        %1720 = vmatpush1.bf16.msra.mxu0 0
        %1721 = vmatprep.subr.bf16.mxu0 0
        %1722 = vmatpush1.bf16.msra.mxu0 0
        %1723 = vmatprep.subr.bf16.mxu0 0
        %1724 = vmatpush1.bf16.msra.mxu0 0
        %1725 = vmatprep.subr.bf16.mxu0 0
        %1726 = vmatpush1.bf16.msra.mxu0 0
        %1727 = vmatprep.mubr.bf16.mxu0 0
        %1728 = vmatmul.mubr.bf16.gmra.mrb[0].mxu0 %v1621
        %v1729 = vpop.f32.mrb[0].mxu0
        %v1730 = vadd.f32 %v1645, %v1729
        %v1731 = vpop.f32.mrb[0].mxu0
        %v1732 = vpop.f32.mrb[0].mxu0
        %v1733 = vpop.f32.mrb[0].mxu0
        %1734 = vdwg.mxu0
        %v1735 = vmin.f32 %v1730, 20.0
        %v1736 = vmul.f32 %v1735, 1.442695
        %v1737 = vpow.pop %v1736
        %v1738 = vadd.f32 %v1737, 2.0
        %v1739 = vmul.f32 %v1737, %v1738
        %v1740 = vadd.f32 %v1739, 2.0
        %v1741 = vrcp.pop %v1740
        %v1742 = vmul.f32 %v1739, %v1741
        %v1743 = vmul.f32 %v1730, %v1742
        %v1744 = vpack.c.bf16 %v1743, %v1743
        %s1745 = scalar_lea.vmem %s281, 192
        %v1746 = vld [vmem:[%s1745] sm:$0xf]
        %v1747 = vld [vmem:[%s1745 + $0x4] sm:$0xf]
        %v1748 = vld [vmem:[%s1745 + $0x8] sm:$0xf]
        %v1749 = vld [vmem:[%s1745 + $0xc] sm:$0xf]
        %v1750 = vld [vmem:[%s1745 + $0x10] sm:$0xf]
        %v1751 = vld [vmem:[%s1745 + $0x14] sm:$0xf]
        %v1752 = vld [vmem:[%s1745 + $0x18] sm:$0xf]
        %v1753 = vld [vmem:[%s1745 + $0x1c] sm:$0xf]
        %v1754 = vld [vmem:[%s1745 + $0x20] sm:$0xf]
        %v1755 = vld [vmem:[%s1745 + $0x24] sm:$0xf]
        %v1756 = vld [vmem:[%s1745 + $0x28] sm:$0xf]
        %v1757 = vld [vmem:[%s1745 + $0x2c] sm:$0xf]
        %v1758 = vld [vmem:[%s1745 + $0x30] sm:$0xf]
        %v1759 = vld [vmem:[%s1745 + $0x34] sm:$0xf]
        %v1760 = vld [vmem:[%s1745 + $0x38] sm:$0xf]
        %v1761 = vld [vmem:[%s1745 + $0x3c] sm:$0xf]
        %s1762 = scalar_lea.vmem %s287, 3
        %v1763 = vld [vmem:[%s1762] sm:$0x1]
        %v1765 = vlaneseq
        %v1766 = vshrl.u32 %v1765, 7
        %v1767 = vsub.s32 0, %v1766
        %v1768 = vrot.slane %v1763, %v1767
        %v1786 = vunpack.c.l.b16 %v1746
        %v1787 = vunpack.c.l.b16 %v1747
        %v1788 = vunpack.c.l.b16 %v1748
        %v1789 = vunpack.c.l.b16 %v1749
        %v1790 = vunpack.c.l.b16 %v1750
        %v1791 = vunpack.c.l.b16 %v1751
        %v1792 = vunpack.c.l.b16 %v1752
        %v1793 = vunpack.c.l.b16 %v1753
        %v1794 = vunpack.c.l.b16 %v1754
        %v1795 = vunpack.c.l.b16 %v1755
        %v1796 = vunpack.c.l.b16 %v1756
        %v1797 = vunpack.c.l.b16 %v1757
        %v1798 = vunpack.c.l.b16 %v1758
        %v1799 = vunpack.c.l.b16 %v1759
        %v1800 = vunpack.c.l.b16 %v1760
        %v1801 = vunpack.c.l.b16 %v1761
        %v1802 = vpack.c.b16 %v1787, %v1786
        %v1803 = vpack.c.b16 %v1789, %v1788
        %v1804 = vpack.c.b16 %v1791, %v1790
        %v1805 = vpack.c.b16 %v1793, %v1792
        %v1806 = vpack.c.b16 %v1795, %v1794
        %v1807 = vpack.c.b16 %v1797, %v1796
        %v1808 = vpack.c.b16 %v1799, %v1798
        %v1809 = vpack.c.b16 %v1801, %v1800
        %1818 = vmatprep.subr.bf16.mxu0 0
        %1819 = vmatpush1.bf16.msra.mxu0 %v1802
        %1820 = vmatprep.subr.bf16.mxu0 0
        %1821 = vmatpush1.bf16.msra.mxu0 %v1803
        %1822 = vmatprep.subr.bf16.mxu0 0
        %1823 = vmatpush1.bf16.msra.mxu0 %v1804
        %1824 = vmatprep.subr.bf16.mxu0 0
        %1825 = vmatpush1.bf16.msra.mxu0 %v1805
        %1826 = vmatprep.subr.bf16.mxu0 0
        %1827 = vmatpush1.bf16.msra.mxu0 %v1806
        %1828 = vmatprep.subr.bf16.mxu0 0
        %1829 = vmatpush1.bf16.msra.mxu0 %v1807
        %1830 = vmatprep.subr.bf16.mxu0 0
        %1831 = vmatpush1.bf16.msra.mxu0 %v1808
        %1832 = vmatprep.subr.bf16.mxu0 0
        %1833 = vmatpush1.bf16.msra.mxu0 %v1809
        %1834 = vmatprep.subr.bf16.mxu0 0
        %1835 = vmatpush1.bf16.msra.mxu0 0
        %1836 = vmatprep.subr.bf16.mxu0 0
        %1837 = vmatpush1.bf16.msra.mxu0 0
        %1838 = vmatprep.subr.bf16.mxu0 0
        %1839 = vmatpush1.bf16.msra.mxu0 0
        %1840 = vmatprep.subr.bf16.mxu0 0
        %1841 = vmatpush1.bf16.msra.mxu0 0
        %1842 = vmatprep.subr.bf16.mxu0 0
        %1843 = vmatpush1.bf16.msra.mxu0 0
        %1844 = vmatprep.subr.bf16.mxu0 0
        %1845 = vmatpush1.bf16.msra.mxu0 0
        %1846 = vmatprep.subr.bf16.mxu0 0
        %1847 = vmatpush1.bf16.msra.mxu0 0
        %1848 = vmatprep.subr.bf16.mxu0 0
        %1849 = vmatpush1.bf16.msra.mxu0 0
        %1850 = vmatprep.mubr.bf16.mxu0 0
        %1851 = vmatmul.mubr.bf16.gmra.mrb[0].mxu0 %v1744
        %v1852 = vpop.f32.mrb[0].mxu0
        %v1853 = vadd.f32 %v1768, %v1852
        %v1854 = vpop.f32.mrb[0].mxu0
        %v1855 = vpop.f32.mrb[0].mxu0
        %v1856 = vpop.f32.mrb[0].mxu0
        %1857 = vdwg.mxu0
        %v1858 = vmax.f32 %v1853, -1.0
        %v1859 = vmin.f32 %v1858, 0.9921875
        %v1860 = vmul.f32 %v1859, 128.0
        %v1861 = vround.ne.pseudo %v1860
        %v1862 = vmul.f32 %v1861, 0.0078125
        %1863 = vst [vmem:[%s292] sm:$0xff] %v1862
        %p1864 = scmp.lt.s32.totalorder %s21, 2
        %s1865 = scalar_select %p1864, %s21, 2
        %s1866 = smul.addr %s1865, 8
        %s1867 = scalar_lea.vmem %s4, %s1866
        // Predicated region
        $region71: #{forward.2} parent=65 // pred_check
          %p1868 = pneg %p121
        $region72: #{forward.2} parent=65 // pred_check_branch
          %1870 = sbr.rel (%p1868) target = $region74
        $region73: #{forward.2} parent=65 // pred_region
          _
        $region74: #{forward.2} parent=65 // pred_fallthru
          _
      $region66: #{forward.2} parent=5 // pred_fallthru
        _
      %p1871 = scmp.le.s32.totalorder 2, %s16
      // Predicated region
      $region75: #{forward.2} parent=5 // pred_check
        %p1872 = pneg %p1871
      $region76: #{forward.2} parent=5 // pred_check_branch
        %1874 = sbr.rel (%p1872) target = $region78
      $region77: #{forward.2} parent=5 // pred_region
        %s1875 = ssub.s32 %s16, 2
        // Predicated region
        $region79: #{forward.2} parent=77 // pred_check
          %p1876 = pneg %p127
        $region80: #{forward.2} parent=77 // pred_check_branch
          %1878 = sbr.rel (%p1876) target = $region82
        $region81: #{forward.2} parent=77 // pred_region
          %p1879 = scmp.lt.s32.totalorder %s22, 2
          %s1880 = scalar_select %p1879, %s22, 2
          %s1881 = smul.addr %s1880, 8
          %s1882 = scalar_lea.vmem %s4, %s1881
        $region82: #{forward.2} parent=77 // pred_fallthru
          _
      $region78: #{forward.2} parent=5 // pred_fallthru
        _
    $region6: #{forward.2} parent=1 // loop_footer
      %s20 = sadd.s32 1, %s16
    $region7: #{forward.2} parent=1 // loop_footer_branch
      %15 = sbr.rel target = $region3
    $region8: #{forward.2} parent=1 // loop_exit
      _

</llo_original>
